<compile_context>
chip_gen: v7x
topology: tpu7x:2x2x1
jax: 0.10.0
libtpu: 0.0.40
codegen_flags: <defaults>
</compile_context>

<pallas_src>
import functools
import math

import numpy as np
import jax
import jax.numpy as jnp
from jax.experimental import pallas as pl
from jax.experimental.pallas import tpu as pltpu

_BIG = 3.0e38          # finite "infinity" sentinel for masked max/min
_LN_EPS = 1e-5
_BN_EPS = 1e-5
_USE_BF16_MXU = True   # bf16 operands for the A @ S neighbour matmuls (f32 accum)
_SRC_CHUNK = 8         # source nodes per vectorized masked-max/min step


# ----------------------------------------------------------------------------
# Fused per-layer Pallas kernel
# ----------------------------------------------------------------------------
def pna_layer_kernel(a_ref, deg_ref, hsrc_ref, hdst_ref,
                     wsrc_ref, wdst_ref, bm_ref,
                     wu_h_ref, wu_agg_ref, bu_ref,
                     bn_scale_ref, bn_shift_ref,
                     wmix_ref, bmix_ref, ln_g_ref, ln_b_ref,
                     o_ref,
                     sum_acc, sum2_acc, max_acc, min_acc,
                     *, delta, snorm, residual, use_bf16):
    """One fused PNA layer (all towers, block-diagonal weights) + tower-mixing
    Linear + LeakyReLU + optional residual + LayerNorm.

    grid = (dst_tiles, src_tiles): the src axis is the neighbour reduction
    (accumulated in VMEM scratch), the dst axis is embarrassingly parallel.

    Message algebra: msg_{i<-j} = h_j @ Wsrc + (h_i @ Wdst + b) = S_j + T_i.
    The dst term T_i is constant over the neighbour reduction, so mean/max/min
    just shift by it and std is invariant to it -> the hot reductions stay
    pure 2-D MXU matmuls / vectorized max-min over S only.
    """
    f32 = jnp.float32
    k = pl.program_id(1)
    nk = pl.num_programs(1)

    @pl.when(k == 0)
    def _init():
        sum_acc[...] = jnp.zeros_like(sum_acc)
        sum2_acc[...] = jnp.zeros_like(sum2_acc)
        max_acc[...] = jnp.full_like(max_acc, -_BIG)
        min_acc[...] = jnp.full_like(min_acc, _BIG)

    a_blk = a_ref[...]                                                 # (TM, TK)
    # S for this src tile, all towers at once (block-diagonal Wsrc).
    s_blk = jnp.dot(hsrc_ref[...], wsrc_ref[...],
                    preferred_element_type=f32)                        # (TK, D)

    # --- sum / sum-of-squares over in-neighbours: wide MXU matmuls ----------
    if use_bf16:
        a_mm = a_blk.astype(jnp.bfloat16)
        s_mm = s_blk.astype(jnp.bfloat16)
        s2_mm = (s_blk * s_blk).astype(jnp.bfloat16)
    else:
        a_mm, s_mm, s2_mm = a_blk, s_blk, s_blk * s_blk
    sum_acc[...] += jnp.dot(a_mm, s_mm, preferred_element_type=f32)
    sum2_acc[...] += jnp.dot(a_mm, s2_mm, preferred_element_type=f32)

    # --- masked max / min over in-neighbours: chunked vectorized reduction --
    # Additive mask: 0 for a neighbour, -BIG for a non-neighbour.  Real edge
    # values are preserved exactly (mask == 0), non-edges collapse to +/-BIG
    # and are clamped away at finalize for zero-degree nodes.
    tk = a_blk.shape[1]
    neg_mask = (jnp.minimum(a_blk, 1.0) - 1.0) * _BIG                  # (TM, TK)
    run_max = max_acc[...]
    run_min = min_acc[...]
    for c0 in range(0, tk, _SRC_CHUNK):
        cc = min(_SRC_CHUNK, tk - c0)
        m_c = neg_mask[:, c0:c0 + cc][:, :, None]                      # (TM, cc, 1)
        vals = s_blk[c0:c0 + cc, :][None, :, :]                        # (1, cc, D)
        run_max = jnp.maximum(run_max, jnp.max(vals + m_c, axis=1))
        run_min = jnp.minimum(run_min, jnp.min(vals - m_c, axis=1))
    max_acc[...] = run_max
    min_acc[...] = run_min

    # --- finalize on the last src tile --------------------------------------
    @pl.when(k == nk - 1)
    def _finalize():
        h_d = hdst_ref[...]                                            # (TM, D)
        deg = deg_ref[...]                                             # (TM, 1)
        d = h_d.shape[1]

        t_dst = jnp.dot(h_d, wdst_ref[...], preferred_element_type=f32) + bm_ref[...]
        safe_deg = jnp.maximum(deg, 1.0)
        inv_deg = pl.reciprocal(safe_deg, approx=True)                 # EUP
        mean_s = sum_acc[...] * inv_deg
        mean_s2 = sum2_acc[...] * inv_deg
        has = deg > 0.5                      # zero in-degree -> zeros (DGL default)

        # clamp sentinels BEFORE adding t_dst so no +/-inf is ever formed
        max_s = jnp.where(has, max_acc[...], 0.0)
        min_s = jnp.where(has, min_acc[...], 0.0)
        mean_msg = jnp.where(has, mean_s + t_dst, 0.0)
        max_msg = jnp.where(has, max_s + t_dst, 0.0)
        min_msg = jnp.where(has, min_s + t_dst, 0.0)
        var = jnp.maximum(mean_s2 - mean_s * mean_s, 0.0)
        std_msg = jnp.where(has, jnp.sqrt(var + 1e-30), 0.0)

        logd = jnp.log(safe_deg + 1.0)
        att = delta * pl.reciprocal(logd, approx=True)                 # attenuation
        amp = logd * (1.0 / delta)                                     # amplification

        # U([h, aggs, aggs*att, aggs*amp]) as block matmuls against the fused
        # (tower-block-diagonal) weight: K = num_towers * t_in per matmul.
        # (Kept as separate row-block matmuls rather than an in-kernel lane
        #  concat of the aggregates, to avoid unaligned minor-dim concats.)
        u = jnp.dot(h_d, wu_h_ref[...], preferred_element_type=f32) + bu_ref[...]
        blk = 0
        for scale in (None, att, amp):
            for agg in (mean_msg, max_msg, min_msg, std_msg):
                xa = agg if scale is None else agg * scale
                u = u + jnp.dot(xa, wu_agg_ref[blk * d:(blk + 1) * d, :],
                                preferred_element_type=f32)
                blk += 1

        u = u * snorm                                     # graph-size norm 1/sqrt(N)
        u = u * bn_scale_ref[...] + bn_shift_ref[...]     # folded eval-mode BatchNorm

        # tower-mixing Linear + LeakyReLU(0.01) (+ residual) + LayerNorm
        z = jnp.dot(u, wmix_ref[...], preferred_element_type=f32) + bmix_ref[...]
        z = jnp.maximum(z, 0.01 * z)                      # LeakyReLU
        if residual:                                      # static flag, no zero tensor
            z = z + h_d
        mu = jnp.mean(z, axis=-1, keepdims=True)
        var_z = jnp.mean((z - mu) * (z - mu), axis=-1, keepdims=True)
        zn = (z - mu) * jax.lax.rsqrt(var_z + _LN_EPS)
        o_ref[...] = zn * ln_g_ref[...] + ln_b_ref[...]


# ----------------------------------------------------------------------------
# Wrappers
# ----------------------------------------------------------------------------
def _block_diag(blocks):
    rows = sum(b.shape[0] for b in blocks)
    cols = sum(b.shape[1] for b in blocks)
    out = jnp.zeros((rows, cols), jnp.float32)
    r = c = 0
    for b in blocks:
        out = out.at[r:r + b.shape[0], c:c + b.shape[1]].set(b)
        r += b.shape[0]
        c += b.shape[1]
    return out


def prepare_fused_layer(layer):
    """Fuse all towers of one PNAConv into block-diagonal matrices and fold
    eval-mode BatchNorm into a per-channel scale/shift (done once, host side)."""
    towers = layer['towers']
    t_in = layer['t_in']
    cat1 = lambda key: jnp.concatenate([tp[key] for tp in towers], axis=1)

    def wu_rows(idx):  # block-diag of per-tower U rows [idx*t_in:(idx+1)*t_in]
        return _block_diag([tp['wu'][idx * t_in:(idx + 1) * t_in, :] for tp in towers])

    # U row-block order: scaler in (identity, attenuation, amplification),
    # aggregator in (mean, max, min, std) -> wu rows 1..12 (row 0 is h).
    wu_agg = jnp.concatenate(
        [wu_rows(1 + s * 4 + a) for s in range(3) for a in range(4)], axis=0)
    bn_scale = jnp.concatenate(
        [tp['bn_g'] * jax.lax.rsqrt(tp['bn_v'] + _BN_EPS) for tp in towers], axis=1)
    bn_shift = jnp.concatenate(
        [tp['bn_b'] - tp['bn_m'] * tp['bn_g'] * jax.lax.rsqrt(tp['bn_v'] + _BN_EPS)
         for tp in towers], axis=1)
    return dict(
        wsrc=_block_diag([tp['wsrc'] for tp in towers]),
        wdst=_block_diag([tp['wdst'] for tp in towers]),
        bm=cat1('bm'),
        wu_h=wu_rows(0),
        wu_agg=wu_agg,
        bu=cat1('bu'),
        bn_scale=bn_scale,
        bn_shift=bn_shift,
        wmix=layer['wmix'],
        bmix=layer['bmix'],
        residual=bool(layer['residual']),
    )


def _pick_tiles(n):
    """dst tile (sublane dim: mult of 8 or full) and src tile (lane dim of A:
    mult of 128 or full), both dividing N so blocks stay small in VMEM."""
    tm = n
    for t in (512, 256, 128, 64, 32, 16, 8):
        if n >= t and n % t == 0:
            tm = t
            break
    tk = n
    for t in (512, 256, 128):
        if n >= t and n % t == 0:
            tk = t
            break
    return tm, tk


def _layer_call(A, deg, h, fp, ln_g, ln_b, delta):
    n, d_in = h.shape
    d_out = fp['wmix'].shape[1]
    tm, tk = _pick_tiles(n)
    grid = (n // tm, n // tk)

    def full_spec(arr):  # whole (small) parameter resident in VMEM
        return pl.BlockSpec(arr.shape, lambda i, k: (0, 0))

    weights = (fp['wsrc'], fp['wdst'], fp['bm'], fp['wu_h'], fp['wu_agg'],
               fp['bu'], fp['bn_scale'], fp['bn_shift'], fp['wmix'], fp['bmix'],
               ln_g, ln_b)

    kern = functools.partial(
        pna_layer_kernel, delta=float(delta), snorm=1.0 / math.sqrt(n),
        residual=fp['residual'], use_bf16=_USE_BF16_MXU)

    return pl.pallas_call(
        kern,
        out_shape=jax.ShapeDtypeStruct((n, d_out), jnp.float32),
        grid_spec=pltpu.PrefetchScalarGridSpec(
            num_scalar_prefetch=0,
            grid=grid,
            in_specs=[
                pl.BlockSpec((tm, tk), lambda i, k: (i, k)),      # A block
                pl.BlockSpec((tm, 1), lambda i, k: (i, 0)),       # in-degree (dst rows)
                pl.BlockSpec((tk, d_in), lambda i, k: (k, 0)),    # h as src rows
                pl.BlockSpec((tm, d_in), lambda i, k: (i, 0)),    # h as dst rows
            ] + [full_spec(w) for w in weights],
            out_specs=pl.BlockSpec((tm, d_out), lambda i, k: (i, 0)),
            scratch_shapes=[pltpu.VMEM((tm, d_in), jnp.float32)
                            for _ in range(4)]),                  # sum, sum2, max, min
        compiler_params=pltpu.CompilerParams(
            dimension_semantics=("parallel", "arbitrary")),
    )(A, deg, h, h, *weights)


def pna_forward(A, deg, x, fused_layers, ln_g, ln_b, delta):
    # F.dropout in eval mode == identity.
    h = x
    for fp in fused_layers:
        h = _layer_call(A, deg, h, fp, ln_g, ln_b, delta)
    return h


# ----------------------------------------------------------------------------
# Deterministic parameter initialization (synthetic weights)
# ----------------------------------------------------------------------------
def _uniform(key, shape, bound):
    return jax.random.uniform(key, shape, jnp.float32, -bound, bound)


def _init_pna_conv(key, in_size, out_size, num_towers, residual):
    assert in_size % num_towers == 0 and out_size % num_towers == 0
    t_in, t_out = in_size // num_towers, out_size // num_towers
    towers = []
    for _ in range(num_towers):
        key, k1, k2, k3, k4, k5, k6, k7 = jax.random.split(key, 8)
        bm = 1.0 / math.sqrt(2 * t_in)     # M: Linear(2*t_in, t_in)
        bu = 1.0 / math.sqrt(13 * t_in)    # U: Linear(13*t_in, t_out)
        towers.append(dict(
            wsrc=_uniform(k1, (t_in, t_in), bm),
            wdst=_uniform(k2, (t_in, t_in), bm),
            bm=_uniform(k3, (1, t_in), bm),
            wu=_uniform(k4, (13 * t_in, t_out), bu),
            bu=_uniform(k5, (1, t_out), bu),
            bn_g=1.0 + 0.1 * jax.random.normal(k6, (1, t_out), jnp.float32),
            bn_b=0.1 * jax.random.normal(k7, (1, t_out), jnp.float32),
            bn_m=jnp.zeros((1, t_out), jnp.float32),
            bn_v=jnp.ones((1, t_out), jnp.float32),
        ))
    key, kw, kb = jax.random.split(key, 3)
    bmx = 1.0 / math.sqrt(out_size)
    layer = dict(
        towers=towers, t_in=t_in, t_out=t_out, num_towers=num_towers,
        residual=bool(residual and (in_size == out_size)),
        wmix=_uniform(kw, (out_size, out_size), bmx),
        bmix=_uniform(kb, (1, out_size), bmx),
    )
    return layer, key


def init_pna(key, in_dim, num_hidden, out_dim, num_layers,
             residual=True, encoding=False):
    assert num_layers >= 2
    last_residual = encoding and residual
    layers = []
    l0, key = _init_pna_conv(key, in_dim, num_hidden, 1, residual)
    layers.append(l0)
    for _ in range(1, num_layers - 1):
        lm, key = _init_pna_conv(key, num_hidden, num_hidden, 5, residual)
        layers.append(lm)
    ll, key = _init_pna_conv(key, num_hidden, out_dim, 1, last_residual)
    layers.append(ll)
    key, kg, kb = jax.random.split(key, 3)
    # create_norm('layernorm') -> nn.LayerNorm(num_hidden), shared across layers
    # (as in the original module: only consistent when out_dim == num_hidden).
    ln_g = 1.0 + 0.1 * jax.random.normal(kg, (1, num_hidden), jnp.float32)
    ln_b = 0.1 * jax.random.normal(kb, (1, num_hidden), jnp.float32)
    return dict(layers=layers, ln_g=ln_g, ln_b=ln_b)


# ----------------------------------------------------------------------------
# Pure-JAX reference (explicit per-edge message tensor) for correctness check
# ----------------------------------------------------------------------------
def _ref_tower(A, deg, h, tp, delta):
    n = h.shape[0]
    S = h @ tp['wsrc']
    T = h @ tp['wdst'] + tp['bm']
    msg = S[None, :, :] + T[:, None, :]            # (N_dst, N_src, t)
    mask = (A > 0.5)[:, :, None]
    d = jnp.maximum(deg, 1.0)
    mean = jnp.sum(jnp.where(mask, msg, 0.0), axis=1) / d
    mean2 = jnp.sum(jnp.where(mask, msg * msg, 0.0), axis=1) / d
    var = jnp.maximum(mean2 - mean * mean, 0.0)
    std = jnp.sqrt(var + 1e-30)
    mx = jnp.max(jnp.where(mask, msg, -_BIG), axis=1)
    mn = jnp.min(jnp.where(mask, msg, _BIG), axis=1)
    has = deg > 0.5
    agg = jnp.where(has, jnp.concatenate([mean, mx, mn, std], axis=1), 0.0)
    logd = jnp.log(d + 1.0)
    h_neigh = jnp.concatenate([agg, agg * (delta / logd), agg * (logd / delta)], axis=1)
    u = jnp.concatenate([h, h_neigh], axis=1) @ tp['wu'] + tp['bu']
    u = u / math.sqrt(n)
    return (u - tp['bn_m']) / jnp.sqrt(tp['bn_v'] + _BN_EPS) * tp['bn_g'] + tp['bn_b']


def pna_forward_ref(A, deg, x, params, delta):
    h = x
    for layer in params['layers']:
        nt, t_in = layer['num_towers'], layer['t_in']
        outs = [_ref_tower(A, deg, h[:, ti * t_in:(ti + 1) * t_in],
                           layer['towers'][ti], delta) for ti in range(nt)]
        h_cat = jnp.concatenate(outs, axis=1)
        z = h_cat @ layer['wmix'] + layer['bmix']
        z = jnp.where(z > 0, z, 0.01 * z)
        if layer['residual']:
            z = z + h
        mu = jnp.mean(z, axis=-1, keepdims=True)
        var = jnp.mean((z - mu) ** 2, axis=-1, keepdims=True)
        h = (z - mu) / jnp.sqrt(var + _LN_EPS) * params['ln_g'] + params['ln_b']
    return h


# ----------------------------------------------------------------------------
if __name__ == "__main__":
    N, IN_DIM, HIDDEN, OUT_DIM, NUM_LAYERS = 16, 16, 40, 40, 3
    DELTA = 10.0

    key = jax.random.PRNGKey(0)
    k_graph, k_x, k_par = jax.random.split(key, 3)

    # dense in-adjacency (no self loops); deg = in-degree per node
    A = (jax.random.uniform(k_graph, (N, N)) < 0.35).astype(jnp.float32)
    A = A * (1.0 - jnp.eye(N, dtype=jnp.float32))
    deg = jnp.sum(A, axis=1, keepdims=True)
    x = jax.random.normal(k_x, (N, IN_DIM), jnp.float32)

    params = init_pna(k_par, IN_DIM, HIDDEN, OUT_DIM, NUM_LAYERS)
    fused_layers = [prepare_fused_layer(l) for l in params['layers']]

    out = pna_forward(A, deg, x, fused_layers, params['ln_g'], params['ln_b'], DELTA)
    out = jax.block_until_ready(out)

    assert out.shape == (N, OUT_DIM)
    assert bool(jnp.all(jnp.isfinite(out)))

    ref = pna_forward_ref(A, deg, x, params, DELTA)
    # bf16 MXU operands on the neighbour reductions + approximate EUP
    # reciprocals introduce small (~1e-3 relative) deviations vs the pure-f32
    # reference, hence the slightly relaxed tolerance.
    np.testing.assert_allclose(np.asarray(out), np.asarray(ref),
                               rtol=2e-2, atol=2e-2)
    print("KERNEL_OK")
</pallas_src>

<mosaic_0001>
module attributes {stable_mosaic.version = 11 : i64} {
  func.func @pna_layer_kernel(%arg0: i32, %arg1: i32, %arg2: memref<16x16xf32, #tpu.memory_space<vmem>>, %arg3: memref<16x1xf32, #tpu.memory_space<vmem>>, %arg4: memref<16x16xf32, #tpu.memory_space<vmem>>, %arg5: memref<16x16xf32, #tpu.memory_space<vmem>>, %arg6: memref<16x16xf32, #tpu.memory_space<vmem>>, %arg7: memref<16x16xf32, #tpu.memory_space<vmem>>, %arg8: memref<1x16xf32, #tpu.memory_space<vmem>>, %arg9: memref<16x40xf32, #tpu.memory_space<vmem>>, %arg10: memref<192x40xf32, #tpu.memory_space<vmem>>, %arg11: memref<1x40xf32, #tpu.memory_space<vmem>>, %arg12: memref<1x40xf32, #tpu.memory_space<vmem>>, %arg13: memref<1x40xf32, #tpu.memory_space<vmem>>, %arg14: memref<40x40xf32, #tpu.memory_space<vmem>>, %arg15: memref<1x40xf32, #tpu.memory_space<vmem>>, %arg16: memref<1x40xf32, #tpu.memory_space<vmem>>, %arg17: memref<1x40xf32, #tpu.memory_space<vmem>>, %arg18: memref<16x40xf32, #tpu.memory_space<vmem>>, %arg19: memref<16x16xf32, #tpu.memory_space<vmem>>, %arg20: memref<16x16xf32, #tpu.memory_space<vmem>>, %arg21: memref<16x16xf32, #tpu.memory_space<vmem>>, %arg22: memref<16x16xf32, #tpu.memory_space<vmem>>) attributes {dimension_semantics = [#tpu.dimension_semantics<parallel>, #tpu.dimension_semantics<arbitrary>], iteration_bounds = array<i64: 1, 1>, scalar_prefetch = 0 : i64, scratch_operands = 4 : i64, tpu.core_type = #tpu.core_type<tc>, window_params = [{transform_indices = @transform_0, window_bounds = array<i64: 16, 16>}, {transform_indices = @transform_1, window_bounds = array<i64: 16, 1>}, {transform_indices = @transform_2, window_bounds = array<i64: 16, 16>}, {transform_indices = @transform_3, window_bounds = array<i64: 16, 16>}, {pipeline_mode = #tpu.pipeline_mode<synchronous>, transform_indices = @transform_4, window_bounds = array<i64: 16, 16>}, {pipeline_mode = #tpu.pipeline_mode<synchronous>, transform_indices = @transform_5, window_bounds = array<i64: 16, 16>}, {pipeline_mode = #tpu.pipeline_mode<synchronous>, transform_indices = @transform_6, window_bounds = array<i64: 1, 16>}, {pipeline_mode = #tpu.pipeline_mode<synchronous>, transform_indices = @transform_7, window_bounds = array<i64: 16, 40>}, {pipeline_mode = #tpu.pipeline_mode<synchronous>, transform_indices = @transform_8, window_bounds = array<i64: 192, 40>}, {pipeline_mode = #tpu.pipeline_mode<synchronous>, transform_indices = @transform_9, window_bounds = array<i64: 1, 40>}, {pipeline_mode = #tpu.pipeline_mode<synchronous>, transform_indices = @transform_10, window_bounds = array<i64: 1, 40>}, {pipeline_mode = #tpu.pipeline_mode<synchronous>, transform_indices = @transform_11, window_bounds = array<i64: 1, 40>}, {pipeline_mode = #tpu.pipeline_mode<synchronous>, transform_indices = @transform_12, window_bounds = array<i64: 40, 40>}, {pipeline_mode = #tpu.pipeline_mode<synchronous>, transform_indices = @transform_13, window_bounds = array<i64: 1, 40>}, {pipeline_mode = #tpu.pipeline_mode<synchronous>, transform_indices = @transform_14, window_bounds = array<i64: 1, 40>}, {pipeline_mode = #tpu.pipeline_mode<synchronous>, transform_indices = @transform_15, window_bounds = array<i64: 1, 40>}, {transform_indices = @transform_16, window_bounds = array<i64: 16, 40>}]} {
    %c0_i32 = arith.constant 0 : i32
    %0 = arith.cmpi eq, %arg1, %c0_i32 : i32
    %1 = arith.extui %0 : i1 to i32
    %c0_i32_0 = arith.constant 0 : i32
    %2 = arith.cmpi ne, %1, %c0_i32_0 : i32
    scf.if %2 {
      %cst_33 = arith.constant 0.000000e+00 : f32
      %60 = vector.broadcast %cst_33 : f32 to vector<16x16xf32>
      %c0_34 = arith.constant 0 : index
      %c0_35 = arith.constant 0 : index
      %61 = vector.load %arg19[%c0_34, %c0_35] : memref<16x16xf32, #tpu.memory_space<vmem>>, vector<16x16xf32>
      tpu.vector_store %arg19[%c0_34, %c0_35], %60 {strides = array<i32>} : memref<16x16xf32, #tpu.memory_space<vmem>>, vector<16x16xf32>,
      %cst_36 = arith.constant 0.000000e+00 : f32
      %62 = vector.broadcast %cst_36 : f32 to vector<16x16xf32>
      %c0_37 = arith.constant 0 : index
      %c0_38 = arith.constant 0 : index
      %63 = vector.load %arg20[%c0_37, %c0_38] : memref<16x16xf32, #tpu.memory_space<vmem>>, vector<16x16xf32>
      tpu.vector_store %arg20[%c0_37, %c0_38], %62 {strides = array<i32>} : memref<16x16xf32, #tpu.memory_space<vmem>>, vector<16x16xf32>,
      %cst_39 = arith.constant -3.000000e+38 : f32
      %64 = vector.broadcast %cst_39 : f32 to vector<16x16xf32>
      %c0_40 = arith.constant 0 : index
      %c0_41 = arith.constant 0 : index
      %65 = vector.load %arg21[%c0_40, %c0_41] : memref<16x16xf32, #tpu.memory_space<vmem>>, vector<16x16xf32>
      tpu.vector_store %arg21[%c0_40, %c0_41], %64 {strides = array<i32>} : memref<16x16xf32, #tpu.memory_space<vmem>>, vector<16x16xf32>,
      %cst_42 = arith.constant 3.000000e+38 : f32
      %66 = vector.broadcast %cst_42 : f32 to vector<16x16xf32>
      %c0_43 = arith.constant 0 : index
      %c0_44 = arith.constant 0 : index
      %67 = vector.load %arg22[%c0_43, %c0_44] : memref<16x16xf32, #tpu.memory_space<vmem>>, vector<16x16xf32>
      tpu.vector_store %arg22[%c0_43, %c0_44], %66 {strides = array<i32>} : memref<16x16xf32, #tpu.memory_space<vmem>>, vector<16x16xf32>,
    } else {
    }
    %c0 = arith.constant 0 : index
    %c0_1 = arith.constant 0 : index
    %3 = vector.load %arg2[%c0, %c0_1] : memref<16x16xf32, #tpu.memory_space<vmem>>, vector<16x16xf32>
    %c0_2 = arith.constant 0 : index
    %c0_3 = arith.constant 0 : index
    %4 = vector.load %arg4[%c0_2, %c0_3] : memref<16x16xf32, #tpu.memory_space<vmem>>, vector<16x16xf32>
    %c0_4 = arith.constant 0 : index
    %c0_5 = arith.constant 0 : index
    %5 = vector.load %arg6[%c0_4, %c0_5] : memref<16x16xf32, #tpu.memory_space<vmem>>, vector<16x16xf32>
    %cst = arith.constant dense<0.000000e+00> : vector<16x16xf32>
    %6 = tpu.matmul %4, %5, %cst {dimension_numbers = #tpu.dot_dimension_numbers<[1], [0], [0], [1], [0, 0, 1, 1], [], []>} : vector<16x16xf32>, vector<16x16xf32>, vector<16x16xf32> -> vector<16x16xf32>
    %7 = arith.truncf %3 : vector<16x16xf32> to vector<16x16xbf16>
    %8 = arith.truncf %6 : vector<16x16xf32> to vector<16x16xbf16>
    %9 = arith.mulf %6, %6 : vector<16x16xf32>
    %10 = arith.truncf %9 : vector<16x16xf32> to vector<16x16xbf16>
    %c0_6 = arith.constant 0 : index
    %c0_7 = arith.constant 0 : index
    %11 = vector.load %arg19[%c0_6, %c0_7] : memref<16x16xf32, #tpu.memory_space<vmem>>, vector<16x16xf32>
    %cst_8 = arith.constant dense<0.000000e+00> : vector<16x16xf32>
    %12 = tpu.matmul %7, %8, %cst_8 {dimension_numbers = #tpu.dot_dimension_numbers<[1], [0], [0], [1], [0, 0, 1, 1], [], []>} : vector<16x16xbf16>, vector<16x16xbf16>, vector<16x16xf32> -> vector<16x16xf32>
    %13 = arith.addf %11, %12 : vector<16x16xf32>
    %c0_9 = arith.constant 0 : index
    %c0_10 = arith.constant 0 : index
    %14 = vector.load %arg19[%c0_9, %c0_10] : memref<16x16xf32, #tpu.memory_space<vmem>>, vector<16x16xf32>
    tpu.vector_store %arg19[%c0_9, %c0_10], %13 {strides = array<i32>} : memref<16x16xf32, #tpu.memory_space<vmem>>, vector<16x16xf32>,
    %c0_11 = arith.constant 0 : index
    %c0_12 = arith.constant 0 : index
    %15 = vector.load %arg20[%c0_11, %c0_12] : memref<16x16xf32, #tpu.memory_space<vmem>>, vector<16x16xf32>
    %cst_13 = arith.constant dense<0.000000e+00> : vector<16x16xf32>
    %16 = tpu.matmul %7, %10, %cst_13 {dimension_numbers = #tpu.dot_dimension_numbers<[1], [0], [0], [1], [0, 0, 1, 1], [], []>} : vector<16x16xbf16>, vector<16x16xbf16>, vector<16x16xf32> -> vector<16x16xf32>
    %17 = arith.addf %15, %16 : vector<16x16xf32>
    %c0_14 = arith.constant 0 : index
    %c0_15 = arith.constant 0 : index
    %18 = vector.load %arg20[%c0_14, %c0_15] : memref<16x16xf32, #tpu.memory_space<vmem>>, vector<16x16xf32>
    tpu.vector_store %arg20[%c0_14, %c0_15], %17 {strides = array<i32>} : memref<16x16xf32, #tpu.memory_space<vmem>>, vector<16x16xf32>,
    %cst_16 = arith.constant 1.000000e+00 : f32
    %19 = vector.broadcast %cst_16 : f32 to vector<16x16xf32>
    %20 = arith.minimumf %3, %19 : vector<16x16xf32>
    %cst_17 = arith.constant 1.000000e+00 : f32
    %21 = vector.broadcast %cst_17 : f32 to vector<16x16xf32>
    %22 = arith.subf %20, %21 : vector<16x16xf32>
    %cst_18 = arith.constant 3.000000e+38 : f32
    %23 = vector.broadcast %cst_18 : f32 to vector<16x16xf32>
    %24 = arith.mulf %22, %23 : vector<16x16xf32>
    %c0_19 = arith.constant 0 : index
    %c0_20 = arith.constant 0 : index
    %25 = vector.load %arg21[%c0_19, %c0_20] : memref<16x16xf32, #tpu.memory_space<vmem>>, vector<16x16xf32>
    %c0_21 = arith.constant 0 : index
    %c0_22 = arith.constant 0 : index
    %26 = vector.load %arg22[%c0_21, %c0_22] : memref<16x16xf32, #tpu.memory_space<vmem>>, vector<16x16xf32>
    %27 = vector.extract_strided_slice %24 {offsets = [0, 0], sizes = [16, 8], strides = [1, 1]} : vector<16x16xf32> to vector<16x8xf32>
    %28 = vector.shape_cast %27 : vector<16x8xf32> to vector<16x8x1xf32>
    %29 = vector.extract_strided_slice %6 {offsets = [0, 0], sizes = [8, 16], strides = [1, 1]} : vector<16x16xf32> to vector<8x16xf32>
    %30 = vector.shape_cast %29 : vector<8x16xf32> to vector<1x8x16xf32>
    %31 = vector.broadcast %30 : vector<1x8x16xf32> to vector<16x8x16xf32>
    %32 = vector.broadcast %28 : vector<16x8x1xf32> to vector<16x8x16xf32>
    %33 = arith.addf %31, %32 : vector<16x8x16xf32>
    %cst_23 = arith.constant dense<0xFF800000> : vector<16x16xf32>
    %34 = vector.multi_reduction <maximumf>, %33, %cst_23 [1] : vector<16x8x16xf32> to vector<16x16xf32>
    %35 = arith.maximumf %25, %34 : vector<16x16xf32>
    %36 = vector.broadcast %30 : vector<1x8x16xf32> to vector<16x8x16xf32>
    %37 = vector.broadcast %28 : vector<16x8x1xf32> to vector<16x8x16xf32>
    %38 = arith.subf %36, %37 : vector<16x8x16xf32>
    %cst_24 = arith.constant dense<0x7F800000> : vector<16x16xf32>
    %39 = vector.multi_reduction <minimumf>, %38, %cst_24 [1] : vector<16x8x16xf32> to vector<16x16xf32>
    %40 = arith.minimumf %26, %39 : vector<16x16xf32>
    %41 = vector.extract_strided_slice %24 {offsets = [0, 8], sizes = [16, 8], strides = [1, 1]} : vector<16x16xf32> to vector<16x8xf32>
    %42 = vector.shape_cast %41 : vector<16x8xf32> to vector<16x8x1xf32>
    %43 = vector.extract_strided_slice %6 {offsets = [8, 0], sizes = [8, 16], strides = [1, 1]} : vector<16x16xf32> to vector<8x16xf32>
    %44 = vector.shape_cast %43 : vector<8x16xf32> to vector<1x8x16xf32>
    %45 = vector.broadcast %44 : vector<1x8x16xf32> to vector<16x8x16xf32>
    %46 = vector.broadcast %42 : vector<16x8x1xf32> to vector<16x8x16xf32>
    %47 = arith.addf %45, %46 : vector<16x8x16xf32>
    %cst_25 = arith.constant dense<0xFF800000> : vector<16x16xf32>
    %48 = vector.multi_reduction <maximumf>, %47, %cst_25 [1] : vector<16x8x16xf32> to vector<16x16xf32>
    %49 = arith.maximumf %35, %48 : vector<16x16xf32>
    %50 = vector.broadcast %44 : vector<1x8x16xf32> to vector<16x8x16xf32>
    %51 = vector.broadcast %42 : vector<16x8x1xf32> to vector<16x8x16xf32>
    %52 = arith.subf %50, %51 : vector<16x8x16xf32>
    %cst_26 = arith.constant dense<0x7F800000> : vector<16x16xf32>
    %53 = vector.multi_reduction <minimumf>, %52, %cst_26 [1] : vector<16x8x16xf32> to vector<16x16xf32>
    %54 = arith.minimumf %40, %53 : vector<16x16xf32>
    %c0_27 = arith.constant 0 : index
    %c0_28 = arith.constant 0 : index
    %55 = vector.load %arg21[%c0_27, %c0_28] : memref<16x16xf32, #tpu.memory_space<vmem>>, vector<16x16xf32>
    tpu.vector_store %arg21[%c0_27, %c0_28], %49 {strides = array<i32>} : memref<16x16xf32, #tpu.memory_space<vmem>>, vector<16x16xf32>,
    %c0_29 = arith.constant 0 : index
    %c0_30 = arith.constant 0 : index
    %56 = vector.load %arg22[%c0_29, %c0_30] : memref<16x16xf32, #tpu.memory_space<vmem>>, vector<16x16xf32>
    tpu.vector_store %arg22[%c0_29, %c0_30], %54 {strides = array<i32>} : memref<16x16xf32, #tpu.memory_space<vmem>>, vector<16x16xf32>,
    %c0_i32_31 = arith.constant 0 : i32
    %57 = arith.cmpi eq, %arg1, %c0_i32_31 : i32
    %58 = arith.extui %57 : i1 to i32
    %c0_i32_32 = arith.constant 0 : i32
    %59 = arith.cmpi ne, %58, %c0_i32_32 : i32
    scf.if %59 {
      %c0_33 = arith.constant 0 : index
      %c0_34 = arith.constant 0 : index
      %60 = vector.load %arg5[%c0_33, %c0_34] : memref<16x16xf32, #tpu.memory_space<vmem>>, vector<16x16xf32>
      %c0_35 = arith.constant 0 : index
      %c0_36 = arith.constant 0 : index
      %61 = vector.load %arg3[%c0_35, %c0_36] : memref<16x1xf32, #tpu.memory_space<vmem>>, vector<16x1xf32>
      %c0_37 = arith.constant 0 : index
      %c0_38 = arith.constant 0 : index
      %62 = vector.load %arg7[%c0_37, %c0_38] : memref<16x16xf32, #tpu.memory_space<vmem>>, vector<16x16xf32>
      %cst_39 = arith.constant dense<0.000000e+00> : vector<16x16xf32>
      %63 = tpu.matmul %60, %62, %cst_39 {dimension_numbers = #tpu.dot_dimension_numbers<[1], [0], [0], [1], [0, 0, 1, 1], [], []>} : vector<16x16xf32>, vector<16x16xf32>, vector<16x16xf32> -> vector<16x16xf32>
      %c0_40 = arith.constant 0 : index
      %c0_41 = arith.constant 0 : index
      %64 = vector.load %arg8[%c0_40, %c0_41] : memref<1x16xf32, #tpu.memory_space<vmem>>, vector<1x16xf32>
      %65 = vector.broadcast %64 : vector<1x16xf32> to vector<16x16xf32>
      %66 = arith.addf %63, %65 : vector<16x16xf32>
      %cst_42 = arith.constant 1.000000e+00 : f32
      %67 = vector.broadcast %cst_42 : f32 to vector<16x1xf32>
      %68 = arith.maximumf %61, %67 : vector<16x1xf32>
      %69 = tpu.reciprocal %68 {approx = true} : vector<16x1xf32> -> vector<16x1xf32>
      %c0_43 = arith.constant 0 : index
      %c0_44 = arith.constant 0 : index
      %70 = vector.load %arg19[%c0_43, %c0_44] : memref<16x16xf32, #tpu.memory_space<vmem>>, vector<16x16xf32>
      %71 = vector.broadcast %69 : vector<16x1xf32> to vector<16x16xf32>
      %72 = arith.mulf %70, %71 : vector<16x16xf32>
      %c0_45 = arith.constant 0 : index
      %c0_46 = arith.constant 0 : index
      %73 = vector.load %arg20[%c0_45, %c0_46] : memref<16x16xf32, #tpu.memory_space<vmem>>, vector<16x16xf32>
      %74 = vector.broadcast %69 : vector<16x1xf32> to vector<16x16xf32>
      %75 = arith.mulf %73, %74 : vector<16x16xf32>
      %cst_47 = arith.constant 5.000000e-01 : f32
      %76 = vector.broadcast %cst_47 : f32 to vector<16x1xf32>
      %77 = arith.cmpf ogt, %61, %76 : vector<16x1xf32>
      %c0_48 = arith.constant 0 : index
      %c0_49 = arith.constant 0 : index
      %78 = vector.load %arg21[%c0_48, %c0_49] : memref<16x16xf32, #tpu.memory_space<vmem>>, vector<16x16xf32>
      %cst_50 = arith.constant 0.000000e+00 : f32
      %79 = vector.shape_cast %77 : vector<16x1xi1> to vector<16x1xi1>
      %80 = vector.broadcast %79 : vector<16x1xi1> to vector<16x16xi1>
      %81 = vector.broadcast %cst_50 : f32 to vector<16x16xf32>
      %82 = arith.select %80, %78, %81 : vector<16x16xi1>, vector<16x16xf32>
      %c0_51 = arith.constant 0 : index
      %c0_52 = arith.constant 0 : index
      %83 = vector.load %arg22[%c0_51, %c0_52] : memref<16x16xf32, #tpu.memory_space<vmem>>, vector<16x16xf32>
      %cst_53 = arith.constant 0.000000e+00 : f32
      %84 = vector.shape_cast %77 : vector<16x1xi1> to vector<16x1xi1>
      %85 = vector.broadcast %84 : vector<16x1xi1> to vector<16x16xi1>
      %86 = vector.broadcast %cst_53 : f32 to vector<16x16xf32>
      %87 = arith.select %85, %83, %86 : vector<16x16xi1>, vector<16x16xf32>
      %88 = arith.addf %72, %66 : vector<16x16xf32>
      %cst_54 = arith.constant 0.000000e+00 : f32
      %89 = vector.shape_cast %77 : vector<16x1xi1> to vector<16x1xi1>
      %90 = vector.broadcast %89 : vector<16x1xi1> to vector<16x16xi1>
      %91 = vector.broadcast %cst_54 : f32 to vector<16x16xf32>
      %92 = arith.select %90, %88, %91 : vector<16x16xi1>, vector<16x16xf32>
      %93 = arith.addf %82, %66 : vector<16x16xf32>
      %cst_55 = arith.constant 0.000000e+00 : f32
      %94 = vector.shape_cast %77 : vector<16x1xi1> to vector<16x1xi1>
      %95 = vector.broadcast %94 : vector<16x1xi1> to vector<16x16xi1>
      %96 = vector.broadcast %cst_55 : f32 to vector<16x16xf32>
      %97 = arith.select %95, %93, %96 : vector<16x16xi1>, vector<16x16xf32>
      %98 = arith.addf %87, %66 : vector<16x16xf32>
      %cst_56 = arith.constant 0.000000e+00 : f32
      %99 = vector.shape_cast %77 : vector<16x1xi1> to vector<16x1xi1>
      %100 = vector.broadcast %99 : vector<16x1xi1> to vector<16x16xi1>
      %101 = vector.broadcast %cst_56 : f32 to vector<16x16xf32>
      %102 = arith.select %100, %98, %101 : vector<16x16xi1>, vector<16x16xf32>
      %103 = arith.mulf %72, %72 : vector<16x16xf32>
      %104 = arith.subf %75, %103 : vector<16x16xf32>
      %cst_57 = arith.constant 0.000000e+00 : f32
      %105 = vector.broadcast %cst_57 : f32 to vector<16x16xf32>
      %106 = arith.maximumf %104, %105 : vector<16x16xf32>
      %cst_58 = arith.constant 1.000000e-30 : f32
      %107 = vector.broadcast %cst_58 : f32 to vector<16x16xf32>
      %108 = arith.addf %106, %107 : vector<16x16xf32>
      %109 = math.sqrt %108 : vector<16x16xf32>
      %cst_59 = arith.constant 0.000000e+00 : f32
      %110 = vector.shape_cast %77 : vector<16x1xi1> to vector<16x1xi1>
      %111 = vector.broadcast %110 : vector<16x1xi1> to vector<16x16xi1>
      %112 = vector.broadcast %cst_59 : f32 to vector<16x16xf32>
      %113 = arith.select %111, %109, %112 : vector<16x16xi1>, vector<16x16xf32>
      %cst_60 = arith.constant 1.000000e+00 : f32
      %114 = vector.broadcast %cst_60 : f32 to vector<16x1xf32>
      %115 = arith.addf %68, %114 : vector<16x1xf32>
      %116 = math.log %115 : vector<16x1xf32>
      %117 = tpu.reciprocal %116 {approx = true} : vector<16x1xf32> -> vector<16x1xf32>
      %cst_61 = arith.constant 1.000000e+01 : f32
      %118 = vector.broadcast %cst_61 : f32 to vector<16x1xf32>
      %119 = arith.mulf %118, %117 : vector<16x1xf32>
      %cst_62 = arith.constant 1.000000e-01 : f32
      %120 = vector.broadcast %cst_62 : f32 to vector<16x1xf32>
      %121 = arith.mulf %116, %120 : vector<16x1xf32>
      %c0_63 = arith.constant 0 : index
      %c0_64 = arith.constant 0 : index
      %122 = vector.load %arg9[%c0_63, %c0_64] : memref<16x40xf32, #tpu.memory_space<vmem>>, vector<16x40xf32>
      %cst_65 = arith.constant dense<0.000000e+00> : vector<16x40xf32>
      %123 = tpu.matmul %60, %122, %cst_65 {dimension_numbers = #tpu.dot_dimension_numbers<[1], [0], [0], [1], [0, 0, 1, 1], [], []>} : vector<16x16xf32>, vector<16x40xf32>, vector<16x40xf32> -> vector<16x40xf32>
      %c0_66 = arith.constant 0 : index
      %c0_67 = arith.constant 0 : index
      %124 = vector.load %arg11[%c0_66, %c0_67] : memref<1x40xf32, #tpu.memory_space<vmem>>, vector<1x40xf32>
      %125 = vector.broadcast %124 : vector<1x40xf32> to vector<16x40xf32>
      %126 = arith.addf %123, %125 : vector<16x40xf32>
      %c0_68 = arith.constant 0 : index
      %c0_69 = arith.constant 0 : index
      %127 = vector.load %arg10[%c0_68, %c0_69] : memref<192x40xf32, #tpu.memory_space<vmem>>, vector<16x40xf32>
      %cst_70 = arith.constant dense<0.000000e+00> : vector<16x40xf32>
      %128 = tpu.matmul %92, %127, %cst_70 {dimension_numbers = #tpu.dot_dimension_numbers<[1], [0], [0], [1], [0, 0, 1, 1], [], []>} : vector<16x16xf32>, vector<16x40xf32>, vector<16x40xf32> -> vector<16x40xf32>
      %129 = arith.addf %126, %128 : vector<16x40xf32>
      %c16 = arith.constant 16 : index
      %c0_71 = arith.constant 0 : index
      %130 = vector.load %arg10[%c16, %c0_71] : memref<192x40xf32, #tpu.memory_space<vmem>>, vector<16x40xf32>
      %cst_72 = arith.constant dense<0.000000e+00> : vector<16x40xf32>
      %131 = tpu.matmul %97, %130, %cst_72 {dimension_numbers = #tpu.dot_dimension_numbers<[1], [0], [0], [1], [0, 0, 1, 1], [], []>} : vector<16x16xf32>, vector<16x40xf32>, vector<16x40xf32> -> vector<16x40xf32>
      %132 = arith.addf %129, %131 : vector<16x40xf32>
      %c32 = arith.constant 32 : index
      %c0_73 = arith.constant 0 : index
      %133 = vector.load %arg10[%c32, %c0_73] : memref<192x40xf32, #tpu.memory_space<vmem>>, vector<16x40xf32>
      %cst_74 = arith.constant dense<0.000000e+00> : vector<16x40xf32>
      %134 = tpu.matmul %102, %133, %cst_74 {dimension_numbers = #tpu.dot_dimension_numbers<[1], [0], [0], [1], [0, 0, 1, 1], [], []>} : vector<16x16xf32>, vector<16x40xf32>, vector<16x40xf32> -> vector<16x40xf32>
      %135 = arith.addf %132, %134 : vector<16x40xf32>
      %c48 = arith.constant 48 : index
      %c0_75 = arith.constant 0 : index
      %136 = vector.load %arg10[%c48, %c0_75] : memref<192x40xf32, #tpu.memory_space<vmem>>, vector<16x40xf32>
      %cst_76 = arith.constant dense<0.000000e+00> : vector<16x40xf32>
      %137 = tpu.matmul %113, %136, %cst_76 {dimension_numbers = #tpu.dot_dimension_numbers<[1], [0], [0], [1], [0, 0, 1, 1], [], []>} : vector<16x16xf32>, vector<16x40xf32>, vector<16x40xf32> -> vector<16x40xf32>
      %138 = arith.addf %135, %137 : vector<16x40xf32>
      %139 = vector.broadcast %119 : vector<16x1xf32> to vector<16x16xf32>
      %140 = arith.mulf %92, %139 : vector<16x16xf32>
      %c64 = arith.constant 64 : index
      %c0_77 = arith.constant 0 : index
      %141 = vector.load %arg10[%c64, %c0_77] : memref<192x40xf32, #tpu.memory_space<vmem>>, vector<16x40xf32>
      %cst_78 = arith.constant dense<0.000000e+00> : vector<16x40xf32>
      %142 = tpu.matmul %140, %141, %cst_78 {dimension_numbers = #tpu.dot_dimension_numbers<[1], [0], [0], [1], [0, 0, 1, 1], [], []>} : vector<16x16xf32>, vector<16x40xf32>, vector<16x40xf32> -> vector<16x40xf32>
      %143 = arith.addf %138, %142 : vector<16x40xf32>
      %144 = vector.broadcast %119 : vector<16x1xf32> to vector<16x16xf32>
      %145 = arith.mulf %97, %144 : vector<16x16xf32>
      %c80 = arith.constant 80 : index
      %c0_79 = arith.constant 0 : index
      %146 = vector.load %arg10[%c80, %c0_79] : memref<192x40xf32, #tpu.memory_space<vmem>>, vector<16x40xf32>
      %cst_80 = arith.constant dense<0.000000e+00> : vector<16x40xf32>
      %147 = tpu.matmul %145, %146, %cst_80 {dimension_numbers = #tpu.dot_dimension_numbers<[1], [0], [0], [1], [0, 0, 1, 1], [], []>} : vector<16x16xf32>, vector<16x40xf32>, vector<16x40xf32> -> vector<16x40xf32>
      %148 = arith.addf %143, %147 : vector<16x40xf32>
      %149 = vector.broadcast %119 : vector<16x1xf32> to vector<16x16xf32>
      %150 = arith.mulf %102, %149 : vector<16x16xf32>
      %c96 = arith.constant 96 : index
      %c0_81 = arith.constant 0 : index
      %151 = vector.load %arg10[%c96, %c0_81] : memref<192x40xf32, #tpu.memory_space<vmem>>, vector<16x40xf32>
      %cst_82 = arith.constant dense<0.000000e+00> : vector<16x40xf32>
      %152 = tpu.matmul %150, %151, %cst_82 {dimension_numbers = #tpu.dot_dimension_numbers<[1], [0], [0], [1], [0, 0, 1, 1], [], []>} : vector<16x16xf32>, vector<16x40xf32>, vector<16x40xf32> -> vector<16x40xf32>
      %153 = arith.addf %148, %152 : vector<16x40xf32>
      %154 = vector.broadcast %119 : vector<16x1xf32> to vector<16x16xf32>
      %155 = arith.mulf %113, %154 : vector<16x16xf32>
      %c112 = arith.constant 112 : index
      %c0_83 = arith.constant 0 : index
      %156 = vector.load %arg10[%c112, %c0_83] : memref<192x40xf32, #tpu.memory_space<vmem>>, vector<16x40xf32>
      %cst_84 = arith.constant dense<0.000000e+00> : vector<16x40xf32>
      %157 = tpu.matmul %155, %156, %cst_84 {dimension_numbers = #tpu.dot_dimension_numbers<[1], [0], [0], [1], [0, 0, 1, 1], [], []>} : vector<16x16xf32>, vector<16x40xf32>, vector<16x40xf32> -> vector<16x40xf32>
      %158 = arith.addf %153, %157 : vector<16x40xf32>
      %159 = vector.broadcast %121 : vector<16x1xf32> to vector<16x16xf32>
      %160 = arith.mulf %92, %159 : vector<16x16xf32>
      %c128 = arith.constant 128 : index
      %c0_85 = arith.constant 0 : index
      %161 = vector.load %arg10[%c128, %c0_85] : memref<192x40xf32, #tpu.memory_space<vmem>>, vector<16x40xf32>
      %cst_86 = arith.constant dense<0.000000e+00> : vector<16x40xf32>
      %162 = tpu.matmul %160, %161, %cst_86 {dimension_numbers = #tpu.dot_dimension_numbers<[1], [0], [0], [1], [0, 0, 1, 1], [], []>} : vector<16x16xf32>, vector<16x40xf32>, vector<16x40xf32> -> vector<16x40xf32>
      %163 = arith.addf %158, %162 : vector<16x40xf32>
      %164 = vector.broadcast %121 : vector<16x1xf32> to vector<16x16xf32>
      %165 = arith.mulf %97, %164 : vector<16x16xf32>
      %c144 = arith.constant 144 : index
      %c0_87 = arith.constant 0 : index
      %166 = vector.load %arg10[%c144, %c0_87] : memref<192x40xf32, #tpu.memory_space<vmem>>, vector<16x40xf32>
      %cst_88 = arith.constant dense<0.000000e+00> : vector<16x40xf32>
      %167 = tpu.matmul %165, %166, %cst_88 {dimension_numbers = #tpu.dot_dimension_numbers<[1], [0], [0], [1], [0, 0, 1, 1], [], []>} : vector<16x16xf32>, vector<16x40xf32>, vector<16x40xf32> -> vector<16x40xf32>
      %168 = arith.addf %163, %167 : vector<16x40xf32>
      %169 = vector.broadcast %121 : vector<16x1xf32> to vector<16x16xf32>
      %170 = arith.mulf %102, %169 : vector<16x16xf32>
      %c160 = arith.constant 160 : index
      %c0_89 = arith.constant 0 : index
      %171 = vector.load %arg10[%c160, %c0_89] : memref<192x40xf32, #tpu.memory_space<vmem>>, vector<16x40xf32>
      %cst_90 = arith.constant dense<0.000000e+00> : vector<16x40xf32>
      %172 = tpu.matmul %170, %171, %cst_90 {dimension_numbers = #tpu.dot_dimension_numbers<[1], [0], [0], [1], [0, 0, 1, 1], [], []>} : vector<16x16xf32>, vector<16x40xf32>, vector<16x40xf32> -> vector<16x40xf32>
      %173 = arith.addf %168, %172 : vector<16x40xf32>
      %174 = vector.broadcast %121 : vector<16x1xf32> to vector<16x16xf32>
      %175 = arith.mulf %113, %174 : vector<16x16xf32>
      %c176 = arith.constant 176 : index
      %c0_91 = arith.constant 0 : index
      %176 = vector.load %arg10[%c176, %c0_91] : memref<192x40xf32, #tpu.memory_space<vmem>>, vector<16x40xf32>
      %cst_92 = arith.constant dense<0.000000e+00> : vector<16x40xf32>
      %177 = tpu.matmul %175, %176, %cst_92 {dimension_numbers = #tpu.dot_dimension_numbers<[1], [0], [0], [1], [0, 0, 1, 1], [], []>} : vector<16x16xf32>, vector<16x40xf32>, vector<16x40xf32> -> vector<16x40xf32>
      %178 = arith.addf %173, %177 : vector<16x40xf32>
      %cst_93 = arith.constant 2.500000e-01 : f32
      %179 = vector.broadcast %cst_93 : f32 to vector<16x40xf32>
      %180 = arith.mulf %178, %179 : vector<16x40xf32>
      %c0_94 = arith.constant 0 : index
      %c0_95 = arith.constant 0 : index
      %181 = vector.load %arg12[%c0_94, %c0_95] : memref<1x40xf32, #tpu.memory_space<vmem>>, vector<1x40xf32>
      %182 = vector.broadcast %181 : vector<1x40xf32> to vector<16x40xf32>
      %183 = arith.mulf %180, %182 : vector<16x40xf32>
      %c0_96 = arith.constant 0 : index
      %c0_97 = arith.constant 0 : index
      %184 = vector.load %arg13[%c0_96, %c0_97] : memref<1x40xf32, #tpu.memory_space<vmem>>, vector<1x40xf32>
      %185 = vector.broadcast %184 : vector<1x40xf32> to vector<16x40xf32>
      %186 = arith.addf %183, %185 : vector<16x40xf32>
      %c0_98 = arith.constant 0 : index
      %c0_99 = arith.constant 0 : index
      %187 = vector.load %arg14[%c0_98, %c0_99] : memref<40x40xf32, #tpu.memory_space<vmem>>, vector<40x40xf32>
      %cst_100 = arith.constant dense<0.000000e+00> : vector<16x40xf32>
      %188 = tpu.matmul %186, %187, %cst_100 {dimension_numbers = #tpu.dot_dimension_numbers<[1], [0], [0], [1], [0, 0, 1, 1], [], []>} : vector<16x40xf32>, vector<40x40xf32>, vector<16x40xf32> -> vector<16x40xf32>
      %c0_101 = arith.constant 0 : index
      %c0_102 = arith.constant 0 : index
      %189 = vector.load %arg15[%c0_101, %c0_102] : memref<1x40xf32, #tpu.memory_space<vmem>>, vector<1x40xf32>
      %190 = vector.broadcast %189 : vector<1x40xf32> to vector<16x40xf32>
      %191 = arith.addf %188, %190 : vector<16x40xf32>
      %cst_103 = arith.constant 0.00999999977 : f32
      %192 = vector.broadcast %cst_103 : f32 to vector<16x40xf32>
      %193 = arith.mulf %192, %191 : vector<16x40xf32>
      %194 = arith.maximumf %191, %193 : vector<16x40xf32>
      %cst_104 = arith.constant dense<0.000000e+00> : vector<16xf32>
      %195 = vector.multi_reduction <add>, %194, %cst_104 [1] : vector<16x40xf32> to vector<16xf32>
      %196 = vector.shape_cast %195 : vector<16xf32> to vector<16x1xf32>
      %cst_105 = arith.constant 4.000000e+01 : f32
      %197 = vector.broadcast %cst_105 : f32 to vector<16x1xf32>
      %198 = arith.divf %196, %197 : vector<16x1xf32>
      %199 = vector.broadcast %198 : vector<16x1xf32> to vector<16x40xf32>
      %200 = arith.subf %194, %199 : vector<16x40xf32>
      %201 = vector.broadcast %198 : vector<16x1xf32> to vector<16x40xf32>
      %202 = arith.subf %194, %201 : vector<16x40xf32>
      %203 = arith.mulf %200, %202 : vector<16x40xf32>
      %cst_106 = arith.constant dense<0.000000e+00> : vector<16xf32>
      %204 = vector.multi_reduction <add>, %203, %cst_106 [1] : vector<16x40xf32> to vector<16xf32>
      %205 = vector.shape_cast %204 : vector<16xf32> to vector<16x1xf32>
      %cst_107 = arith.constant 4.000000e+01 : f32
      %206 = vector.broadcast %cst_107 : f32 to vector<16x1xf32>
      %207 = arith.divf %205, %206 : vector<16x1xf32>
      %208 = vector.broadcast %198 : vector<16x1xf32> to vector<16x40xf32>
      %209 = arith.subf %194, %208 : vector<16x40xf32>
      %cst_108 = arith.constant 9.99999974E-6 : f32
      %210 = vector.broadcast %cst_108 : f32 to vector<16x1xf32>
      %211 = arith.addf %207, %210 : vector<16x1xf32>
      %212 = math.rsqrt %211 : vector<16x1xf32>
      %213 = vector.broadcast %212 : vector<16x1xf32> to vector<16x40xf32>
      %214 = arith.mulf %209, %213 : vector<16x40xf32>
      %c0_109 = arith.constant 0 : index
      %c0_110 = arith.constant 0 : index
      %215 = vector.load %arg16[%c0_109, %c0_110] : memref<1x40xf32, #tpu.memory_space<vmem>>, vector<1x40xf32>
      %216 = vector.broadcast %215 : vector<1x40xf32> to vector<16x40xf32>
      %217 = arith.mulf %214, %216 : vector<16x40xf32>
      %c0_111 = arith.constant 0 : index
      %c0_112 = arith.constant 0 : index
      %218 = vector.load %arg17[%c0_111, %c0_112] : memref<1x40xf32, #tpu.memory_space<vmem>>, vector<1x40xf32>
      %219 = vector.broadcast %218 : vector<1x40xf32> to vector<16x40xf32>
      %220 = arith.addf %217, %219 : vector<16x40xf32>
      %c0_113 = arith.constant 0 : index
      %c0_114 = arith.constant 0 : index
      %221 = vector.load %arg18[%c0_113, %c0_114] : memref<16x40xf32, #tpu.memory_space<vmem>>, vector<16x40xf32>
      tpu.vector_store %arg18[%c0_113, %c0_114], %220 {strides = array<i32>} : memref<16x40xf32, #tpu.memory_space<vmem>>, vector<16x40xf32>,
    } else {
    }
    return
  }
  func.func @transform_0(%arg0: i32, %arg1: i32) -> (i32, i32) {
    %c0_i32 = arith.constant 0 : i32
    return %arg0, %arg1 : i32, i32
  }
  func.func @transform_1(%arg0: i32, %arg1: i32) -> (i32, i32) {
    %c0_i32 = arith.constant 0 : i32
    %c0_i32_0 = arith.constant 0 : i32
    return %arg0, %c0_i32 : i32, i32
  }
  func.func @transform_2(%arg0: i32, %arg1: i32) -> (i32, i32) {
    %c0_i32 = arith.constant 0 : i32
    %c0_i32_0 = arith.constant 0 : i32
    return %arg1, %c0_i32 : i32, i32
  }
  func.func @transform_3(%arg0: i32, %arg1: i32) -> (i32, i32) {
    %c0_i32 = arith.constant 0 : i32
    %c0_i32_0 = arith.constant 0 : i32
    return %arg0, %c0_i32 : i32, i32
  }
  func.func @transform_4(%arg0: i32, %arg1: i32) -> (i32, i32) {
    %c0_i32 = arith.constant 0 : i32
    %c0_i32_0 = arith.constant 0 : i32
    %c0_i32_1 = arith.constant 0 : i32
    return %c0_i32, %c0_i32_0 : i32, i32
  }
  func.func @transform_5(%arg0: i32, %arg1: i32) -> (i32, i32) {
    %c0_i32 = arith.constant 0 : i32
    %c0_i32_0 = arith.constant 0 : i32
    %c0_i32_1 = arith.constant 0 : i32
    return %c0_i32, %c0_i32_0 : i32, i32
  }
  func.func @transform_6(%arg0: i32, %arg1: i32) -> (i32, i32) {
    %c0_i32 = arith.constant 0 : i32
    %c0_i32_0 = arith.constant 0 : i32
    %c0_i32_1 = arith.constant 0 : i32
    return %c0_i32, %c0_i32_0 : i32, i32
  }
  func.func @transform_7(%arg0: i32, %arg1: i32) -> (i32, i32) {
    %c0_i32 = arith.constant 0 : i32
    %c0_i32_0 = arith.constant 0 : i32
    %c0_i32_1 = arith.constant 0 : i32
    return %c0_i32, %c0_i32_0 : i32, i32
  }
  func.func @transform_8(%arg0: i32, %arg1: i32) -> (i32, i32) {
    %c0_i32 = arith.constant 0 : i32
    %c0_i32_0 = arith.constant 0 : i32
    %c0_i32_1 = arith.constant 0 : i32
    return %c0_i32, %c0_i32_0 : i32, i32
  }
  func.func @transform_9(%arg0: i32, %arg1: i32) -> (i32, i32) {
    %c0_i32 = arith.constant 0 : i32
    %c0_i32_0 = arith.constant 0 : i32
    %c0_i32_1 = arith.constant 0 : i32
    return %c0_i32, %c0_i32_0 : i32, i32
  }
  func.func @transform_10(%arg0: i32, %arg1: i32) -> (i32, i32) {
    %c0_i32 = arith.constant 0 : i32
    %c0_i32_0 = arith.constant 0 : i32
    %c0_i32_1 = arith.constant 0 : i32
    return %c0_i32, %c0_i32_0 : i32, i32
  }
  func.func @transform_11(%arg0: i32, %arg1: i32) -> (i32, i32) {
    %c0_i32 = arith.constant 0 : i32
    %c0_i32_0 = arith.constant 0 : i32
    %c0_i32_1 = arith.constant 0 : i32
    return %c0_i32, %c0_i32_0 : i32, i32
  }
  func.func @transform_12(%arg0: i32, %arg1: i32) -> (i32, i32) {
    %c0_i32 = arith.constant 0 : i32
    %c0_i32_0 = arith.constant 0 : i32
    %c0_i32_1 = arith.constant 0 : i32
    return %c0_i32, %c0_i32_0 : i32, i32
  }
  func.func @transform_13(%arg0: i32, %arg1: i32) -> (i32, i32) {
    %c0_i32 = arith.constant 0 : i32
    %c0_i32_0 = arith.constant 0 : i32
    %c0_i32_1 = arith.constant 0 : i32
    return %c0_i32, %c0_i32_0 : i32, i32
  }
  func.func @transform_14(%arg0: i32, %arg1: i32) -> (i32, i32) {
    %c0_i32 = arith.constant 0 : i32
    %c0_i32_0 = arith.constant 0 : i32
    %c0_i32_1 = arith.constant 0 : i32
    return %c0_i32, %c0_i32_0 : i32, i32
  }
  func.func @transform_15(%arg0: i32, %arg1: i32) -> (i32, i32) {
    %c0_i32 = arith.constant 0 : i32
    %c0_i32_0 = arith.constant 0 : i32
    %c0_i32_1 = arith.constant 0 : i32
    return %c0_i32, %c0_i32_0 : i32, i32
  }
  func.func @transform_16(%arg0: i32, %arg1: i32) -> (i32, i32) {
    %c0_i32 = arith.constant 0 : i32
    %c0_i32_0 = arith.constant 0 : i32
    return %arg0, %c0_i32 : i32, i32
  }
}

</mosaic_0001>

<llo_original>
// kernel: tpu_custom_call.1
$region0: #{tpu_custom_call.1}
  #allocation0 [shape = 'u32[]', space=smem, size = 0x4, offset = 0x4, fixed_abs, tag = 'smem constant byte address 0x4 - core index']
  #allocation1 [shape = 'u32[144,128]{1,0:T(1,128)}', space=vmem, size = 0x12000, scoped, tag = 'internal scratch']
  #allocation2 [shape = 'f32[16,16]{1,0:T(8,128)}', space=vmem, size = 0x2000, scoped, tag = 'scratch operand']
  #allocation3 [shape = 'f32[16,16]{1,0:T(8,128)}', space=vmem, size = 0x2000, scoped, tag = 'scratch operand']
  #allocation4 [shape = 'f32[16,16]{1,0:T(8,128)}', space=vmem, size = 0x2000, scoped, tag = 'scratch operand']
  #allocation5 [shape = 'f32[16,16]{1,0:T(8,128)}', space=vmem, size = 0x2000, scoped, tag = 'scratch operand']
  %s0 = inlined_call_operand.vmem [shape: f32[16,16], index: 0, kind: input, shape index: {}]
  %s1 = inlined_call_operand.vmem [shape: f32[16,1], index: 1, kind: input, shape index: {}]
  %s2 = inlined_call_operand.vmem [shape: f32[16,16], index: 2, kind: input, shape index: {}]
  %s3 = inlined_call_operand.vmem [shape: f32[16,16], index: 3, kind: input, shape index: {}]
  %s4 = inlined_call_operand.vmem [shape: f32[16,16], index: 4, kind: input, shape index: {}]
  %s5 = inlined_call_operand.vmem [shape: f32[16,16], index: 5, kind: input, shape index: {}]
  %s6 = inlined_call_operand.vmem [shape: f32[1,16], index: 6, kind: input, shape index: {}]
  %s7 = inlined_call_operand.vmem [shape: f32[16,40], index: 7, kind: input, shape index: {}]
  %s8 = inlined_call_operand.vmem [shape: f32[192,40], index: 8, kind: input, shape index: {}]
  %s9 = inlined_call_operand.vmem [shape: f32[1,40], index: 9, kind: input, shape index: {}]
  %s10 = inlined_call_operand.vmem [shape: f32[1,40], index: 10, kind: input, shape index: {}]
  %s11 = inlined_call_operand.vmem [shape: f32[1,40], index: 11, kind: input, shape index: {}]
  %s12 = inlined_call_operand.vmem [shape: f32[40,40], index: 12, kind: input, shape index: {}]
  %s13 = inlined_call_operand.vmem [shape: f32[1,40], index: 13, kind: input, shape index: {}]
  %s14 = inlined_call_operand.vmem [shape: f32[1,40], index: 14, kind: input, shape index: {}]
  %s15 = inlined_call_operand.vmem [shape: f32[1,40], index: 15, kind: input, shape index: {}]
  %s16 = inlined_call_operand.hbm [shape: f32[16,40], index: 16, kind: output, shape index: {}]
  %s17 = sld [smem:[#allocation0]]
  $region82: #{tpu_custom_call.1} parent=0
    _
  %s19 = ssub.s32 1, %s17
  %s20 = scalar_select 0, %s19, %s17
  $region1: #{tpu_custom_call.1} parent=0
    #allocation6 [shape = 'u8[8192]{0}', space=vmem, size = 0x2000, scoped, tag = 'output window, operand 0, single buffered']
    #allocation7 [shape = 's32[1]{0}', space=sflag, size = 0x4, scoped, tag = 'scoped memory for tpu_custom_call.1']
    %21 = vsyncpa [#allocation7], 0
    // Predicated region
    $region2: #{tpu_custom_call.1} parent=1 // pred_check
      _
    $region3: #{tpu_custom_call.1} parent=1 // pred_check_branch
      %23 = sbr.rel (0) target = $region5
    $region4: #{tpu_custom_call.1} parent=1 // pred_region
      _
    $region5: #{tpu_custom_call.1} parent=1 // pred_fallthru
      _
    // Predicated region
    $region6: #{tpu_custom_call.1} parent=1 // pred_check
      _
    $region7: #{tpu_custom_call.1} parent=1 // pred_check_branch
      %25 = sbr.rel (0) target = $region9
    $region8: #{tpu_custom_call.1} parent=1 // pred_region
      _
    $region9: #{tpu_custom_call.1} parent=1 // pred_fallthru
      _
    // Predicated region
    $region10: #{tpu_custom_call.1} parent=1 // pred_check
      _
    $region11: #{tpu_custom_call.1} parent=1 // pred_check_branch
      %27 = sbr.rel (0) target = $region13
    $region12: #{tpu_custom_call.1} parent=1 // pred_region
      _
    $region13: #{tpu_custom_call.1} parent=1 // pred_fallthru
      _
    // Predicated region
    $region14: #{tpu_custom_call.1} parent=1 // pred_check
      _
    $region15: #{tpu_custom_call.1} parent=1 // pred_check_branch
      %29 = sbr.rel (0) target = $region17
    $region16: #{tpu_custom_call.1} parent=1 // pred_region
      _
    $region17: #{tpu_custom_call.1} parent=1 // pred_fallthru
      _
    // Predicated region
    $region18: #{tpu_custom_call.1} parent=1 // pred_check
      _
    $region19: #{tpu_custom_call.1} parent=1 // pred_check_branch
      %31 = sbr.rel (0) target = $region21
    $region20: #{tpu_custom_call.1} parent=1 // pred_region
      _
    $region21: #{tpu_custom_call.1} parent=1 // pred_fallthru
      _
    // Predicated region
    $region22: #{tpu_custom_call.1} parent=1 // pred_check
      _
    $region23: #{tpu_custom_call.1} parent=1 // pred_check_branch
      %33 = sbr.rel (0) target = $region25
    $region24: #{tpu_custom_call.1} parent=1 // pred_region
      _
    $region25: #{tpu_custom_call.1} parent=1 // pred_fallthru
      _
    // Predicated region
    $region26: #{tpu_custom_call.1} parent=1 // pred_check
      _
    $region27: #{tpu_custom_call.1} parent=1 // pred_check_branch
      %35 = sbr.rel (0) target = $region29
    $region28: #{tpu_custom_call.1} parent=1 // pred_region
      _
    $region29: #{tpu_custom_call.1} parent=1 // pred_fallthru
      _
    // Predicated region
    $region30: #{tpu_custom_call.1} parent=1 // pred_check
      _
    $region31: #{tpu_custom_call.1} parent=1 // pred_check_branch
      %37 = sbr.rel (0) target = $region33
    $region32: #{tpu_custom_call.1} parent=1 // pred_region
      _
    $region33: #{tpu_custom_call.1} parent=1 // pred_fallthru
      _
    // Predicated region
    $region34: #{tpu_custom_call.1} parent=1 // pred_check
      _
    $region35: #{tpu_custom_call.1} parent=1 // pred_check_branch
      %39 = sbr.rel (0) target = $region37
    $region36: #{tpu_custom_call.1} parent=1 // pred_region
      _
    $region37: #{tpu_custom_call.1} parent=1 // pred_fallthru
      _
    // Predicated region
    $region38: #{tpu_custom_call.1} parent=1 // pred_check
      _
    $region39: #{tpu_custom_call.1} parent=1 // pred_check_branch
      %41 = sbr.rel (0) target = $region41
    $region40: #{tpu_custom_call.1} parent=1 // pred_region
      _
    $region41: #{tpu_custom_call.1} parent=1 // pred_fallthru
      _
    // Predicated region
    $region42: #{tpu_custom_call.1} parent=1 // pred_check
      _
    $region43: #{tpu_custom_call.1} parent=1 // pred_check_branch
      %43 = sbr.rel (0) target = $region45
    $region44: #{tpu_custom_call.1} parent=1 // pred_region
      _
    $region45: #{tpu_custom_call.1} parent=1 // pred_fallthru
      _
    // Predicated region
    $region46: #{tpu_custom_call.1} parent=1 // pred_check
      _
    $region47: #{tpu_custom_call.1} parent=1 // pred_check_branch
      %45 = sbr.rel (0) target = $region49
    $region48: #{tpu_custom_call.1} parent=1 // pred_region
      _
    $region49: #{tpu_custom_call.1} parent=1 // pred_fallthru
      _
    // Predicated region
    $region50: #{tpu_custom_call.1} parent=1 // pred_check
      _
    $region51: #{tpu_custom_call.1} parent=1 // pred_check_branch
      %47 = sbr.rel (0) target = $region53
    $region52: #{tpu_custom_call.1} parent=1 // pred_region
      _
    $region53: #{tpu_custom_call.1} parent=1 // pred_fallthru
      _
    // Predicated region
    $region54: #{tpu_custom_call.1} parent=1 // pred_check
      _
    $region55: #{tpu_custom_call.1} parent=1 // pred_check_branch
      %49 = sbr.rel (0) target = $region57
    $region56: #{tpu_custom_call.1} parent=1 // pred_region
      _
    $region57: #{tpu_custom_call.1} parent=1 // pred_fallthru
      _
    // Predicated region
    $region58: #{tpu_custom_call.1} parent=1 // pred_check
      _
    $region59: #{tpu_custom_call.1} parent=1 // pred_check_branch
      %51 = sbr.rel (0) target = $region61
    $region60: #{tpu_custom_call.1} parent=1 // pred_region
      _
    $region61: #{tpu_custom_call.1} parent=1 // pred_fallthru
      _
    // Predicated region
    $region62: #{tpu_custom_call.1} parent=1 // pred_check
      _
    $region63: #{tpu_custom_call.1} parent=1 // pred_check_branch
      %53 = sbr.rel (0) target = $region65
    $region64: #{tpu_custom_call.1} parent=1 // pred_region
      _
    $region65: #{tpu_custom_call.1} parent=1 // pred_fallthru
      _
    %p55 = scmp.eq.s32.totalorder 0, 0
    // Predicated region
    $region66: #{tpu_custom_call.1} parent=1 // pred_check
      %p56 = pneg %p55
    $region67: #{tpu_custom_call.1} parent=1 // pred_check_branch
      %58 = sbr.rel (%p56) target = $region69
    $region68: #{tpu_custom_call.1} parent=1 // pred_region
      %vm59 = vcmask 130048
      %60 = vst.msk [vmem:[#allocation2] sm:$0xff] %vm59, 0.0
      %61 = vst.msk [vmem:[#allocation2 + $0x8] sm:$0xff] %vm59, 0.0
      %62 = vst.msk [vmem:[#allocation3] sm:$0xff] %vm59, 0.0
      %63 = vst.msk [vmem:[#allocation3 + $0x8] sm:$0xff] %vm59, 0.0
      %64 = vst.msk [vmem:[#allocation4] sm:$0xff] %vm59, -3e+38
      %65 = vst.msk [vmem:[#allocation4 + $0x8] sm:$0xff] %vm59, -3e+38
      %66 = vst.msk [vmem:[#allocation5] sm:$0xff] %vm59, 3e+38
      %67 = vst.msk [vmem:[#allocation5 + $0x8] sm:$0xff] %vm59, 3e+38
    $region69: #{tpu_custom_call.1} parent=1 // pred_fallthru
      _
    %v68 = vld [vmem:[%s0] sm:$0xff]
    %v69 = vld [vmem:[%s0 + $0x8] sm:$0xff]
    %v70 = vld [vmem:[%s2] sm:$0xff]
    %v71 = vld [vmem:[%s2 + $0x8] sm:$0xff]
    %v72 = vld [vmem:[%s4] sm:$0xff]
    %v73 = vld [vmem:[%s4 + $0x8] sm:$0xff]
    %vm74 = vcmask 130048
    %v76 = vsel %vm74, %v70, 0
    %v79 = vsel %vm74, %v71, 0
    %81 = vmatprep.subr.mxu0 0.0
    %82 = vmatpush1.msra.mxu0 %v72
    %83 = vmatprep.subr.mxu0 0.0
    %84 = vmatpush1.msra.mxu0 %v73
    %85 = vmatprep.subr.mxu0 0.0
    %86 = vmatpush1.msra.mxu0 0.0
    %87 = vmatprep.subr.mxu0 0.0
    %88 = vmatpush1.msra.mxu0 0.0
    %89 = vmatprep.subr.mxu0 0.0
    %90 = vmatpush1.msra.mxu0 0.0
    %91 = vmatprep.subr.mxu0 0.0
    %92 = vmatpush1.msra.mxu0 0.0
    %93 = vmatprep.subr.mxu0 0.0
    %94 = vmatpush1.msra.mxu0 0.0
    %95 = vmatprep.subr.mxu0 0.0
    %96 = vmatpush1.msra.mxu0 0.0
    %97 = vmatprep.subr.mxu0 0.0
    %98 = vmatpush1.msra.mxu0 0.0
    %99 = vmatprep.subr.mxu0 0.0
    %100 = vmatpush1.msra.mxu0 0.0
    %101 = vmatprep.subr.mxu0 0.0
    %102 = vmatpush1.msra.mxu0 0.0
    %103 = vmatprep.subr.mxu0 0.0
    %104 = vmatpush1.msra.mxu0 0.0
    %105 = vmatprep.subr.mxu0 0.0
    %106 = vmatpush1.msra.mxu0 0.0
    %107 = vmatprep.subr.mxu0 0.0
    %108 = vmatpush1.msra.mxu0 0.0
    %109 = vmatprep.subr.mxu0 0.0
    %110 = vmatpush1.msra.mxu0 0.0
    %111 = vmatprep.subr.mxu0 0.0
    %112 = vmatpush1.msra.mxu0 0.0
    %113 = vmatprep.subr.mxu0 0.0
    %114 = vmatpush1.msra.mxu0 0.0
    %115 = vmatprep.subr.mxu0 0.0
    %116 = vmatpush1.msra.mxu0 0.0
    %117 = vmatprep.subr.mxu0 0.0
    %118 = vmatpush1.msra.mxu0 0.0
    %119 = vmatprep.subr.mxu0 0.0
    %120 = vmatpush1.msra.mxu0 0.0
    %121 = vmatprep.subr.mxu0 0.0
    %122 = vmatpush1.msra.mxu0 0.0
    %123 = vmatprep.subr.mxu0 0.0
    %124 = vmatpush1.msra.mxu0 0.0
    %125 = vmatprep.subr.mxu0 0.0
    %126 = vmatpush1.msra.mxu0 0.0
    %127 = vmatprep.subr.mxu0 0.0
    %128 = vmatpush1.msra.mxu0 0.0
    %129 = vmatprep.subr.mxu0 0.0
    %130 = vmatpush1.msra.mxu0 0.0
    %131 = vmatprep.subr.mxu0 0.0
    %132 = vmatpush1.msra.mxu0 0.0
    %133 = vmatprep.subr.mxu0 0.0
    %134 = vmatpush1.msra.mxu0 0.0
    %135 = vmatprep.subr.mxu0 0.0
    %136 = vmatpush1.msra.mxu0 0.0
    %137 = vmatprep.subr.mxu0 0.0
    %138 = vmatpush1.msra.mxu0 0.0
    %139 = vmatprep.subr.mxu0 0.0
    %140 = vmatpush1.msra.mxu0 0.0
    %141 = vmatprep.subr.mxu0 0.0
    %142 = vmatpush1.msra.mxu0 0.0
    %143 = vmatprep.subr.mxu0 0.0
    %144 = vmatpush1.msra.mxu0 0.0
    %145 = vmatprep.mubr.f32.mxu0 0.0
    %146 = vmatmul.mubr.f32.gmra.mrb[0].mxu0 %v76
    %v147 = vpop.f32.mrb[0].mxu0
    %v148 = vadd.f32 0.0, %v147
    %v149 = vpop.f32.mrb[0].mxu0
    %150 = vmatprep.mubr.f32.mxu0 0.0
    %151 = vmatmul.mubr.f32.gmra.mrb[0].mxu0 %v79
    %v152 = vpop.f32.mrb[0].mxu0
    %v153 = vadd.f32 0.0, %v152
    %v154 = vpop.f32.mrb[0].mxu0
    %155 = vdwg.mxu0
    %v156 = vpack.c.bf16 %v69, %v68
    %v157 = vpack.c.bf16 %v153, %v148
    %v158 = vmul.f32 %v148, %v148
    %v159 = vmul.f32 %v153, %v153
    %v160 = vpack.c.bf16 %v159, %v158
    %v161 = vld [vmem:[#allocation2] sm:$0xff]
    %v162 = vld [vmem:[#allocation2 + $0x8] sm:$0xff]
    %v164 = vsel %vm74, %v156, 0
    %166 = vmatprep.subr.bf16.mxu0 0
    %167 = vmatpush1.bf16.msra.mxu0 %v157
    %168 = vmatprep.subr.bf16.mxu0 0
    %169 = vmatpush1.bf16.msra.mxu0 0
    %170 = vmatprep.subr.bf16.mxu0 0
    %171 = vmatpush1.bf16.msra.mxu0 0
    %172 = vmatprep.subr.bf16.mxu0 0
    %173 = vmatpush1.bf16.msra.mxu0 0
    %174 = vmatprep.subr.bf16.mxu0 0
    %175 = vmatpush1.bf16.msra.mxu0 0
    %176 = vmatprep.subr.bf16.mxu0 0
    %177 = vmatpush1.bf16.msra.mxu0 0
    %178 = vmatprep.subr.bf16.mxu0 0
    %179 = vmatpush1.bf16.msra.mxu0 0
    %180 = vmatprep.subr.bf16.mxu0 0
    %181 = vmatpush1.bf16.msra.mxu0 0
    %182 = vmatprep.subr.bf16.mxu0 0
    %183 = vmatpush1.bf16.msra.mxu0 0
    %184 = vmatprep.subr.bf16.mxu0 0
    %185 = vmatpush1.bf16.msra.mxu0 0
    %186 = vmatprep.subr.bf16.mxu0 0
    %187 = vmatpush1.bf16.msra.mxu0 0
    %188 = vmatprep.subr.bf16.mxu0 0
    %189 = vmatpush1.bf16.msra.mxu0 0
    %190 = vmatprep.subr.bf16.mxu0 0
    %191 = vmatpush1.bf16.msra.mxu0 0
    %192 = vmatprep.subr.bf16.mxu0 0
    %193 = vmatpush1.bf16.msra.mxu0 0
    %194 = vmatprep.subr.bf16.mxu0 0
    %195 = vmatpush1.bf16.msra.mxu0 0
    %196 = vmatprep.subr.bf16.mxu0 0
    %197 = vmatpush1.bf16.msra.mxu0 0
    %198 = vmatprep.mubr.bf16.mxu0 0
    %199 = vmatmul.mubr.bf16.gmra.mrb[0].mxu0 %v164
    %v200 = vpop.f32.mrb[0].mxu0
    %v201 = vadd.f32 0.0, %v200
    %v202 = vpop.f32.mrb[0].mxu0
    %v203 = vpop.f32.mrb[0].mxu0
    %v204 = vadd.f32 0.0, %v203
    %v205 = vpop.f32.mrb[0].mxu0
    %206 = vdwg.mxu0
    %v207 = vadd.f32 %v161, %v201
    %v208 = vadd.f32 %v162, %v204
    %209 = vst.msk [vmem:[#allocation2] sm:$0xff] %vm74, %v207
    %210 = vst.msk [vmem:[#allocation2 + $0x8] sm:$0xff] %vm74, %v208
    %v211 = vld [vmem:[#allocation3] sm:$0xff]
    %v212 = vld [vmem:[#allocation3 + $0x8] sm:$0xff]
    %213 = vmatprep.subr.bf16.mxu0 0
    %214 = vmatpush1.bf16.msra.mxu0 %v160
    %215 = vmatprep.subr.bf16.mxu0 0
    %216 = vmatpush1.bf16.msra.mxu0 0
    %217 = vmatprep.subr.bf16.mxu0 0
    %218 = vmatpush1.bf16.msra.mxu0 0
    %219 = vmatprep.subr.bf16.mxu0 0
    %220 = vmatpush1.bf16.msra.mxu0 0
    %221 = vmatprep.subr.bf16.mxu0 0
    %222 = vmatpush1.bf16.msra.mxu0 0
    %223 = vmatprep.subr.bf16.mxu0 0
    %224 = vmatpush1.bf16.msra.mxu0 0
    %225 = vmatprep.subr.bf16.mxu0 0
    %226 = vmatpush1.bf16.msra.mxu0 0
    %227 = vmatprep.subr.bf16.mxu0 0
    %228 = vmatpush1.bf16.msra.mxu0 0
    %229 = vmatprep.subr.bf16.mxu0 0
    %230 = vmatpush1.bf16.msra.mxu0 0
    %231 = vmatprep.subr.bf16.mxu0 0
    %232 = vmatpush1.bf16.msra.mxu0 0
    %233 = vmatprep.subr.bf16.mxu0 0
    %234 = vmatpush1.bf16.msra.mxu0 0
    %235 = vmatprep.subr.bf16.mxu0 0
    %236 = vmatpush1.bf16.msra.mxu0 0
    %237 = vmatprep.subr.bf16.mxu0 0
    %238 = vmatpush1.bf16.msra.mxu0 0
    %239 = vmatprep.subr.bf16.mxu0 0
    %240 = vmatpush1.bf16.msra.mxu0 0
    %241 = vmatprep.subr.bf16.mxu0 0
    %242 = vmatpush1.bf16.msra.mxu0 0
    %243 = vmatprep.subr.bf16.mxu0 0
    %244 = vmatpush1.bf16.msra.mxu0 0
    %245 = vmatprep.mubr.bf16.mxu0 0
    %246 = vmatmul.mubr.bf16.gmra.mrb[0].mxu0 %v164
    %v247 = vpop.f32.mrb[0].mxu0
    %v248 = vadd.f32 0.0, %v247
    %v249 = vpop.f32.mrb[0].mxu0
    %v250 = vpop.f32.mrb[0].mxu0
    %v251 = vadd.f32 0.0, %v250
    %v252 = vpop.f32.mrb[0].mxu0
    %253 = vdwg.mxu0
    %v254 = vadd.f32 %v211, %v248
    %v255 = vadd.f32 %v212, %v251
    %256 = vst.msk [vmem:[#allocation3] sm:$0xff] %vm74, %v254
    %257 = vst.msk [vmem:[#allocation3 + $0x8] sm:$0xff] %vm74, %v255
    %v258 = vmin.f32 %v68, 1.0
    %v259 = vmin.f32 %v69, 1.0
    %v260 = vsub.f32 %v258, 1.0
    %v261 = vsub.f32 %v259, 1.0
    %v262 = vmul.f32 %v260, 3e+38
    %v263 = vmul.f32 %v261, 3e+38
    %v264 = vld [vmem:[#allocation4] sm:$0xff]
    %v265 = vld [vmem:[#allocation4 + $0x8] sm:$0xff]
    %v266 = vld [vmem:[#allocation5] sm:$0xff]
    %v267 = vld [vmem:[#allocation5 + $0x8] sm:$0xff]
    %v268 = vlaneseq
    %v269 = vshrl.u32 %v268, 7
    %v270 = vsub.s32 0, %v269
    %v271 = vrot.slane %v262, %v270
    %273 = vbcast.lane.b32.xlu0 %v271, 256
    %v274 = vpop.permute.xlu0 %273
    %v275 = vlaneseq
    %v276 = vshrl.u32 %v275, 7
    %v277 = vsub.s32 1, %v276
    %v278 = vrot.slane %v262, %v277
    %280 = vbcast.lane.b32.xlu0 %v278, 256
    %v281 = vpop.permute.xlu0 %280
    %v282 = vlaneseq
    %v283 = vshrl.u32 %v282, 7
    %v284 = vsub.s32 2, %v283
    %v285 = vrot.slane %v262, %v284
    %287 = vbcast.lane.b32.xlu0 %v285, 256
    %v288 = vpop.permute.xlu0 %287
    %v289 = vlaneseq
    %v290 = vshrl.u32 %v289, 7
    %v291 = vsub.s32 3, %v290
    %v292 = vrot.slane %v262, %v291
    %294 = vbcast.lane.b32.xlu0 %v292, 256
    %v295 = vpop.permute.xlu0 %294
    %v296 = vlaneseq
    %v297 = vshrl.u32 %v296, 7
    %v298 = vsub.s32 4, %v297
    %v299 = vrot.slane %v262, %v298
    %301 = vbcast.lane.b32.xlu0 %v299, 256
    %v302 = vpop.permute.xlu0 %301
    %v303 = vlaneseq
    %v304 = vshrl.u32 %v303, 7
    %v305 = vsub.s32 5, %v304
    %v306 = vrot.slane %v262, %v305
    %308 = vbcast.lane.b32.xlu0 %v306, 256
    %v309 = vpop.permute.xlu0 %308
    %v310 = vlaneseq
    %v311 = vshrl.u32 %v310, 7
    %v312 = vsub.s32 6, %v311
    %v313 = vrot.slane %v262, %v312
    %315 = vbcast.lane.b32.xlu0 %v313, 256
    %v316 = vpop.permute.xlu0 %315
    %v317 = vlaneseq
    %v318 = vshrl.u32 %v317, 7
    %v319 = vsub.s32 7, %v318
    %v320 = vrot.slane %v262, %v319
    %322 = vbcast.lane.b32.xlu0 %v320, 256
    %v323 = vpop.permute.xlu0 %322
    %v324 = vlaneseq
    %v325 = vshrl.u32 %v324, 7
    %v326 = vsub.s32 0, %v325
    %v327 = vrot.slane %v263, %v326
    %329 = vbcast.lane.b32.xlu0 %v327, 256
    %v330 = vpop.permute.xlu0 %329
    %v331 = vlaneseq
    %v332 = vshrl.u32 %v331, 7
    %v333 = vsub.s32 1, %v332
    %v334 = vrot.slane %v263, %v333
    %336 = vbcast.lane.b32.xlu0 %v334, 256
    %v337 = vpop.permute.xlu0 %336
    %v338 = vlaneseq
    %v339 = vshrl.u32 %v338, 7
    %v340 = vsub.s32 2, %v339
    %v341 = vrot.slane %v263, %v340
    %343 = vbcast.lane.b32.xlu0 %v341, 256
    %v344 = vpop.permute.xlu0 %343
    %v345 = vlaneseq
    %v346 = vshrl.u32 %v345, 7
    %v347 = vsub.s32 3, %v346
    %v348 = vrot.slane %v263, %v347
    %350 = vbcast.lane.b32.xlu0 %v348, 256
    %v351 = vpop.permute.xlu0 %350
    %v352 = vlaneseq
    %v353 = vshrl.u32 %v352, 7
    %v354 = vsub.s32 4, %v353
    %v355 = vrot.slane %v263, %v354
    %357 = vbcast.lane.b32.xlu0 %v355, 256
    %v358 = vpop.permute.xlu0 %357
    %v359 = vlaneseq
    %v360 = vshrl.u32 %v359, 7
    %v361 = vsub.s32 5, %v360
    %v362 = vrot.slane %v263, %v361
    %364 = vbcast.lane.b32.xlu0 %v362, 256
    %v365 = vpop.permute.xlu0 %364
    %v366 = vlaneseq
    %v367 = vshrl.u32 %v366, 7
    %v368 = vsub.s32 6, %v367
    %v369 = vrot.slane %v263, %v368
    %371 = vbcast.lane.b32.xlu0 %v369, 256
    %v372 = vpop.permute.xlu0 %371
    %v373 = vlaneseq
    %v374 = vshrl.u32 %v373, 7
    %v375 = vsub.s32 7, %v374
    %v376 = vrot.slane %v263, %v375
    %378 = vbcast.lane.b32.xlu0 %v376, 256
    %v379 = vpop.permute.xlu0 %378
    %v380 = vadd.f32 %v148, %v274
    %v381 = vadd.f32 %v148, %v281
    %v382 = vadd.f32 %v148, %v288
    %v383 = vadd.f32 %v148, %v295
    %v384 = vadd.f32 %v148, %v302
    %v385 = vadd.f32 %v148, %v309
    %v386 = vadd.f32 %v148, %v316
    %v387 = vadd.f32 %v148, %v323
    %v388 = vadd.f32 %v148, %v330
    %v389 = vadd.f32 %v148, %v337
    %v390 = vadd.f32 %v148, %v344
    %v391 = vadd.f32 %v148, %v351
    %v392 = vadd.f32 %v148, %v358
    %v393 = vadd.f32 %v148, %v365
    %v394 = vadd.f32 %v148, %v372
    %v395 = vadd.f32 %v148, %v379
    %v396 = vsel %vm74, %v380, -inf
    %v397 = vrot.slane %v396, 4
    %v398 = vmax.f32 %v396, %v397
    %v399 = vrot.slane %v398, 2
    %v400 = vmax.f32 %v398, %v399
    %v401 = vrot.slane %v400, 1
    %v402 = vmax.f32 %v400, %v401
    %v403 = vsel %vm74, %v381, -inf
    %v404 = vrot.slane %v403, 4
    %v405 = vmax.f32 %v403, %v404
    %v406 = vrot.slane %v405, 2
    %v407 = vmax.f32 %v405, %v406
    %v408 = vrot.slane %v407, 1
    %v409 = vmax.f32 %v407, %v408
    %v410 = vsel %vm74, %v382, -inf
    %v411 = vrot.slane %v410, 4
    %v412 = vmax.f32 %v410, %v411
    %v413 = vrot.slane %v412, 2
    %v414 = vmax.f32 %v412, %v413
    %v415 = vrot.slane %v414, 1
    %v416 = vmax.f32 %v414, %v415
    %v417 = vsel %vm74, %v383, -inf
    %v418 = vrot.slane %v417, 4
    %v419 = vmax.f32 %v417, %v418
    %v420 = vrot.slane %v419, 2
    %v421 = vmax.f32 %v419, %v420
    %v422 = vrot.slane %v421, 1
    %v423 = vmax.f32 %v421, %v422
    %v424 = vsel %vm74, %v384, -inf
    %v425 = vrot.slane %v424, 4
    %v426 = vmax.f32 %v424, %v425
    %v427 = vrot.slane %v426, 2
    %v428 = vmax.f32 %v426, %v427
    %v429 = vrot.slane %v428, 1
    %v430 = vmax.f32 %v428, %v429
    %v431 = vsel %vm74, %v385, -inf
    %v432 = vrot.slane %v431, 4
    %v433 = vmax.f32 %v431, %v432
    %v434 = vrot.slane %v433, 2
    %v435 = vmax.f32 %v433, %v434
    %v436 = vrot.slane %v435, 1
    %v437 = vmax.f32 %v435, %v436
    %v438 = vsel %vm74, %v386, -inf
    %v439 = vrot.slane %v438, 4
    %v440 = vmax.f32 %v438, %v439
    %v441 = vrot.slane %v440, 2
    %v442 = vmax.f32 %v440, %v441
    %v443 = vrot.slane %v442, 1
    %v444 = vmax.f32 %v442, %v443
    %v445 = vsel %vm74, %v387, -inf
    %v446 = vrot.slane %v445, 4
    %v447 = vmax.f32 %v445, %v446
    %v448 = vrot.slane %v447, 2
    %v449 = vmax.f32 %v447, %v448
    %v450 = vrot.slane %v449, 1
    %v451 = vmax.f32 %v449, %v450
    %v452 = vsel %vm74, %v388, -inf
    %v453 = vrot.slane %v452, 4
    %v454 = vmax.f32 %v452, %v453
    %v455 = vrot.slane %v454, 2
    %v456 = vmax.f32 %v454, %v455
    %v457 = vrot.slane %v456, 1
    %v458 = vmax.f32 %v456, %v457
    %v459 = vsel %vm74, %v389, -inf
    %v460 = vrot.slane %v459, 4
    %v461 = vmax.f32 %v459, %v460
    %v462 = vrot.slane %v461, 2
    %v463 = vmax.f32 %v461, %v462
    %v464 = vrot.slane %v463, 1
    %v465 = vmax.f32 %v463, %v464
    %v466 = vsel %vm74, %v390, -inf
    %v467 = vrot.slane %v466, 4
    %v468 = vmax.f32 %v466, %v467
    %v469 = vrot.slane %v468, 2
    %v470 = vmax.f32 %v468, %v469
    %v471 = vrot.slane %v470, 1
    %v472 = vmax.f32 %v470, %v471
    %v473 = vsel %vm74, %v391, -inf
    %v474 = vrot.slane %v473, 4
    %v475 = vmax.f32 %v473, %v474
    %v476 = vrot.slane %v475, 2
    %v477 = vmax.f32 %v475, %v476
    %v478 = vrot.slane %v477, 1
    %v479 = vmax.f32 %v477, %v478
    %v480 = vsel %vm74, %v392, -inf
    %v481 = vrot.slane %v480, 4
    %v482 = vmax.f32 %v480, %v481
    %v483 = vrot.slane %v482, 2
    %v484 = vmax.f32 %v482, %v483
    %v485 = vrot.slane %v484, 1
    %v486 = vmax.f32 %v484, %v485
    %v487 = vsel %vm74, %v393, -inf
    %v488 = vrot.slane %v487, 4
    %v489 = vmax.f32 %v487, %v488
    %v490 = vrot.slane %v489, 2
    %v491 = vmax.f32 %v489, %v490
    %v492 = vrot.slane %v491, 1
    %v493 = vmax.f32 %v491, %v492
    %v494 = vsel %vm74, %v394, -inf
    %v495 = vrot.slane %v494, 4
    %v496 = vmax.f32 %v494, %v495
    %v497 = vrot.slane %v496, 2
    %v498 = vmax.f32 %v496, %v497
    %v499 = vrot.slane %v498, 1
    %v500 = vmax.f32 %v498, %v499
    %v501 = vsel %vm74, %v395, -inf
    %v502 = vrot.slane %v501, 4
    %v503 = vmax.f32 %v501, %v502
    %v504 = vrot.slane %v503, 2
    %v505 = vmax.f32 %v503, %v504
    %v506 = vrot.slane %v505, 1
    %v507 = vmax.f32 %v505, %v506
    %vm524 = vcmask 1041409
    %v525 = vsel %vm524, %v409, %v402
    %vm526 = vcmask 1042434
    %v527 = vsel %vm526, %v416, %v525
    %vm528 = vcmask 1043459
    %v529 = vsel %vm528, %v423, %v527
    %vm530 = vcmask 1044484
    %v531 = vsel %vm530, %v430, %v529
    %vm532 = vcmask 1045509
    %v533 = vsel %vm532, %v437, %v531
    %vm534 = vcmask 1046534
    %v535 = vsel %vm534, %v444, %v533
    %vm536 = vcmask 1047559
    %v537 = vsel %vm536, %v451, %v535
    %v538 = vsel %vm524, %v465, %v458
    %v539 = vsel %vm526, %v472, %v538
    %v540 = vsel %vm528, %v479, %v539
    %v541 = vsel %vm530, %v486, %v540
    %v542 = vsel %vm532, %v493, %v541
    %v543 = vsel %vm534, %v500, %v542
    %v544 = vsel %vm536, %v507, %v543
    %v547 = vmax.f32 %v264, %v537
    %v548 = vmax.f32 %v265, %v544
    %v549 = vsub.f32 %v148, %v274
    %v550 = vsub.f32 %v148, %v281
    %v551 = vsub.f32 %v148, %v288
    %v552 = vsub.f32 %v148, %v295
    %v553 = vsub.f32 %v148, %v302
    %v554 = vsub.f32 %v148, %v309
    %v555 = vsub.f32 %v148, %v316
    %v556 = vsub.f32 %v148, %v323
    %v557 = vsub.f32 %v148, %v330
    %v558 = vsub.f32 %v148, %v337
    %v559 = vsub.f32 %v148, %v344
    %v560 = vsub.f32 %v148, %v351
    %v561 = vsub.f32 %v148, %v358
    %v562 = vsub.f32 %v148, %v365
    %v563 = vsub.f32 %v148, %v372
    %v564 = vsub.f32 %v148, %v379
    %v565 = vsel %vm74, %v549, inf
    %v566 = vrot.slane %v565, 4
    %v567 = vmin.f32 %v565, %v566
    %v568 = vrot.slane %v567, 2
    %v569 = vmin.f32 %v567, %v568
    %v570 = vrot.slane %v569, 1
    %v571 = vmin.f32 %v569, %v570
    %v572 = vsel %vm74, %v550, inf
    %v573 = vrot.slane %v572, 4
    %v574 = vmin.f32 %v572, %v573
    %v575 = vrot.slane %v574, 2
    %v576 = vmin.f32 %v574, %v575
    %v577 = vrot.slane %v576, 1
    %v578 = vmin.f32 %v576, %v577
    %v579 = vsel %vm74, %v551, inf
    %v580 = vrot.slane %v579, 4
    %v581 = vmin.f32 %v579, %v580
    %v582 = vrot.slane %v581, 2
    %v583 = vmin.f32 %v581, %v582
    %v584 = vrot.slane %v583, 1
    %v585 = vmin.f32 %v583, %v584
    %v586 = vsel %vm74, %v552, inf
    %v587 = vrot.slane %v586, 4
    %v588 = vmin.f32 %v586, %v587
    %v589 = vrot.slane %v588, 2
    %v590 = vmin.f32 %v588, %v589
    %v591 = vrot.slane %v590, 1
    %v592 = vmin.f32 %v590, %v591
    %v593 = vsel %vm74, %v553, inf
    %v594 = vrot.slane %v593, 4
    %v595 = vmin.f32 %v593, %v594
    %v596 = vrot.slane %v595, 2
    %v597 = vmin.f32 %v595, %v596
    %v598 = vrot.slane %v597, 1
    %v599 = vmin.f32 %v597, %v598
    %v600 = vsel %vm74, %v554, inf
    %v601 = vrot.slane %v600, 4
    %v602 = vmin.f32 %v600, %v601
    %v603 = vrot.slane %v602, 2
    %v604 = vmin.f32 %v602, %v603
    %v605 = vrot.slane %v604, 1
    %v606 = vmin.f32 %v604, %v605
    %v607 = vsel %vm74, %v555, inf
    %v608 = vrot.slane %v607, 4
    %v609 = vmin.f32 %v607, %v608
    %v610 = vrot.slane %v609, 2
    %v611 = vmin.f32 %v609, %v610
    %v612 = vrot.slane %v611, 1
    %v613 = vmin.f32 %v611, %v612
    %v614 = vsel %vm74, %v556, inf
    %v615 = vrot.slane %v614, 4
    %v616 = vmin.f32 %v614, %v615
    %v617 = vrot.slane %v616, 2
    %v618 = vmin.f32 %v616, %v617
    %v619 = vrot.slane %v618, 1
    %v620 = vmin.f32 %v618, %v619
    %v621 = vsel %vm74, %v557, inf
    %v622 = vrot.slane %v621, 4
    %v623 = vmin.f32 %v621, %v622
    %v624 = vrot.slane %v623, 2
    %v625 = vmin.f32 %v623, %v624
    %v626 = vrot.slane %v625, 1
    %v627 = vmin.f32 %v625, %v626
    %v628 = vsel %vm74, %v558, inf
    %v629 = vrot.slane %v628, 4
    %v630 = vmin.f32 %v628, %v629
    %v631 = vrot.slane %v630, 2
    %v632 = vmin.f32 %v630, %v631
    %v633 = vrot.slane %v632, 1
    %v634 = vmin.f32 %v632, %v633
    %v635 = vsel %vm74, %v559, inf
    %v636 = vrot.slane %v635, 4
    %v637 = vmin.f32 %v635, %v636
    %v638 = vrot.slane %v637, 2
    %v639 = vmin.f32 %v637, %v638
    %v640 = vrot.slane %v639, 1
    %v641 = vmin.f32 %v639, %v640
    %v642 = vsel %vm74, %v560, inf
    %v643 = vrot.slane %v642, 4
    %v644 = vmin.f32 %v642, %v643
    %v645 = vrot.slane %v644, 2
    %v646 = vmin.f32 %v644, %v645
    %v647 = vrot.slane %v646, 1
    %v648 = vmin.f32 %v646, %v647
    %v649 = vsel %vm74, %v561, inf
    %v650 = vrot.slane %v649, 4
    %v651 = vmin.f32 %v649, %v650
    %v652 = vrot.slane %v651, 2
    %v653 = vmin.f32 %v651, %v652
    %v654 = vrot.slane %v653, 1
    %v655 = vmin.f32 %v653, %v654
    %v656 = vsel %vm74, %v562, inf
    %v657 = vrot.slane %v656, 4
    %v658 = vmin.f32 %v656, %v657
    %v659 = vrot.slane %v658, 2
    %v660 = vmin.f32 %v658, %v659
    %v661 = vrot.slane %v660, 1
    %v662 = vmin.f32 %v660, %v661
    %v663 = vsel %vm74, %v563, inf
    %v664 = vrot.slane %v663, 4
    %v665 = vmin.f32 %v663, %v664
    %v666 = vrot.slane %v665, 2
    %v667 = vmin.f32 %v665, %v666
    %v668 = vrot.slane %v667, 1
    %v669 = vmin.f32 %v667, %v668
    %v670 = vsel %vm74, %v564, inf
    %v671 = vrot.slane %v670, 4
    %v672 = vmin.f32 %v670, %v671
    %v673 = vrot.slane %v672, 2
    %v674 = vmin.f32 %v672, %v673
    %v675 = vrot.slane %v674, 1
    %v676 = vmin.f32 %v674, %v675
    %v693 = vsel %vm524, %v578, %v571
    %v694 = vsel %vm526, %v585, %v693
    %v695 = vsel %vm528, %v592, %v694
    %v696 = vsel %vm530, %v599, %v695
    %v697 = vsel %vm532, %v606, %v696
    %v698 = vsel %vm534, %v613, %v697
    %v699 = vsel %vm536, %v620, %v698
    %v700 = vsel %vm524, %v634, %v627
    %v701 = vsel %vm526, %v641, %v700
    %v702 = vsel %vm528, %v648, %v701
    %v703 = vsel %vm530, %v655, %v702
    %v704 = vsel %vm532, %v662, %v703
    %v705 = vsel %vm534, %v669, %v704
    %v706 = vsel %vm536, %v676, %v705
    %v709 = vmin.f32 %v266, %v699
    %v710 = vmin.f32 %v267, %v706
    %s712 = sor.u32 256, 8
    %713 = vbcast.lane.b32.xlu0 %v271, %s712
    %v714 = vpop.permute.xlu0 %713
    %s716 = sor.u32 256, 8
    %717 = vbcast.lane.b32.xlu0 %v278, %s716
    %v718 = vpop.permute.xlu0 %717
    %s720 = sor.u32 256, 8
    %721 = vbcast.lane.b32.xlu0 %v285, %s720
    %v722 = vpop.permute.xlu0 %721
    %s724 = sor.u32 256, 8
    %725 = vbcast.lane.b32.xlu0 %v292, %s724
    %v726 = vpop.permute.xlu0 %725
    %s728 = sor.u32 256, 8
    %729 = vbcast.lane.b32.xlu0 %v299, %s728
    %v730 = vpop.permute.xlu0 %729
    %s732 = sor.u32 256, 8
    %733 = vbcast.lane.b32.xlu0 %v306, %s732
    %v734 = vpop.permute.xlu0 %733
    %s736 = sor.u32 256, 8
    %737 = vbcast.lane.b32.xlu0 %v313, %s736
    %v738 = vpop.permute.xlu0 %737
    %s740 = sor.u32 256, 8
    %741 = vbcast.lane.b32.xlu0 %v320, %s740
    %v742 = vpop.permute.xlu0 %741
    %s744 = sor.u32 256, 8
    %745 = vbcast.lane.b32.xlu0 %v327, %s744
    %v746 = vpop.permute.xlu0 %745
    %s748 = sor.u32 256, 8
    %749 = vbcast.lane.b32.xlu0 %v334, %s748
    %v750 = vpop.permute.xlu0 %749
    %s752 = sor.u32 256, 8
    %753 = vbcast.lane.b32.xlu0 %v341, %s752
    %v754 = vpop.permute.xlu0 %753
    %s756 = sor.u32 256, 8
    %757 = vbcast.lane.b32.xlu0 %v348, %s756
    %v758 = vpop.permute.xlu0 %757
    %s760 = sor.u32 256, 8
    %761 = vbcast.lane.b32.xlu0 %v355, %s760
    %v762 = vpop.permute.xlu0 %761
    %s764 = sor.u32 256, 8
    %765 = vbcast.lane.b32.xlu0 %v362, %s764
    %v766 = vpop.permute.xlu0 %765
    %s768 = sor.u32 256, 8
    %769 = vbcast.lane.b32.xlu0 %v369, %s768
    %v770 = vpop.permute.xlu0 %769
    %s772 = sor.u32 256, 8
    %773 = vbcast.lane.b32.xlu0 %v376, %s772
    %v774 = vpop.permute.xlu0 %773
    %v775 = vadd.f32 %v153, %v714
    %v776 = vadd.f32 %v153, %v718
    %v777 = vadd.f32 %v153, %v722
    %v778 = vadd.f32 %v153, %v726
    %v779 = vadd.f32 %v153, %v730
    %v780 = vadd.f32 %v153, %v734
    %v781 = vadd.f32 %v153, %v738
    %v782 = vadd.f32 %v153, %v742
    %v783 = vadd.f32 %v153, %v746
    %v784 = vadd.f32 %v153, %v750
    %v785 = vadd.f32 %v153, %v754
    %v786 = vadd.f32 %v153, %v758
    %v787 = vadd.f32 %v153, %v762
    %v788 = vadd.f32 %v153, %v766
    %v789 = vadd.f32 %v153, %v770
    %v790 = vadd.f32 %v153, %v774
    %v791 = vsel %vm74, %v775, -inf
    %v792 = vrot.slane %v791, 4
    %v793 = vmax.f32 %v791, %v792
    %v794 = vrot.slane %v793, 2
    %v795 = vmax.f32 %v793, %v794
    %v796 = vrot.slane %v795, 1
    %v797 = vmax.f32 %v795, %v796
    %v798 = vsel %vm74, %v776, -inf
    %v799 = vrot.slane %v798, 4
    %v800 = vmax.f32 %v798, %v799
    %v801 = vrot.slane %v800, 2
    %v802 = vmax.f32 %v800, %v801
    %v803 = vrot.slane %v802, 1
    %v804 = vmax.f32 %v802, %v803
    %v805 = vsel %vm74, %v777, -inf
    %v806 = vrot.slane %v805, 4
    %v807 = vmax.f32 %v805, %v806
    %v808 = vrot.slane %v807, 2
    %v809 = vmax.f32 %v807, %v808
    %v810 = vrot.slane %v809, 1
    %v811 = vmax.f32 %v809, %v810
    %v812 = vsel %vm74, %v778, -inf
    %v813 = vrot.slane %v812, 4
    %v814 = vmax.f32 %v812, %v813
    %v815 = vrot.slane %v814, 2
    %v816 = vmax.f32 %v814, %v815
    %v817 = vrot.slane %v816, 1
    %v818 = vmax.f32 %v816, %v817
    %v819 = vsel %vm74, %v779, -inf
    %v820 = vrot.slane %v819, 4
    %v821 = vmax.f32 %v819, %v820
    %v822 = vrot.slane %v821, 2
    %v823 = vmax.f32 %v821, %v822
    %v824 = vrot.slane %v823, 1
    %v825 = vmax.f32 %v823, %v824
    %v826 = vsel %vm74, %v780, -inf
    %v827 = vrot.slane %v826, 4
    %v828 = vmax.f32 %v826, %v827
    %v829 = vrot.slane %v828, 2
    %v830 = vmax.f32 %v828, %v829
    %v831 = vrot.slane %v830, 1
    %v832 = vmax.f32 %v830, %v831
    %v833 = vsel %vm74, %v781, -inf
    %v834 = vrot.slane %v833, 4
    %v835 = vmax.f32 %v833, %v834
    %v836 = vrot.slane %v835, 2
    %v837 = vmax.f32 %v835, %v836
    %v838 = vrot.slane %v837, 1
    %v839 = vmax.f32 %v837, %v838
    %v840 = vsel %vm74, %v782, -inf
    %v841 = vrot.slane %v840, 4
    %v842 = vmax.f32 %v840, %v841
    %v843 = vrot.slane %v842, 2
    %v844 = vmax.f32 %v842, %v843
    %v845 = vrot.slane %v844, 1
    %v846 = vmax.f32 %v844, %v845
    %v847 = vsel %vm74, %v783, -inf
    %v848 = vrot.slane %v847, 4
    %v849 = vmax.f32 %v847, %v848
    %v850 = vrot.slane %v849, 2
    %v851 = vmax.f32 %v849, %v850
    %v852 = vrot.slane %v851, 1
    %v853 = vmax.f32 %v851, %v852
    %v854 = vsel %vm74, %v784, -inf
    %v855 = vrot.slane %v854, 4
    %v856 = vmax.f32 %v854, %v855
    %v857 = vrot.slane %v856, 2
    %v858 = vmax.f32 %v856, %v857
    %v859 = vrot.slane %v858, 1
    %v860 = vmax.f32 %v858, %v859
    %v861 = vsel %vm74, %v785, -inf
    %v862 = vrot.slane %v861, 4
    %v863 = vmax.f32 %v861, %v862
    %v864 = vrot.slane %v863, 2
    %v865 = vmax.f32 %v863, %v864
    %v866 = vrot.slane %v865, 1
    %v867 = vmax.f32 %v865, %v866
    %v868 = vsel %vm74, %v786, -inf
    %v869 = vrot.slane %v868, 4
    %v870 = vmax.f32 %v868, %v869
    %v871 = vrot.slane %v870, 2
    %v872 = vmax.f32 %v870, %v871
    %v873 = vrot.slane %v872, 1
    %v874 = vmax.f32 %v872, %v873
    %v875 = vsel %vm74, %v787, -inf
    %v876 = vrot.slane %v875, 4
    %v877 = vmax.f32 %v875, %v876
    %v878 = vrot.slane %v877, 2
    %v879 = vmax.f32 %v877, %v878
    %v880 = vrot.slane %v879, 1
    %v881 = vmax.f32 %v879, %v880
    %v882 = vsel %vm74, %v788, -inf
    %v883 = vrot.slane %v882, 4
    %v884 = vmax.f32 %v882, %v883
    %v885 = vrot.slane %v884, 2
    %v886 = vmax.f32 %v884, %v885
    %v887 = vrot.slane %v886, 1
    %v888 = vmax.f32 %v886, %v887
    %v889 = vsel %vm74, %v789, -inf
    %v890 = vrot.slane %v889, 4
    %v891 = vmax.f32 %v889, %v890
    %v892 = vrot.slane %v891, 2
    %v893 = vmax.f32 %v891, %v892
    %v894 = vrot.slane %v893, 1
    %v895 = vmax.f32 %v893, %v894
    %v896 = vsel %vm74, %v790, -inf
    %v897 = vrot.slane %v896, 4
    %v898 = vmax.f32 %v896, %v897
    %v899 = vrot.slane %v898, 2
    %v900 = vmax.f32 %v898, %v899
    %v901 = vrot.slane %v900, 1
    %v902 = vmax.f32 %v900, %v901
    %v919 = vsel %vm524, %v804, %v797
    %v920 = vsel %vm526, %v811, %v919
    %v921 = vsel %vm528, %v818, %v920
    %v922 = vsel %vm530, %v825, %v921
    %v923 = vsel %vm532, %v832, %v922
    %v924 = vsel %vm534, %v839, %v923
    %v925 = vsel %vm536, %v846, %v924
    %v926 = vsel %vm524, %v860, %v853
    %v927 = vsel %vm526, %v867, %v926
    %v928 = vsel %vm528, %v874, %v927
    %v929 = vsel %vm530, %v881, %v928
    %v930 = vsel %vm532, %v888, %v929
    %v931 = vsel %vm534, %v895, %v930
    %v932 = vsel %vm536, %v902, %v931
    %v935 = vmax.f32 %v547, %v925
    %v936 = vmax.f32 %v548, %v932
    %v937 = vsub.f32 %v153, %v714
    %v938 = vsub.f32 %v153, %v718
    %v939 = vsub.f32 %v153, %v722
    %v940 = vsub.f32 %v153, %v726
    %v941 = vsub.f32 %v153, %v730
    %v942 = vsub.f32 %v153, %v734
    %v943 = vsub.f32 %v153, %v738
    %v944 = vsub.f32 %v153, %v742
    %v945 = vsub.f32 %v153, %v746
    %v946 = vsub.f32 %v153, %v750
    %v947 = vsub.f32 %v153, %v754
    %v948 = vsub.f32 %v153, %v758
    %v949 = vsub.f32 %v153, %v762
    %v950 = vsub.f32 %v153, %v766
    %v951 = vsub.f32 %v153, %v770
    %v952 = vsub.f32 %v153, %v774
    %v953 = vsel %vm74, %v937, inf
    %v954 = vrot.slane %v953, 4
    %v955 = vmin.f32 %v953, %v954
    %v956 = vrot.slane %v955, 2
    %v957 = vmin.f32 %v955, %v956
    %v958 = vrot.slane %v957, 1
    %v959 = vmin.f32 %v957, %v958
    %v960 = vsel %vm74, %v938, inf
    %v961 = vrot.slane %v960, 4
    %v962 = vmin.f32 %v960, %v961
    %v963 = vrot.slane %v962, 2
    %v964 = vmin.f32 %v962, %v963
    %v965 = vrot.slane %v964, 1
    %v966 = vmin.f32 %v964, %v965
    %v967 = vsel %vm74, %v939, inf
    %v968 = vrot.slane %v967, 4
    %v969 = vmin.f32 %v967, %v968
    %v970 = vrot.slane %v969, 2
    %v971 = vmin.f32 %v969, %v970
    %v972 = vrot.slane %v971, 1
    %v973 = vmin.f32 %v971, %v972
    %v974 = vsel %vm74, %v940, inf
    %v975 = vrot.slane %v974, 4
    %v976 = vmin.f32 %v974, %v975
    %v977 = vrot.slane %v976, 2
    %v978 = vmin.f32 %v976, %v977
    %v979 = vrot.slane %v978, 1
    %v980 = vmin.f32 %v978, %v979
    %v981 = vsel %vm74, %v941, inf
    %v982 = vrot.slane %v981, 4
    %v983 = vmin.f32 %v981, %v982
    %v984 = vrot.slane %v983, 2
    %v985 = vmin.f32 %v983, %v984
    %v986 = vrot.slane %v985, 1
    %v987 = vmin.f32 %v985, %v986
    %v988 = vsel %vm74, %v942, inf
    %v989 = vrot.slane %v988, 4
    %v990 = vmin.f32 %v988, %v989
    %v991 = vrot.slane %v990, 2
    %v992 = vmin.f32 %v990, %v991
    %v993 = vrot.slane %v992, 1
    %v994 = vmin.f32 %v992, %v993
    %v995 = vsel %vm74, %v943, inf
    %v996 = vrot.slane %v995, 4
    %v997 = vmin.f32 %v995, %v996
    %v998 = vrot.slane %v997, 2
    %v999 = vmin.f32 %v997, %v998
    %v1000 = vrot.slane %v999, 1
    %v1001 = vmin.f32 %v999, %v1000
    %v1002 = vsel %vm74, %v944, inf
    %v1003 = vrot.slane %v1002, 4
    %v1004 = vmin.f32 %v1002, %v1003
    %v1005 = vrot.slane %v1004, 2
    %v1006 = vmin.f32 %v1004, %v1005
    %v1007 = vrot.slane %v1006, 1
    %v1008 = vmin.f32 %v1006, %v1007
    %v1009 = vsel %vm74, %v945, inf
    %v1010 = vrot.slane %v1009, 4
    %v1011 = vmin.f32 %v1009, %v1010
    %v1012 = vrot.slane %v1011, 2
    %v1013 = vmin.f32 %v1011, %v1012
    %v1014 = vrot.slane %v1013, 1
    %v1015 = vmin.f32 %v1013, %v1014
    %v1016 = vsel %vm74, %v946, inf
    %v1017 = vrot.slane %v1016, 4
    %v1018 = vmin.f32 %v1016, %v1017
    %v1019 = vrot.slane %v1018, 2
    %v1020 = vmin.f32 %v1018, %v1019
    %v1021 = vrot.slane %v1020, 1
    %v1022 = vmin.f32 %v1020, %v1021
    %v1023 = vsel %vm74, %v947, inf
    %v1024 = vrot.slane %v1023, 4
    %v1025 = vmin.f32 %v1023, %v1024
    %v1026 = vrot.slane %v1025, 2
    %v1027 = vmin.f32 %v1025, %v1026
    %v1028 = vrot.slane %v1027, 1
    %v1029 = vmin.f32 %v1027, %v1028
    %v1030 = vsel %vm74, %v948, inf
    %v1031 = vrot.slane %v1030, 4
    %v1032 = vmin.f32 %v1030, %v1031
    %v1033 = vrot.slane %v1032, 2
    %v1034 = vmin.f32 %v1032, %v1033
    %v1035 = vrot.slane %v1034, 1
    %v1036 = vmin.f32 %v1034, %v1035
    %v1037 = vsel %vm74, %v949, inf
    %v1038 = vrot.slane %v1037, 4
    %v1039 = vmin.f32 %v1037, %v1038
    %v1040 = vrot.slane %v1039, 2
    %v1041 = vmin.f32 %v1039, %v1040
    %v1042 = vrot.slane %v1041, 1
    %v1043 = vmin.f32 %v1041, %v1042
    %v1044 = vsel %vm74, %v950, inf
    %v1045 = vrot.slane %v1044, 4
    %v1046 = vmin.f32 %v1044, %v1045
    %v1047 = vrot.slane %v1046, 2
    %v1048 = vmin.f32 %v1046, %v1047
    %v1049 = vrot.slane %v1048, 1
    %v1050 = vmin.f32 %v1048, %v1049
    %v1051 = vsel %vm74, %v951, inf
    %v1052 = vrot.slane %v1051, 4
    %v1053 = vmin.f32 %v1051, %v1052
    %v1054 = vrot.slane %v1053, 2
    %v1055 = vmin.f32 %v1053, %v1054
    %v1056 = vrot.slane %v1055, 1
    %v1057 = vmin.f32 %v1055, %v1056
    %v1058 = vsel %vm74, %v952, inf
    %v1059 = vrot.slane %v1058, 4
    %v1060 = vmin.f32 %v1058, %v1059
    %v1061 = vrot.slane %v1060, 2
    %v1062 = vmin.f32 %v1060, %v1061
    %v1063 = vrot.slane %v1062, 1
    %v1064 = vmin.f32 %v1062, %v1063
    %v1081 = vsel %vm524, %v966, %v959
    %v1082 = vsel %vm526, %v973, %v1081
    %v1083 = vsel %vm528, %v980, %v1082
    %v1084 = vsel %vm530, %v987, %v1083
    %v1085 = vsel %vm532, %v994, %v1084
    %v1086 = vsel %vm534, %v1001, %v1085
    %v1087 = vsel %vm536, %v1008, %v1086
    %v1088 = vsel %vm524, %v1022, %v1015
    %v1089 = vsel %vm526, %v1029, %v1088
    %v1090 = vsel %vm528, %v1036, %v1089
    %v1091 = vsel %vm530, %v1043, %v1090
    %v1092 = vsel %vm532, %v1050, %v1091
    %v1093 = vsel %vm534, %v1057, %v1092
    %v1094 = vsel %vm536, %v1064, %v1093
    %v1097 = vmin.f32 %v709, %v1087
    %v1098 = vmin.f32 %v710, %v1094
    %1099 = vst.msk [vmem:[#allocation4] sm:$0xff] %vm74, %v935
    %1100 = vst.msk [vmem:[#allocation4 + $0x8] sm:$0xff] %vm74, %v936
    %1101 = vst.msk [vmem:[#allocation5] sm:$0xff] %vm74, %v1097
    %1102 = vst.msk [vmem:[#allocation5 + $0x8] sm:$0xff] %vm74, %v1098
    // Predicated region
    $region70: #{tpu_custom_call.1} parent=1 // pred_check
      %p1103 = pneg %p55
    $region71: #{tpu_custom_call.1} parent=1 // pred_check_branch
      %1105 = sbr.rel (%p1103) target = $region73
    $region72: #{tpu_custom_call.1} parent=1 // pred_region
      %v1106 = vld [vmem:[%s3] sm:$0xff]
      %v1107 = vld [vmem:[%s3 + $0x8] sm:$0xff]
      %v1108 = vld [vmem:[%s1] sm:$0xff]
      %v1109 = vld [vmem:[%s1 + $0x8] sm:$0xff]
      %v1110 = vld [vmem:[%s5] sm:$0xff]
      %v1111 = vld [vmem:[%s5 + $0x8] sm:$0xff]
      %v1112 = vld [vmem:[%s6] sm:$0x1]
      %v1114 = vlaneseq
      %v1115 = vshrl.u32 %v1114, 7
      %v1116 = vsub.s32 0, %v1115
      %v1117 = vrot.slane %v1112, %v1116
      %v1120 = vsel %vm74, %v1106, 0
      %v1123 = vsel %vm74, %v1107, 0
      %1125 = vmatprep.subr.mxu0 0.0
      %1126 = vmatpush1.msra.mxu0 %v1110
      %1127 = vmatprep.subr.mxu0 0.0
      %1128 = vmatpush1.msra.mxu0 %v1111
      %1129 = vmatprep.subr.mxu0 0.0
      %1130 = vmatpush1.msra.mxu0 0.0
      %1131 = vmatprep.subr.mxu0 0.0
      %1132 = vmatpush1.msra.mxu0 0.0
      %1133 = vmatprep.subr.mxu0 0.0
      %1134 = vmatpush1.msra.mxu0 0.0
      %1135 = vmatprep.subr.mxu0 0.0
      %1136 = vmatpush1.msra.mxu0 0.0
      %1137 = vmatprep.subr.mxu0 0.0
      %1138 = vmatpush1.msra.mxu0 0.0
      %1139 = vmatprep.subr.mxu0 0.0
      %1140 = vmatpush1.msra.mxu0 0.0
      %1141 = vmatprep.subr.mxu0 0.0
      %1142 = vmatpush1.msra.mxu0 0.0
      %1143 = vmatprep.subr.mxu0 0.0
      %1144 = vmatpush1.msra.mxu0 0.0
      %1145 = vmatprep.subr.mxu0 0.0
      %1146 = vmatpush1.msra.mxu0 0.0
      %1147 = vmatprep.subr.mxu0 0.0
      %1148 = vmatpush1.msra.mxu0 0.0
      %1149 = vmatprep.subr.mxu0 0.0
      %1150 = vmatpush1.msra.mxu0 0.0
      %1151 = vmatprep.subr.mxu0 0.0
      %1152 = vmatpush1.msra.mxu0 0.0
      %1153 = vmatprep.subr.mxu0 0.0
      %1154 = vmatpush1.msra.mxu0 0.0
      %1155 = vmatprep.subr.mxu0 0.0
      %1156 = vmatpush1.msra.mxu0 0.0
      %1157 = vmatprep.subr.mxu0 0.0
      %1158 = vmatpush1.msra.mxu0 0.0
      %1159 = vmatprep.subr.mxu0 0.0
      %1160 = vmatpush1.msra.mxu0 0.0
      %1161 = vmatprep.subr.mxu0 0.0
      %1162 = vmatpush1.msra.mxu0 0.0
      %1163 = vmatprep.subr.mxu0 0.0
      %1164 = vmatpush1.msra.mxu0 0.0
      %1165 = vmatprep.subr.mxu0 0.0
      %1166 = vmatpush1.msra.mxu0 0.0
      %1167 = vmatprep.subr.mxu0 0.0
      %1168 = vmatpush1.msra.mxu0 0.0
      %1169 = vmatprep.subr.mxu0 0.0
      %1170 = vmatpush1.msra.mxu0 0.0
      %1171 = vmatprep.subr.mxu0 0.0
      %1172 = vmatpush1.msra.mxu0 0.0
      %1173 = vmatprep.subr.mxu0 0.0
      %1174 = vmatpush1.msra.mxu0 0.0
      %1175 = vmatprep.subr.mxu0 0.0
      %1176 = vmatpush1.msra.mxu0 0.0
      %1177 = vmatprep.subr.mxu0 0.0
      %1178 = vmatpush1.msra.mxu0 0.0
      %1179 = vmatprep.subr.mxu0 0.0
      %1180 = vmatpush1.msra.mxu0 0.0
      %1181 = vmatprep.subr.mxu0 0.0
      %1182 = vmatpush1.msra.mxu0 0.0
      %1183 = vmatprep.subr.mxu0 0.0
      %1184 = vmatpush1.msra.mxu0 0.0
      %1185 = vmatprep.subr.mxu0 0.0
      %1186 = vmatpush1.msra.mxu0 0.0
      %1187 = vmatprep.subr.mxu0 0.0
      %1188 = vmatpush1.msra.mxu0 0.0
      %1189 = vmatprep.mubr.f32.mxu0 0.0
      %1190 = vmatmul.mubr.f32.gmra.mrb[0].mxu0 %v1120
      %v1191 = vpop.f32.mrb[0].mxu0
      %v1192 = vadd.f32 %v1117, %v1191
      %v1193 = vpop.f32.mrb[0].mxu0
      %1194 = vmatprep.mubr.f32.mxu0 0.0
      %1195 = vmatmul.mubr.f32.gmra.mrb[0].mxu0 %v1123
      %v1196 = vpop.f32.mrb[0].mxu0
      %v1197 = vadd.f32 %v1117, %v1196
      %v1198 = vpop.f32.mrb[0].mxu0
      %1199 = vdwg.mxu0
      %v1200 = vmax.f32 %v1108, 1.0
      %v1201 = vmax.f32 %v1109, 1.0
      %v1202 = vrcp.pop %v1200
      %v1203 = vrcp.pop %v1201
      %v1204 = vld [vmem:[#allocation2] sm:$0xff]
      %v1205 = vld [vmem:[#allocation2 + $0x8] sm:$0xff]
      %1207 = vset.pattern.permute.xlu0 0
      %1208 = vperm.xlu0 %1207, %v1202
      %v1209 = vpop.permute.xlu0 %1208
      %1212 = vset.pattern.permute.xlu0 0
      %1213 = vperm.xlu0 %1212, %v1203
      %v1214 = vpop.permute.xlu0 %1213
      %v1216 = vmul.f32 %v1204, %v1209
      %v1217 = vmul.f32 %v1205, %v1214
      %v1218 = vld [vmem:[#allocation3] sm:$0xff]
      %v1219 = vld [vmem:[#allocation3 + $0x8] sm:$0xff]
      %v1220 = vmul.f32 %v1218, %v1209
      %v1221 = vmul.f32 %v1219, %v1214
      %vm1222 = vcmp.gt.f32.partialorder %v1108, 0.5
      %vm1223 = vcmp.gt.f32.partialorder %v1109, 0.5
      %v1224 = vld [vmem:[#allocation4] sm:$0xff]
      %v1225 = vld [vmem:[#allocation4 + $0x8] sm:$0xff]
      %v1226 = vsel %vm1222, 1, 0
      %v1227 = vsel %vm1223, 1, 0
      %1228 = vset.pattern.permute.xlu0 0
      %1229 = vperm.xlu0 %1228, %v1226
      %v1230 = vpop.permute.xlu0 %1229
      %1231 = vset.pattern.permute.xlu0 0
      %1232 = vperm.xlu0 %1231, %v1227
      %v1233 = vpop.permute.xlu0 %1232
      %vm1234 = vcmp.eq.s32.totalorder %v1230, 1
      %vm1235 = vcmp.eq.s32.totalorder %v1233, 1
      %v1236 = vsel %vm1234, %v1224, 0.0
      %v1237 = vsel %vm1235, %v1225, 0.0
      %v1238 = vld [vmem:[#allocation5] sm:$0xff]
      %v1239 = vld [vmem:[#allocation5 + $0x8] sm:$0xff]
      %v1240 = vsel %vm1234, %v1238, 0.0
      %v1241 = vsel %vm1235, %v1239, 0.0
      %v1242 = vadd.f32 %v1216, %v1192
      %v1243 = vadd.f32 %v1217, %v1197
      %v1244 = vsel %vm1234, %v1242, 0.0
      %v1245 = vsel %vm1235, %v1243, 0.0
      %v1246 = vadd.f32 %v1236, %v1192
      %v1247 = vadd.f32 %v1237, %v1197
      %v1248 = vsel %vm1234, %v1246, 0.0
      %v1249 = vsel %vm1235, %v1247, 0.0
      %v1250 = vadd.f32 %v1240, %v1192
      %v1251 = vadd.f32 %v1241, %v1197
      %v1252 = vsel %vm1234, %v1250, 0.0
      %v1253 = vsel %vm1235, %v1251, 0.0
      %v1254 = vmul.f32 %v1216, %v1216
      %v1255 = vmul.f32 %v1217, %v1217
      %v1256 = vsub.f32 %v1220, %v1254
      %v1257 = vsub.f32 %v1221, %v1255
      %v1258 = vmax.f32 %v1256, 0.0
      %v1259 = vmax.f32 %v1257, 0.0
      %v1260 = vadd.f32 %v1258, 1e-30
      %v1261 = vadd.f32 %v1259, 1e-30
      %v1262 = vrsqrt.pop %v1260
      %v1263 = vmul.f32 %v1260, %v1262
      %vm1264 = vcmp.eq.f32.partialorder %v1260, inf
      %v1265 = vsel %vm1264, %v1260, %v1263
      %vm1266 = vcmp.eq.f32.partialorder %v1260, 0.0
      %v1267 = vand.u32 %v1260, 2147483648
      %v1268 = vsel %vm1266, %v1267, %v1265
      %v1269 = vrsqrt.pop %v1261
      %v1270 = vmul.f32 %v1261, %v1269
      %vm1271 = vcmp.eq.f32.partialorder %v1261, inf
      %v1272 = vsel %vm1271, %v1261, %v1270
      %vm1273 = vcmp.eq.f32.partialorder %v1261, 0.0
      %v1274 = vand.u32 %v1261, 2147483648
      %v1275 = vsel %vm1273, %v1274, %v1272
      %v1276 = vsel %vm1234, %v1268, 0.0
      %v1277 = vsel %vm1235, %v1275, 0.0
      %v1278 = vadd.f32 %v1200, 1.0
      %v1279 = vadd.f32 %v1201, 1.0
      %v1280 = vlog2.pop %v1278
      %v1281 = vmul.f32 %v1280, 0.6931472
      %v1282 = vlog2.pop %v1279
      %v1283 = vmul.f32 %v1282, 0.6931472
      %v1284 = vrcp.pop %v1281
      %v1285 = vrcp.pop %v1283
      %v1286 = vmul.f32 %v1284, 10.0
      %v1287 = vmul.f32 %v1285, 10.0
      %v1288 = vmul.f32 %v1281, 0.1
      %v1289 = vmul.f32 %v1283, 0.1
      %v1290 = vld [vmem:[%s7] sm:$0xff]
      %v1291 = vld [vmem:[%s7 + $0x8] sm:$0xff]
      %v1292 = vld [vmem:[%s9] sm:$0x1]
      %v1294 = vlaneseq
      %v1295 = vshrl.u32 %v1294, 7
      %v1296 = vsub.s32 0, %v1295
      %v1297 = vrot.slane %v1292, %v1296
      %1299 = vmatprep.subr.mxu0 0.0
      %1300 = vmatpush1.msra.mxu0 %v1290
      %1301 = vmatprep.subr.mxu0 0.0
      %1302 = vmatpush1.msra.mxu0 %v1291
      %1303 = vmatprep.subr.mxu0 0.0
      %1304 = vmatpush1.msra.mxu0 0.0
      %1305 = vmatprep.subr.mxu0 0.0
      %1306 = vmatpush1.msra.mxu0 0.0
      %1307 = vmatprep.subr.mxu0 0.0
      %1308 = vmatpush1.msra.mxu0 0.0
      %1309 = vmatprep.subr.mxu0 0.0
      %1310 = vmatpush1.msra.mxu0 0.0
      %1311 = vmatprep.subr.mxu0 0.0
      %1312 = vmatpush1.msra.mxu0 0.0
      %1313 = vmatprep.subr.mxu0 0.0
      %1314 = vmatpush1.msra.mxu0 0.0
      %1315 = vmatprep.subr.mxu0 0.0
      %1316 = vmatpush1.msra.mxu0 0.0
      %1317 = vmatprep.subr.mxu0 0.0
      %1318 = vmatpush1.msra.mxu0 0.0
      %1319 = vmatprep.subr.mxu0 0.0
      %1320 = vmatpush1.msra.mxu0 0.0
      %1321 = vmatprep.subr.mxu0 0.0
      %1322 = vmatpush1.msra.mxu0 0.0
      %1323 = vmatprep.subr.mxu0 0.0
      %1324 = vmatpush1.msra.mxu0 0.0
      %1325 = vmatprep.subr.mxu0 0.0
      %1326 = vmatpush1.msra.mxu0 0.0
      %1327 = vmatprep.subr.mxu0 0.0
      %1328 = vmatpush1.msra.mxu0 0.0
      %1329 = vmatprep.subr.mxu0 0.0
      %1330 = vmatpush1.msra.mxu0 0.0
      %1331 = vmatprep.subr.mxu0 0.0
      %1332 = vmatpush1.msra.mxu0 0.0
      %1333 = vmatprep.subr.mxu0 0.0
      %1334 = vmatpush1.msra.mxu0 0.0
      %1335 = vmatprep.subr.mxu0 0.0
      %1336 = vmatpush1.msra.mxu0 0.0
      %1337 = vmatprep.subr.mxu0 0.0
      %1338 = vmatpush1.msra.mxu0 0.0
      %1339 = vmatprep.subr.mxu0 0.0
      %1340 = vmatpush1.msra.mxu0 0.0
      %1341 = vmatprep.subr.mxu0 0.0
      %1342 = vmatpush1.msra.mxu0 0.0
      %1343 = vmatprep.subr.mxu0 0.0
      %1344 = vmatpush1.msra.mxu0 0.0
      %1345 = vmatprep.subr.mxu0 0.0
      %1346 = vmatpush1.msra.mxu0 0.0
      %1347 = vmatprep.subr.mxu0 0.0
      %1348 = vmatpush1.msra.mxu0 0.0
      %1349 = vmatprep.subr.mxu0 0.0
      %1350 = vmatpush1.msra.mxu0 0.0
      %1351 = vmatprep.subr.mxu0 0.0
      %1352 = vmatpush1.msra.mxu0 0.0
      %1353 = vmatprep.subr.mxu0 0.0
      %1354 = vmatpush1.msra.mxu0 0.0
      %1355 = vmatprep.subr.mxu0 0.0
      %1356 = vmatpush1.msra.mxu0 0.0
      %1357 = vmatprep.subr.mxu0 0.0
      %1358 = vmatpush1.msra.mxu0 0.0
      %1359 = vmatprep.subr.mxu0 0.0
      %1360 = vmatpush1.msra.mxu0 0.0
      %1361 = vmatprep.subr.mxu0 0.0
      %1362 = vmatpush1.msra.mxu0 0.0
      %1363 = vmatprep.mubr.f32.mxu0 0.0
      %1364 = vmatmul.mubr.f32.gmra.mrb[0].mxu0 %v1120
      %v1365 = vpop.f32.mrb[0].mxu0
      %v1366 = vadd.f32 %v1297, %v1365
      %v1367 = vpop.f32.mrb[0].mxu0
      %1368 = vmatprep.mubr.f32.mxu0 0.0
      %1369 = vmatmul.mubr.f32.gmra.mrb[0].mxu0 %v1123
      %v1370 = vpop.f32.mrb[0].mxu0
      %v1371 = vadd.f32 %v1297, %v1370
      %v1372 = vpop.f32.mrb[0].mxu0
      %1373 = vdwg.mxu0
      %v1374 = vld [vmem:[%s8] sm:$0xff]
      %v1375 = vld [vmem:[%s8 + $0x8] sm:$0xff]
      %v1377 = vsel %vm74, %v1244, 0
      %v1380 = vsel %vm74, %v1245, 0
      %1382 = vmatprep.subr.mxu0 0.0
      %1383 = vmatpush1.msra.mxu0 %v1374
      %1384 = vmatprep.subr.mxu0 0.0
      %1385 = vmatpush1.msra.mxu0 %v1375
      %1386 = vmatprep.subr.mxu0 0.0
      %1387 = vmatpush1.msra.mxu0 0.0
      %1388 = vmatprep.subr.mxu0 0.0
      %1389 = vmatpush1.msra.mxu0 0.0
      %1390 = vmatprep.subr.mxu0 0.0
      %1391 = vmatpush1.msra.mxu0 0.0
      %1392 = vmatprep.subr.mxu0 0.0
      %1393 = vmatpush1.msra.mxu0 0.0
      %1394 = vmatprep.subr.mxu0 0.0
      %1395 = vmatpush1.msra.mxu0 0.0
      %1396 = vmatprep.subr.mxu0 0.0
      %1397 = vmatpush1.msra.mxu0 0.0
      %1398 = vmatprep.subr.mxu0 0.0
      %1399 = vmatpush1.msra.mxu0 0.0
      %1400 = vmatprep.subr.mxu0 0.0
      %1401 = vmatpush1.msra.mxu0 0.0
      %1402 = vmatprep.subr.mxu0 0.0
      %1403 = vmatpush1.msra.mxu0 0.0
      %1404 = vmatprep.subr.mxu0 0.0
      %1405 = vmatpush1.msra.mxu0 0.0
      %1406 = vmatprep.subr.mxu0 0.0
      %1407 = vmatpush1.msra.mxu0 0.0
      %1408 = vmatprep.subr.mxu0 0.0
      %1409 = vmatpush1.msra.mxu0 0.0
      %1410 = vmatprep.subr.mxu0 0.0
      %1411 = vmatpush1.msra.mxu0 0.0
      %1412 = vmatprep.subr.mxu0 0.0
      %1413 = vmatpush1.msra.mxu0 0.0
      %1414 = vmatprep.subr.mxu0 0.0
      %1415 = vmatpush1.msra.mxu0 0.0
      %1416 = vmatprep.subr.mxu0 0.0
      %1417 = vmatpush1.msra.mxu0 0.0
      %1418 = vmatprep.subr.mxu0 0.0
      %1419 = vmatpush1.msra.mxu0 0.0
      %1420 = vmatprep.subr.mxu0 0.0
      %1421 = vmatpush1.msra.mxu0 0.0
      %1422 = vmatprep.subr.mxu0 0.0
      %1423 = vmatpush1.msra.mxu0 0.0
      %1424 = vmatprep.subr.mxu0 0.0
      %1425 = vmatpush1.msra.mxu0 0.0
      %1426 = vmatprep.subr.mxu0 0.0
      %1427 = vmatpush1.msra.mxu0 0.0
      %1428 = vmatprep.subr.mxu0 0.0
      %1429 = vmatpush1.msra.mxu0 0.0
      %1430 = vmatprep.subr.mxu0 0.0
      %1431 = vmatpush1.msra.mxu0 0.0
      %1432 = vmatprep.subr.mxu0 0.0
      %1433 = vmatpush1.msra.mxu0 0.0
      %1434 = vmatprep.subr.mxu0 0.0
      %1435 = vmatpush1.msra.mxu0 0.0
      %1436 = vmatprep.subr.mxu0 0.0
      %1437 = vmatpush1.msra.mxu0 0.0
      %1438 = vmatprep.subr.mxu0 0.0
      %1439 = vmatpush1.msra.mxu0 0.0
      %1440 = vmatprep.subr.mxu0 0.0
      %1441 = vmatpush1.msra.mxu0 0.0
      %1442 = vmatprep.subr.mxu0 0.0
      %1443 = vmatpush1.msra.mxu0 0.0
      %1444 = vmatprep.subr.mxu0 0.0
      %1445 = vmatpush1.msra.mxu0 0.0
      %1446 = vmatprep.mubr.f32.mxu0 0.0
      %1447 = vmatmul.mubr.f32.gmra.mrb[0].mxu0 %v1377
      %v1448 = vpop.f32.mrb[0].mxu0
      %v1449 = vadd.f32 0.0, %v1448
      %v1450 = vpop.f32.mrb[0].mxu0
      %1451 = vmatprep.mubr.f32.mxu0 0.0
      %1452 = vmatmul.mubr.f32.gmra.mrb[0].mxu0 %v1380
      %v1453 = vpop.f32.mrb[0].mxu0
      %v1454 = vadd.f32 0.0, %v1453
      %v1455 = vpop.f32.mrb[0].mxu0
      %1456 = vdwg.mxu0
      %v1457 = vadd.f32 %v1366, %v1449
      %v1458 = vadd.f32 %v1371, %v1454
      %v1459 = vld [vmem:[%s8 + $0x10] sm:$0xff]
      %v1460 = vld [vmem:[%s8 + $0x18] sm:$0xff]
      %v1462 = vsel %vm74, %v1248, 0
      %v1465 = vsel %vm74, %v1249, 0
      %1467 = vmatprep.subr.mxu0 0.0
      %1468 = vmatpush1.msra.mxu0 %v1459
      %1469 = vmatprep.subr.mxu0 0.0
      %1470 = vmatpush1.msra.mxu0 %v1460
      %1471 = vmatprep.subr.mxu0 0.0
      %1472 = vmatpush1.msra.mxu0 0.0
      %1473 = vmatprep.subr.mxu0 0.0
      %1474 = vmatpush1.msra.mxu0 0.0
      %1475 = vmatprep.subr.mxu0 0.0
      %1476 = vmatpush1.msra.mxu0 0.0
      %1477 = vmatprep.subr.mxu0 0.0
      %1478 = vmatpush1.msra.mxu0 0.0
      %1479 = vmatprep.subr.mxu0 0.0
      %1480 = vmatpush1.msra.mxu0 0.0
      %1481 = vmatprep.subr.mxu0 0.0
      %1482 = vmatpush1.msra.mxu0 0.0
      %1483 = vmatprep.subr.mxu0 0.0
      %1484 = vmatpush1.msra.mxu0 0.0
      %1485 = vmatprep.subr.mxu0 0.0
      %1486 = vmatpush1.msra.mxu0 0.0
      %1487 = vmatprep.subr.mxu0 0.0
      %1488 = vmatpush1.msra.mxu0 0.0
      %1489 = vmatprep.subr.mxu0 0.0
      %1490 = vmatpush1.msra.mxu0 0.0
      %1491 = vmatprep.subr.mxu0 0.0
      %1492 = vmatpush1.msra.mxu0 0.0
      %1493 = vmatprep.subr.mxu0 0.0
      %1494 = vmatpush1.msra.mxu0 0.0
      %1495 = vmatprep.subr.mxu0 0.0
      %1496 = vmatpush1.msra.mxu0 0.0
      %1497 = vmatprep.subr.mxu0 0.0
      %1498 = vmatpush1.msra.mxu0 0.0
      %1499 = vmatprep.subr.mxu0 0.0
      %1500 = vmatpush1.msra.mxu0 0.0
      %1501 = vmatprep.subr.mxu0 0.0
      %1502 = vmatpush1.msra.mxu0 0.0
      %1503 = vmatprep.subr.mxu0 0.0
      %1504 = vmatpush1.msra.mxu0 0.0
      %1505 = vmatprep.subr.mxu0 0.0
      %1506 = vmatpush1.msra.mxu0 0.0
      %1507 = vmatprep.subr.mxu0 0.0
      %1508 = vmatpush1.msra.mxu0 0.0
      %1509 = vmatprep.subr.mxu0 0.0
      %1510 = vmatpush1.msra.mxu0 0.0
      %1511 = vmatprep.subr.mxu0 0.0
      %1512 = vmatpush1.msra.mxu0 0.0
      %1513 = vmatprep.subr.mxu0 0.0
      %1514 = vmatpush1.msra.mxu0 0.0
      %1515 = vmatprep.subr.mxu0 0.0
      %1516 = vmatpush1.msra.mxu0 0.0
      %1517 = vmatprep.subr.mxu0 0.0
      %1518 = vmatpush1.msra.mxu0 0.0
      %1519 = vmatprep.subr.mxu0 0.0
      %1520 = vmatpush1.msra.mxu0 0.0
      %1521 = vmatprep.subr.mxu0 0.0
      %1522 = vmatpush1.msra.mxu0 0.0
      %1523 = vmatprep.subr.mxu0 0.0
      %1524 = vmatpush1.msra.mxu0 0.0
      %1525 = vmatprep.subr.mxu0 0.0
      %1526 = vmatpush1.msra.mxu0 0.0
      %1527 = vmatprep.subr.mxu0 0.0
      %1528 = vmatpush1.msra.mxu0 0.0
      %1529 = vmatprep.subr.mxu0 0.0
      %1530 = vmatpush1.msra.mxu0 0.0
      %1531 = vmatprep.mubr.f32.mxu0 0.0
      %1532 = vmatmul.mubr.f32.gmra.mrb[0].mxu0 %v1462
      %v1533 = vpop.f32.mrb[0].mxu0
      %v1534 = vadd.f32 0.0, %v1533
      %v1535 = vpop.f32.mrb[0].mxu0
      %1536 = vmatprep.mubr.f32.mxu0 0.0
      %1537 = vmatmul.mubr.f32.gmra.mrb[0].mxu0 %v1465
      %v1538 = vpop.f32.mrb[0].mxu0
      %v1539 = vadd.f32 0.0, %v1538
      %v1540 = vpop.f32.mrb[0].mxu0
      %1541 = vdwg.mxu0
      %v1542 = vadd.f32 %v1457, %v1534
      %v1543 = vadd.f32 %v1458, %v1539
      %v1544 = vld [vmem:[%s8 + $0x20] sm:$0xff]
      %v1545 = vld [vmem:[%s8 + $0x28] sm:$0xff]
      %v1547 = vsel %vm74, %v1252, 0
      %v1550 = vsel %vm74, %v1253, 0
      %1552 = vmatprep.subr.mxu0 0.0
      %1553 = vmatpush1.msra.mxu0 %v1544
      %1554 = vmatprep.subr.mxu0 0.0
      %1555 = vmatpush1.msra.mxu0 %v1545
      %1556 = vmatprep.subr.mxu0 0.0
      %1557 = vmatpush1.msra.mxu0 0.0
      %1558 = vmatprep.subr.mxu0 0.0
      %1559 = vmatpush1.msra.mxu0 0.0
      %1560 = vmatprep.subr.mxu0 0.0
      %1561 = vmatpush1.msra.mxu0 0.0
      %1562 = vmatprep.subr.mxu0 0.0
      %1563 = vmatpush1.msra.mxu0 0.0
      %1564 = vmatprep.subr.mxu0 0.0
      %1565 = vmatpush1.msra.mxu0 0.0
      %1566 = vmatprep.subr.mxu0 0.0
      %1567 = vmatpush1.msra.mxu0 0.0
      %1568 = vmatprep.subr.mxu0 0.0
      %1569 = vmatpush1.msra.mxu0 0.0
      %1570 = vmatprep.subr.mxu0 0.0
      %1571 = vmatpush1.msra.mxu0 0.0
      %1572 = vmatprep.subr.mxu0 0.0
      %1573 = vmatpush1.msra.mxu0 0.0
      %1574 = vmatprep.subr.mxu0 0.0
      %1575 = vmatpush1.msra.mxu0 0.0
      %1576 = vmatprep.subr.mxu0 0.0
      %1577 = vmatpush1.msra.mxu0 0.0
      %1578 = vmatprep.subr.mxu0 0.0
      %1579 = vmatpush1.msra.mxu0 0.0
      %1580 = vmatprep.subr.mxu0 0.0
      %1581 = vmatpush1.msra.mxu0 0.0
      %1582 = vmatprep.subr.mxu0 0.0
      %1583 = vmatpush1.msra.mxu0 0.0
      %1584 = vmatprep.subr.mxu0 0.0
      %1585 = vmatpush1.msra.mxu0 0.0
      %1586 = vmatprep.subr.mxu0 0.0
      %1587 = vmatpush1.msra.mxu0 0.0
      %1588 = vmatprep.subr.mxu0 0.0
      %1589 = vmatpush1.msra.mxu0 0.0
      %1590 = vmatprep.subr.mxu0 0.0
      %1591 = vmatpush1.msra.mxu0 0.0
      %1592 = vmatprep.subr.mxu0 0.0
      %1593 = vmatpush1.msra.mxu0 0.0
      %1594 = vmatprep.subr.mxu0 0.0
      %1595 = vmatpush1.msra.mxu0 0.0
      %1596 = vmatprep.subr.mxu0 0.0
      %1597 = vmatpush1.msra.mxu0 0.0
      %1598 = vmatprep.subr.mxu0 0.0
      %1599 = vmatpush1.msra.mxu0 0.0
      %1600 = vmatprep.subr.mxu0 0.0
      %1601 = vmatpush1.msra.mxu0 0.0
      %1602 = vmatprep.subr.mxu0 0.0
      %1603 = vmatpush1.msra.mxu0 0.0
      %1604 = vmatprep.subr.mxu0 0.0
      %1605 = vmatpush1.msra.mxu0 0.0
      %1606 = vmatprep.subr.mxu0 0.0
      %1607 = vmatpush1.msra.mxu0 0.0
      %1608 = vmatprep.subr.mxu0 0.0
      %1609 = vmatpush1.msra.mxu0 0.0
      %1610 = vmatprep.subr.mxu0 0.0
      %1611 = vmatpush1.msra.mxu0 0.0
      %1612 = vmatprep.subr.mxu0 0.0
      %1613 = vmatpush1.msra.mxu0 0.0
      %1614 = vmatprep.subr.mxu0 0.0
      %1615 = vmatpush1.msra.mxu0 0.0
      %1616 = vmatprep.mubr.f32.mxu0 0.0
      %1617 = vmatmul.mubr.f32.gmra.mrb[0].mxu0 %v1547
      %v1618 = vpop.f32.mrb[0].mxu0
      %v1619 = vadd.f32 0.0, %v1618
      %v1620 = vpop.f32.mrb[0].mxu0
      %1621 = vmatprep.mubr.f32.mxu0 0.0
      %1622 = vmatmul.mubr.f32.gmra.mrb[0].mxu0 %v1550
      %v1623 = vpop.f32.mrb[0].mxu0
      %v1624 = vadd.f32 0.0, %v1623
      %v1625 = vpop.f32.mrb[0].mxu0
      %1626 = vdwg.mxu0
      %v1627 = vadd.f32 %v1542, %v1619
      %v1628 = vadd.f32 %v1543, %v1624
      %v1629 = vld [vmem:[%s8 + $0x30] sm:$0xff]
      %v1630 = vld [vmem:[%s8 + $0x38] sm:$0xff]
      %v1632 = vsel %vm74, %v1276, 0
      %v1635 = vsel %vm74, %v1277, 0
      %1637 = vmatprep.subr.mxu0 0.0
      %1638 = vmatpush1.msra.mxu0 %v1629
      %1639 = vmatprep.subr.mxu0 0.0
      %1640 = vmatpush1.msra.mxu0 %v1630
      %1641 = vmatprep.subr.mxu0 0.0
      %1642 = vmatpush1.msra.mxu0 0.0
      %1643 = vmatprep.subr.mxu0 0.0
      %1644 = vmatpush1.msra.mxu0 0.0
      %1645 = vmatprep.subr.mxu0 0.0
      %1646 = vmatpush1.msra.mxu0 0.0
      %1647 = vmatprep.subr.mxu0 0.0
      %1648 = vmatpush1.msra.mxu0 0.0
      %1649 = vmatprep.subr.mxu0 0.0
      %1650 = vmatpush1.msra.mxu0 0.0
      %1651 = vmatprep.subr.mxu0 0.0
      %1652 = vmatpush1.msra.mxu0 0.0
      %1653 = vmatprep.subr.mxu0 0.0
      %1654 = vmatpush1.msra.mxu0 0.0
      %1655 = vmatprep.subr.mxu0 0.0
      %1656 = vmatpush1.msra.mxu0 0.0
      %1657 = vmatprep.subr.mxu0 0.0
      %1658 = vmatpush1.msra.mxu0 0.0
      %1659 = vmatprep.subr.mxu0 0.0
      %1660 = vmatpush1.msra.mxu0 0.0
      %1661 = vmatprep.subr.mxu0 0.0
      %1662 = vmatpush1.msra.mxu0 0.0
      %1663 = vmatprep.subr.mxu0 0.0
      %1664 = vmatpush1.msra.mxu0 0.0
      %1665 = vmatprep.subr.mxu0 0.0
      %1666 = vmatpush1.msra.mxu0 0.0
      %1667 = vmatprep.subr.mxu0 0.0
      %1668 = vmatpush1.msra.mxu0 0.0
      %1669 = vmatprep.subr.mxu0 0.0
      %1670 = vmatpush1.msra.mxu0 0.0
      %1671 = vmatprep.subr.mxu0 0.0
      %1672 = vmatpush1.msra.mxu0 0.0
      %1673 = vmatprep.subr.mxu0 0.0
      %1674 = vmatpush1.msra.mxu0 0.0
      %1675 = vmatprep.subr.mxu0 0.0
      %1676 = vmatpush1.msra.mxu0 0.0
      %1677 = vmatprep.subr.mxu0 0.0
      %1678 = vmatpush1.msra.mxu0 0.0
      %1679 = vmatprep.subr.mxu0 0.0
      %1680 = vmatpush1.msra.mxu0 0.0
      %1681 = vmatprep.subr.mxu0 0.0
      %1682 = vmatpush1.msra.mxu0 0.0
      %1683 = vmatprep.subr.mxu0 0.0
      %1684 = vmatpush1.msra.mxu0 0.0
      %1685 = vmatprep.subr.mxu0 0.0
      %1686 = vmatpush1.msra.mxu0 0.0
      %1687 = vmatprep.subr.mxu0 0.0
      %1688 = vmatpush1.msra.mxu0 0.0
      %1689 = vmatprep.subr.mxu0 0.0
      %1690 = vmatpush1.msra.mxu0 0.0
      %1691 = vmatprep.subr.mxu0 0.0
      %1692 = vmatpush1.msra.mxu0 0.0
      %1693 = vmatprep.subr.mxu0 0.0
      %1694 = vmatpush1.msra.mxu0 0.0
      %1695 = vmatprep.subr.mxu0 0.0
      %1696 = vmatpush1.msra.mxu0 0.0
      %1697 = vmatprep.subr.mxu0 0.0
      %1698 = vmatpush1.msra.mxu0 0.0
      %1699 = vmatprep.subr.mxu0 0.0
      %1700 = vmatpush1.msra.mxu0 0.0
      %1701 = vmatprep.mubr.f32.mxu0 0.0
      %1702 = vmatmul.mubr.f32.gmra.mrb[0].mxu0 %v1632
      %v1703 = vpop.f32.mrb[0].mxu0
      %v1704 = vadd.f32 0.0, %v1703
      %v1705 = vpop.f32.mrb[0].mxu0
      %1706 = vmatprep.mubr.f32.mxu0 0.0
      %1707 = vmatmul.mubr.f32.gmra.mrb[0].mxu0 %v1635
      %v1708 = vpop.f32.mrb[0].mxu0
      %v1709 = vadd.f32 0.0, %v1708
      %v1710 = vpop.f32.mrb[0].mxu0
      %1711 = vdwg.mxu0
      %v1712 = vadd.f32 %v1627, %v1704
      %v1713 = vadd.f32 %v1628, %v1709
      %1715 = vset.pattern.permute.xlu0 0
      %1716 = vperm.xlu0 %1715, %v1286
      %v1717 = vpop.permute.xlu0 %1716
      %1720 = vset.pattern.permute.xlu0 0
      %1721 = vperm.xlu0 %1720, %v1287
      %v1722 = vpop.permute.xlu0 %1721
      %v1724 = vmul.f32 %v1244, %v1717
      %v1725 = vmul.f32 %v1245, %v1722
      %v1726 = vld [vmem:[%s8 + $0x40] sm:$0xff]
      %v1727 = vld [vmem:[%s8 + $0x48] sm:$0xff]
      %v1729 = vsel %vm74, %v1724, 0
      %v1732 = vsel %vm74, %v1725, 0
      %1734 = vmatprep.subr.mxu0 0.0
      %1735 = vmatpush1.msra.mxu0 %v1726
      %1736 = vmatprep.subr.mxu0 0.0
      %1737 = vmatpush1.msra.mxu0 %v1727
      %1738 = vmatprep.subr.mxu0 0.0
      %1739 = vmatpush1.msra.mxu0 0.0
      %1740 = vmatprep.subr.mxu0 0.0
      %1741 = vmatpush1.msra.mxu0 0.0
      %1742 = vmatprep.subr.mxu0 0.0
      %1743 = vmatpush1.msra.mxu0 0.0
      %1744 = vmatprep.subr.mxu0 0.0
      %1745 = vmatpush1.msra.mxu0 0.0
      %1746 = vmatprep.subr.mxu0 0.0
      %1747 = vmatpush1.msra.mxu0 0.0
      %1748 = vmatprep.subr.mxu0 0.0
      %1749 = vmatpush1.msra.mxu0 0.0
      %1750 = vmatprep.subr.mxu0 0.0
      %1751 = vmatpush1.msra.mxu0 0.0
      %1752 = vmatprep.subr.mxu0 0.0
      %1753 = vmatpush1.msra.mxu0 0.0
      %1754 = vmatprep.subr.mxu0 0.0
      %1755 = vmatpush1.msra.mxu0 0.0
      %1756 = vmatprep.subr.mxu0 0.0
      %1757 = vmatpush1.msra.mxu0 0.0
      %1758 = vmatprep.subr.mxu0 0.0
      %1759 = vmatpush1.msra.mxu0 0.0
      %1760 = vmatprep.subr.mxu0 0.0
      %1761 = vmatpush1.msra.mxu0 0.0
      %1762 = vmatprep.subr.mxu0 0.0
      %1763 = vmatpush1.msra.mxu0 0.0
      %1764 = vmatprep.subr.mxu0 0.0
      %1765 = vmatpush1.msra.mxu0 0.0
      %1766 = vmatprep.subr.mxu0 0.0
      %1767 = vmatpush1.msra.mxu0 0.0
      %1768 = vmatprep.subr.mxu0 0.0
      %1769 = vmatpush1.msra.mxu0 0.0
      %1770 = vmatprep.subr.mxu0 0.0
      %1771 = vmatpush1.msra.mxu0 0.0
      %1772 = vmatprep.subr.mxu0 0.0
      %1773 = vmatpush1.msra.mxu0 0.0
      %1774 = vmatprep.subr.mxu0 0.0
      %1775 = vmatpush1.msra.mxu0 0.0
      %1776 = vmatprep.subr.mxu0 0.0
      %1777 = vmatpush1.msra.mxu0 0.0
      %1778 = vmatprep.subr.mxu0 0.0
      %1779 = vmatpush1.msra.mxu0 0.0
      %1780 = vmatprep.subr.mxu0 0.0
      %1781 = vmatpush1.msra.mxu0 0.0
      %1782 = vmatprep.subr.mxu0 0.0
      %1783 = vmatpush1.msra.mxu0 0.0
      %1784 = vmatprep.subr.mxu0 0.0
      %1785 = vmatpush1.msra.mxu0 0.0
      %1786 = vmatprep.subr.mxu0 0.0
      %1787 = vmatpush1.msra.mxu0 0.0
      %1788 = vmatprep.subr.mxu0 0.0
      %1789 = vmatpush1.msra.mxu0 0.0
      %1790 = vmatprep.subr.mxu0 0.0
      %1791 = vmatpush1.msra.mxu0 0.0
      %1792 = vmatprep.subr.mxu0 0.0
      %1793 = vmatpush1.msra.mxu0 0.0
      %1794 = vmatprep.subr.mxu0 0.0
      %1795 = vmatpush1.msra.mxu0 0.0
      %1796 = vmatprep.subr.mxu0 0.0
      %1797 = vmatpush1.msra.mxu0 0.0
      %1798 = vmatprep.mubr.f32.mxu0 0.0
      %1799 = vmatmul.mubr.f32.gmra.mrb[0].mxu0 %v1729
      %v1800 = vpop.f32.mrb[0].mxu0
      %v1801 = vadd.f32 0.0, %v1800
      %v1802 = vpop.f32.mrb[0].mxu0
      %1803 = vmatprep.mubr.f32.mxu0 0.0
      %1804 = vmatmul.mubr.f32.gmra.mrb[0].mxu0 %v1732
      %v1805 = vpop.f32.mrb[0].mxu0
      %v1806 = vadd.f32 0.0, %v1805
      %v1807 = vpop.f32.mrb[0].mxu0
      %1808 = vdwg.mxu0
      %v1809 = vadd.f32 %v1712, %v1801
      %v1810 = vadd.f32 %v1713, %v1806
      %v1811 = vmul.f32 %v1248, %v1717
      %v1812 = vmul.f32 %v1249, %v1722
      %v1813 = vld [vmem:[%s8 + $0x50] sm:$0xff]
      %v1814 = vld [vmem:[%s8 + $0x58] sm:$0xff]
      %v1816 = vsel %vm74, %v1811, 0
      %v1819 = vsel %vm74, %v1812, 0
      %1821 = vmatprep.subr.mxu0 0.0
      %1822 = vmatpush1.msra.mxu0 %v1813
      %1823 = vmatprep.subr.mxu0 0.0
      %1824 = vmatpush1.msra.mxu0 %v1814
      %1825 = vmatprep.subr.mxu0 0.0
      %1826 = vmatpush1.msra.mxu0 0.0
      %1827 = vmatprep.subr.mxu0 0.0
      %1828 = vmatpush1.msra.mxu0 0.0
      %1829 = vmatprep.subr.mxu0 0.0
      %1830 = vmatpush1.msra.mxu0 0.0
      %1831 = vmatprep.subr.mxu0 0.0
      %1832 = vmatpush1.msra.mxu0 0.0
      %1833 = vmatprep.subr.mxu0 0.0
      %1834 = vmatpush1.msra.mxu0 0.0
      %1835 = vmatprep.subr.mxu0 0.0
      %1836 = vmatpush1.msra.mxu0 0.0
      %1837 = vmatprep.subr.mxu0 0.0
      %1838 = vmatpush1.msra.mxu0 0.0
      %1839 = vmatprep.subr.mxu0 0.0
      %1840 = vmatpush1.msra.mxu0 0.0
      %1841 = vmatprep.subr.mxu0 0.0
      %1842 = vmatpush1.msra.mxu0 0.0
      %1843 = vmatprep.subr.mxu0 0.0
      %1844 = vmatpush1.msra.mxu0 0.0
      %1845 = vmatprep.subr.mxu0 0.0
      %1846 = vmatpush1.msra.mxu0 0.0
      %1847 = vmatprep.subr.mxu0 0.0
      %1848 = vmatpush1.msra.mxu0 0.0
      %1849 = vmatprep.subr.mxu0 0.0
      %1850 = vmatpush1.msra.mxu0 0.0
      %1851 = vmatprep.subr.mxu0 0.0
      %1852 = vmatpush1.msra.mxu0 0.0
      %1853 = vmatprep.subr.mxu0 0.0
      %1854 = vmatpush1.msra.mxu0 0.0
      %1855 = vmatprep.subr.mxu0 0.0
      %1856 = vmatpush1.msra.mxu0 0.0
      %1857 = vmatprep.subr.mxu0 0.0
      %1858 = vmatpush1.msra.mxu0 0.0
      %1859 = vmatprep.subr.mxu0 0.0
      %1860 = vmatpush1.msra.mxu0 0.0
      %1861 = vmatprep.subr.mxu0 0.0
      %1862 = vmatpush1.msra.mxu0 0.0
      %1863 = vmatprep.subr.mxu0 0.0
      %1864 = vmatpush1.msra.mxu0 0.0
      %1865 = vmatprep.subr.mxu0 0.0
      %1866 = vmatpush1.msra.mxu0 0.0
      %1867 = vmatprep.subr.mxu0 0.0
      %1868 = vmatpush1.msra.mxu0 0.0
      %1869 = vmatprep.subr.mxu0 0.0
      %1870 = vmatpush1.msra.mxu0 0.0
      %1871 = vmatprep.subr.mxu0 0.0
      %1872 = vmatpush1.msra.mxu0 0.0
      %1873 = vmatprep.subr.mxu0 0.0
      %1874 = vmatpush1.msra.mxu0 0.0
      %1875 = vmatprep.subr.mxu0 0.0
      %1876 = vmatpush1.msra.mxu0 0.0
      %1877 = vmatprep.subr.mxu0 0.0
      %1878 = vmatpush1.msra.mxu0 0.0
      %1879 = vmatprep.subr.mxu0 0.0
      %1880 = vmatpush1.msra.mxu0 0.0
      %1881 = vmatprep.subr.mxu0 0.0
      %1882 = vmatpush1.msra.mxu0 0.0
      %1883 = vmatprep.subr.mxu0 0.0
      %1884 = vmatpush1.msra.mxu0 0.0
      %1885 = vmatprep.mubr.f32.mxu0 0.0
      %1886 = vmatmul.mubr.f32.gmra.mrb[0].mxu0 %v1816
      %v1887 = vpop.f32.mrb[0].mxu0
      %v1888 = vadd.f32 0.0, %v1887
      %v1889 = vpop.f32.mrb[0].mxu0
      %1890 = vmatprep.mubr.f32.mxu0 0.0
      %1891 = vmatmul.mubr.f32.gmra.mrb[0].mxu0 %v1819
      %v1892 = vpop.f32.mrb[0].mxu0
      %v1893 = vadd.f32 0.0, %v1892
      %v1894 = vpop.f32.mrb[0].mxu0
      %1895 = vdwg.mxu0
      %v1896 = vadd.f32 %v1809, %v1888
      %v1897 = vadd.f32 %v1810, %v1893
      %v1898 = vmul.f32 %v1252, %v1717
      %v1899 = vmul.f32 %v1253, %v1722
      %v1900 = vld [vmem:[%s8 + $0x60] sm:$0xff]
      %v1901 = vld [vmem:[%s8 + $0x68] sm:$0xff]
      %v1903 = vsel %vm74, %v1898, 0
      %v1906 = vsel %vm74, %v1899, 0
      %1908 = vmatprep.subr.mxu0 0.0
      %1909 = vmatpush1.msra.mxu0 %v1900
      %1910 = vmatprep.subr.mxu0 0.0
      %1911 = vmatpush1.msra.mxu0 %v1901
      %1912 = vmatprep.subr.mxu0 0.0
      %1913 = vmatpush1.msra.mxu0 0.0
      %1914 = vmatprep.subr.mxu0 0.0
      %1915 = vmatpush1.msra.mxu0 0.0
      %1916 = vmatprep.subr.mxu0 0.0
      %1917 = vmatpush1.msra.mxu0 0.0
      %1918 = vmatprep.subr.mxu0 0.0
      %1919 = vmatpush1.msra.mxu0 0.0
      %1920 = vmatprep.subr.mxu0 0.0
      %1921 = vmatpush1.msra.mxu0 0.0
      %1922 = vmatprep.subr.mxu0 0.0
      %1923 = vmatpush1.msra.mxu0 0.0
      %1924 = vmatprep.subr.mxu0 0.0
      %1925 = vmatpush1.msra.mxu0 0.0
      %1926 = vmatprep.subr.mxu0 0.0
      %1927 = vmatpush1.msra.mxu0 0.0
      %1928 = vmatprep.subr.mxu0 0.0
      %1929 = vmatpush1.msra.mxu0 0.0
      %1930 = vmatprep.subr.mxu0 0.0
      %1931 = vmatpush1.msra.mxu0 0.0
      %1932 = vmatprep.subr.mxu0 0.0
      %1933 = vmatpush1.msra.mxu0 0.0
      %1934 = vmatprep.subr.mxu0 0.0
      %1935 = vmatpush1.msra.mxu0 0.0
      %1936 = vmatprep.subr.mxu0 0.0
      %1937 = vmatpush1.msra.mxu0 0.0
      %1938 = vmatprep.subr.mxu0 0.0
      %1939 = vmatpush1.msra.mxu0 0.0
      %1940 = vmatprep.subr.mxu0 0.0
      %1941 = vmatpush1.msra.mxu0 0.0
      %1942 = vmatprep.subr.mxu0 0.0
      %1943 = vmatpush1.msra.mxu0 0.0
      %1944 = vmatprep.subr.mxu0 0.0
      %1945 = vmatpush1.msra.mxu0 0.0
      %1946 = vmatprep.subr.mxu0 0.0
      %1947 = vmatpush1.msra.mxu0 0.0
      %1948 = vmatprep.subr.mxu0 0.0
      %1949 = vmatpush1.msra.mxu0 0.0
      %1950 = vmatprep.subr.mxu0 0.0
      %1951 = vmatpush1.msra.mxu0 0.0
      %1952 = vmatprep.subr.mxu0 0.0
      %1953 = vmatpush1.msra.mxu0 0.0
      %1954 = vmatprep.subr.mxu0 0.0
      %1955 = vmatpush1.msra.mxu0 0.0
      %1956 = vmatprep.subr.mxu0 0.0
      %1957 = vmatpush1.msra.mxu0 0.0
      %1958 = vmatprep.subr.mxu0 0.0
      %1959 = vmatpush1.msra.mxu0 0.0
      %1960 = vmatprep.subr.mxu0 0.0
      %1961 = vmatpush1.msra.mxu0 0.0
      %1962 = vmatprep.subr.mxu0 0.0
      %1963 = vmatpush1.msra.mxu0 0.0
      %1964 = vmatprep.subr.mxu0 0.0
      %1965 = vmatpush1.msra.mxu0 0.0
      %1966 = vmatprep.subr.mxu0 0.0
      %1967 = vmatpush1.msra.mxu0 0.0
      %1968 = vmatprep.subr.mxu0 0.0
      %1969 = vmatpush1.msra.mxu0 0.0
      %1970 = vmatprep.subr.mxu0 0.0
      %1971 = vmatpush1.msra.mxu0 0.0
      %1972 = vmatprep.mubr.f32.mxu0 0.0
      %1973 = vmatmul.mubr.f32.gmra.mrb[0].mxu0 %v1903
      %v1974 = vpop.f32.mrb[0].mxu0
      %v1975 = vadd.f32 0.0, %v1974
      %v1976 = vpop.f32.mrb[0].mxu0
      %1977 = vmatprep.mubr.f32.mxu0 0.0
      %1978 = vmatmul.mubr.f32.gmra.mrb[0].mxu0 %v1906
      %v1979 = vpop.f32.mrb[0].mxu0
      %v1980 = vadd.f32 0.0, %v1979
      %v1981 = vpop.f32.mrb[0].mxu0
      %1982 = vdwg.mxu0
      %v1983 = vadd.f32 %v1896, %v1975
      %v1984 = vadd.f32 %v1897, %v1980
      %v1985 = vmul.f32 %v1276, %v1717
      %v1986 = vmul.f32 %v1277, %v1722
      %v1987 = vld [vmem:[%s8 + $0x70] sm:$0xff]
      %v1988 = vld [vmem:[%s8 + $0x78] sm:$0xff]
      %v1990 = vsel %vm74, %v1985, 0
      %v1993 = vsel %vm74, %v1986, 0
      %1995 = vmatprep.subr.mxu0 0.0
      %1996 = vmatpush1.msra.mxu0 %v1987
      %1997 = vmatprep.subr.mxu0 0.0
      %1998 = vmatpush1.msra.mxu0 %v1988
      %1999 = vmatprep.subr.mxu0 0.0
      %2000 = vmatpush1.msra.mxu0 0.0
      %2001 = vmatprep.subr.mxu0 0.0
      %2002 = vmatpush1.msra.mxu0 0.0
      %2003 = vmatprep.subr.mxu0 0.0
      %2004 = vmatpush1.msra.mxu0 0.0
      %2005 = vmatprep.subr.mxu0 0.0
      %2006 = vmatpush1.msra.mxu0 0.0
      %2007 = vmatprep.subr.mxu0 0.0
      %2008 = vmatpush1.msra.mxu0 0.0
      %2009 = vmatprep.subr.mxu0 0.0
      %2010 = vmatpush1.msra.mxu0 0.0
      %2011 = vmatprep.subr.mxu0 0.0
      %2012 = vmatpush1.msra.mxu0 0.0
      %2013 = vmatprep.subr.mxu0 0.0
      %2014 = vmatpush1.msra.mxu0 0.0
      %2015 = vmatprep.subr.mxu0 0.0
      %2016 = vmatpush1.msra.mxu0 0.0
      %2017 = vmatprep.subr.mxu0 0.0
      %2018 = vmatpush1.msra.mxu0 0.0
      %2019 = vmatprep.subr.mxu0 0.0
      %2020 = vmatpush1.msra.mxu0 0.0
      %2021 = vmatprep.subr.mxu0 0.0
      %2022 = vmatpush1.msra.mxu0 0.0
      %2023 = vmatprep.subr.mxu0 0.0
      %2024 = vmatpush1.msra.mxu0 0.0
      %2025 = vmatprep.subr.mxu0 0.0
      %2026 = vmatpush1.msra.mxu0 0.0
      %2027 = vmatprep.subr.mxu0 0.0
      %2028 = vmatpush1.msra.mxu0 0.0
      %2029 = vmatprep.subr.mxu0 0.0
      %2030 = vmatpush1.msra.mxu0 0.0
      %2031 = vmatprep.subr.mxu0 0.0
      %2032 = vmatpush1.msra.mxu0 0.0
      %2033 = vmatprep.subr.mxu0 0.0
      %2034 = vmatpush1.msra.mxu0 0.0
      %2035 = vmatprep.subr.mxu0 0.0
      %2036 = vmatpush1.msra.mxu0 0.0
      %2037 = vmatprep.subr.mxu0 0.0
      %2038 = vmatpush1.msra.mxu0 0.0
      %2039 = vmatprep.subr.mxu0 0.0
      %2040 = vmatpush1.msra.mxu0 0.0
      %2041 = vmatprep.subr.mxu0 0.0
      %2042 = vmatpush1.msra.mxu0 0.0
      %2043 = vmatprep.subr.mxu0 0.0
      %2044 = vmatpush1.msra.mxu0 0.0
      %2045 = vmatprep.subr.mxu0 0.0
      %2046 = vmatpush1.msra.mxu0 0.0
      %2047 = vmatprep.subr.mxu0 0.0
      %2048 = vmatpush1.msra.mxu0 0.0
      %2049 = vmatprep.subr.mxu0 0.0
      %2050 = vmatpush1.msra.mxu0 0.0
      %2051 = vmatprep.subr.mxu0 0.0
      %2052 = vmatpush1.msra.mxu0 0.0
      %2053 = vmatprep.subr.mxu0 0.0
      %2054 = vmatpush1.msra.mxu0 0.0
      %2055 = vmatprep.subr.mxu0 0.0
      %2056 = vmatpush1.msra.mxu0 0.0
      %2057 = vmatprep.subr.mxu0 0.0
      %2058 = vmatpush1.msra.mxu0 0.0
      %2059 = vmatprep.mubr.f32.mxu0 0.0
      %2060 = vmatmul.mubr.f32.gmra.mrb[0].mxu0 %v1990
      %v2061 = vpop.f32.mrb[0].mxu0
      %v2062 = vadd.f32 0.0, %v2061
      %v2063 = vpop.f32.mrb[0].mxu0
      %2064 = vmatprep.mubr.f32.mxu0 0.0
      %2065 = vmatmul.mubr.f32.gmra.mrb[0].mxu0 %v1993
      %v2066 = vpop.f32.mrb[0].mxu0
      %v2067 = vadd.f32 0.0, %v2066
      %v2068 = vpop.f32.mrb[0].mxu0
      %2069 = vdwg.mxu0
      %v2070 = vadd.f32 %v1983, %v2062
      %v2071 = vadd.f32 %v1984, %v2067
      %2073 = vset.pattern.permute.xlu0 0
      %2074 = vperm.xlu0 %2073, %v1288
      %v2075 = vpop.permute.xlu0 %2074
      %2078 = vset.pattern.permute.xlu0 0
      %2079 = vperm.xlu0 %2078, %v1289
      %v2080 = vpop.permute.xlu0 %2079
      %v2082 = vmul.f32 %v1244, %v2075
      %v2083 = vmul.f32 %v1245, %v2080
      %v2084 = vld [vmem:[%s8 + $0x80] sm:$0xff]
      %v2085 = vld [vmem:[%s8 + $0x88] sm:$0xff]
      %v2087 = vsel %vm74, %v2082, 0
      %v2090 = vsel %vm74, %v2083, 0
      %2092 = vmatprep.subr.mxu0 0.0
      %2093 = vmatpush1.msra.mxu0 %v2084
      %2094 = vmatprep.subr.mxu0 0.0
      %2095 = vmatpush1.msra.mxu0 %v2085
      %2096 = vmatprep.subr.mxu0 0.0
      %2097 = vmatpush1.msra.mxu0 0.0
      %2098 = vmatprep.subr.mxu0 0.0
      %2099 = vmatpush1.msra.mxu0 0.0
      %2100 = vmatprep.subr.mxu0 0.0
      %2101 = vmatpush1.msra.mxu0 0.0
      %2102 = vmatprep.subr.mxu0 0.0
      %2103 = vmatpush1.msra.mxu0 0.0
      %2104 = vmatprep.subr.mxu0 0.0
      %2105 = vmatpush1.msra.mxu0 0.0
      %2106 = vmatprep.subr.mxu0 0.0
      %2107 = vmatpush1.msra.mxu0 0.0
      %2108 = vmatprep.subr.mxu0 0.0
      %2109 = vmatpush1.msra.mxu0 0.0
      %2110 = vmatprep.subr.mxu0 0.0
      %2111 = vmatpush1.msra.mxu0 0.0
      %2112 = vmatprep.subr.mxu0 0.0
      %2113 = vmatpush1.msra.mxu0 0.0
      %2114 = vmatprep.subr.mxu0 0.0
      %2115 = vmatpush1.msra.mxu0 0.0
      %2116 = vmatprep.subr.mxu0 0.0
      %2117 = vmatpush1.msra.mxu0 0.0
      %2118 = vmatprep.subr.mxu0 0.0
      %2119 = vmatpush1.msra.mxu0 0.0
      %2120 = vmatprep.subr.mxu0 0.0
      %2121 = vmatpush1.msra.mxu0 0.0
      %2122 = vmatprep.subr.mxu0 0.0
      %2123 = vmatpush1.msra.mxu0 0.0
      %2124 = vmatprep.subr.mxu0 0.0
      %2125 = vmatpush1.msra.mxu0 0.0
      %2126 = vmatprep.subr.mxu0 0.0
      %2127 = vmatpush1.msra.mxu0 0.0
      %2128 = vmatprep.subr.mxu0 0.0
      %2129 = vmatpush1.msra.mxu0 0.0
      %2130 = vmatprep.subr.mxu0 0.0
      %2131 = vmatpush1.msra.mxu0 0.0
      %2132 = vmatprep.subr.mxu0 0.0
      %2133 = vmatpush1.msra.mxu0 0.0
      %2134 = vmatprep.subr.mxu0 0.0
      %2135 = vmatpush1.msra.mxu0 0.0
      %2136 = vmatprep.subr.mxu0 0.0
      %2137 = vmatpush1.msra.mxu0 0.0
      %2138 = vmatprep.subr.mxu0 0.0
      %2139 = vmatpush1.msra.mxu0 0.0
      %2140 = vmatprep.subr.mxu0 0.0
      %2141 = vmatpush1.msra.mxu0 0.0
      %2142 = vmatprep.subr.mxu0 0.0
      %2143 = vmatpush1.msra.mxu0 0.0
      %2144 = vmatprep.subr.mxu0 0.0
      %2145 = vmatpush1.msra.mxu0 0.0
      %2146 = vmatprep.subr.mxu0 0.0
      %2147 = vmatpush1.msra.mxu0 0.0
      %2148 = vmatprep.subr.mxu0 0.0
      %2149 = vmatpush1.msra.mxu0 0.0
      %2150 = vmatprep.subr.mxu0 0.0
      %2151 = vmatpush1.msra.mxu0 0.0
      %2152 = vmatprep.subr.mxu0 0.0
      %2153 = vmatpush1.msra.mxu0 0.0
      %2154 = vmatprep.subr.mxu0 0.0
      %2155 = vmatpush1.msra.mxu0 0.0
      %2156 = vmatprep.mubr.f32.mxu0 0.0
      %2157 = vmatmul.mubr.f32.gmra.mrb[0].mxu0 %v2087
      %v2158 = vpop.f32.mrb[0].mxu0
      %v2159 = vadd.f32 0.0, %v2158
      %v2160 = vpop.f32.mrb[0].mxu0
      %2161 = vmatprep.mubr.f32.mxu0 0.0
      %2162 = vmatmul.mubr.f32.gmra.mrb[0].mxu0 %v2090
      %v2163 = vpop.f32.mrb[0].mxu0
      %v2164 = vadd.f32 0.0, %v2163
      %v2165 = vpop.f32.mrb[0].mxu0
      %2166 = vdwg.mxu0
      %v2167 = vadd.f32 %v2070, %v2159
      %v2168 = vadd.f32 %v2071, %v2164
      %v2169 = vmul.f32 %v1248, %v2075
      %v2170 = vmul.f32 %v1249, %v2080
      %v2171 = vld [vmem:[%s8 + $0x90] sm:$0xff]
      %v2172 = vld [vmem:[%s8 + $0x98] sm:$0xff]
      %v2174 = vsel %vm74, %v2169, 0
      %v2177 = vsel %vm74, %v2170, 0
      %2179 = vmatprep.subr.mxu0 0.0
      %2180 = vmatpush1.msra.mxu0 %v2171
      %2181 = vmatprep.subr.mxu0 0.0
      %2182 = vmatpush1.msra.mxu0 %v2172
      %2183 = vmatprep.subr.mxu0 0.0
      %2184 = vmatpush1.msra.mxu0 0.0
      %2185 = vmatprep.subr.mxu0 0.0
      %2186 = vmatpush1.msra.mxu0 0.0
      %2187 = vmatprep.subr.mxu0 0.0
      %2188 = vmatpush1.msra.mxu0 0.0
      %2189 = vmatprep.subr.mxu0 0.0
      %2190 = vmatpush1.msra.mxu0 0.0
      %2191 = vmatprep.subr.mxu0 0.0
      %2192 = vmatpush1.msra.mxu0 0.0
      %2193 = vmatprep.subr.mxu0 0.0
      %2194 = vmatpush1.msra.mxu0 0.0
      %2195 = vmatprep.subr.mxu0 0.0
      %2196 = vmatpush1.msra.mxu0 0.0
      %2197 = vmatprep.subr.mxu0 0.0
      %2198 = vmatpush1.msra.mxu0 0.0
      %2199 = vmatprep.subr.mxu0 0.0
      %2200 = vmatpush1.msra.mxu0 0.0
      %2201 = vmatprep.subr.mxu0 0.0
      %2202 = vmatpush1.msra.mxu0 0.0
      %2203 = vmatprep.subr.mxu0 0.0
      %2204 = vmatpush1.msra.mxu0 0.0
      %2205 = vmatprep.subr.mxu0 0.0
      %2206 = vmatpush1.msra.mxu0 0.0
      %2207 = vmatprep.subr.mxu0 0.0
      %2208 = vmatpush1.msra.mxu0 0.0
      %2209 = vmatprep.subr.mxu0 0.0
      %2210 = vmatpush1.msra.mxu0 0.0
      %2211 = vmatprep.subr.mxu0 0.0
      %2212 = vmatpush1.msra.mxu0 0.0
      %2213 = vmatprep.subr.mxu0 0.0
      %2214 = vmatpush1.msra.mxu0 0.0
      %2215 = vmatprep.subr.mxu0 0.0
      %2216 = vmatpush1.msra.mxu0 0.0
      %2217 = vmatprep.subr.mxu0 0.0
      %2218 = vmatpush1.msra.mxu0 0.0
      %2219 = vmatprep.subr.mxu0 0.0
      %2220 = vmatpush1.msra.mxu0 0.0
      %2221 = vmatprep.subr.mxu0 0.0
      %2222 = vmatpush1.msra.mxu0 0.0
      %2223 = vmatprep.subr.mxu0 0.0
      %2224 = vmatpush1.msra.mxu0 0.0
      %2225 = vmatprep.subr.mxu0 0.0
      %2226 = vmatpush1.msra.mxu0 0.0
      %2227 = vmatprep.subr.mxu0 0.0
      %2228 = vmatpush1.msra.mxu0 0.0
      %2229 = vmatprep.subr.mxu0 0.0
      %2230 = vmatpush1.msra.mxu0 0.0
      %2231 = vmatprep.subr.mxu0 0.0
      %2232 = vmatpush1.msra.mxu0 0.0
      %2233 = vmatprep.subr.mxu0 0.0
      %2234 = vmatpush1.msra.mxu0 0.0
      %2235 = vmatprep.subr.mxu0 0.0
      %2236 = vmatpush1.msra.mxu0 0.0
      %2237 = vmatprep.subr.mxu0 0.0
      %2238 = vmatpush1.msra.mxu0 0.0
      %2239 = vmatprep.subr.mxu0 0.0
      %2240 = vmatpush1.msra.mxu0 0.0
      %2241 = vmatprep.subr.mxu0 0.0
      %2242 = vmatpush1.msra.mxu0 0.0
      %2243 = vmatprep.mubr.f32.mxu0 0.0
      %2244 = vmatmul.mubr.f32.gmra.mrb[0].mxu0 %v2174
      %v2245 = vpop.f32.mrb[0].mxu0
      %v2246 = vadd.f32 0.0, %v2245
      %v2247 = vpop.f32.mrb[0].mxu0
      %2248 = vmatprep.mubr.f32.mxu0 0.0
      %2249 = vmatmul.mubr.f32.gmra.mrb[0].mxu0 %v2177
      %v2250 = vpop.f32.mrb[0].mxu0
      %v2251 = vadd.f32 0.0, %v2250
      %v2252 = vpop.f32.mrb[0].mxu0
      %2253 = vdwg.mxu0
      %v2254 = vadd.f32 %v2167, %v2246
      %v2255 = vadd.f32 %v2168, %v2251
      %v2256 = vmul.f32 %v1252, %v2075
      %v2257 = vmul.f32 %v1253, %v2080
      %v2258 = vld [vmem:[%s8 + $0xa0] sm:$0xff]
      %v2259 = vld [vmem:[%s8 + $0xa8] sm:$0xff]
      %v2261 = vsel %vm74, %v2256, 0
      %v2264 = vsel %vm74, %v2257, 0
      %2266 = vmatprep.subr.mxu0 0.0
      %2267 = vmatpush1.msra.mxu0 %v2258
      %2268 = vmatprep.subr.mxu0 0.0
      %2269 = vmatpush1.msra.mxu0 %v2259
      %2270 = vmatprep.subr.mxu0 0.0
      %2271 = vmatpush1.msra.mxu0 0.0
      %2272 = vmatprep.subr.mxu0 0.0
      %2273 = vmatpush1.msra.mxu0 0.0
      %2274 = vmatprep.subr.mxu0 0.0
      %2275 = vmatpush1.msra.mxu0 0.0
      %2276 = vmatprep.subr.mxu0 0.0
      %2277 = vmatpush1.msra.mxu0 0.0
      %2278 = vmatprep.subr.mxu0 0.0
      %2279 = vmatpush1.msra.mxu0 0.0
      %2280 = vmatprep.subr.mxu0 0.0
      %2281 = vmatpush1.msra.mxu0 0.0
      %2282 = vmatprep.subr.mxu0 0.0
      %2283 = vmatpush1.msra.mxu0 0.0
      %2284 = vmatprep.subr.mxu0 0.0
      %2285 = vmatpush1.msra.mxu0 0.0
      %2286 = vmatprep.subr.mxu0 0.0
      %2287 = vmatpush1.msra.mxu0 0.0
      %2288 = vmatprep.subr.mxu0 0.0
      %2289 = vmatpush1.msra.mxu0 0.0
      %2290 = vmatprep.subr.mxu0 0.0
      %2291 = vmatpush1.msra.mxu0 0.0
      %2292 = vmatprep.subr.mxu0 0.0
      %2293 = vmatpush1.msra.mxu0 0.0
      %2294 = vmatprep.subr.mxu0 0.0
      %2295 = vmatpush1.msra.mxu0 0.0
      %2296 = vmatprep.subr.mxu0 0.0
      %2297 = vmatpush1.msra.mxu0 0.0
      %2298 = vmatprep.subr.mxu0 0.0
      %2299 = vmatpush1.msra.mxu0 0.0
      %2300 = vmatprep.subr.mxu0 0.0
      %2301 = vmatpush1.msra.mxu0 0.0
      %2302 = vmatprep.subr.mxu0 0.0
      %2303 = vmatpush1.msra.mxu0 0.0
      %2304 = vmatprep.subr.mxu0 0.0
      %2305 = vmatpush1.msra.mxu0 0.0
      %2306 = vmatprep.subr.mxu0 0.0
      %2307 = vmatpush1.msra.mxu0 0.0
      %2308 = vmatprep.subr.mxu0 0.0
      %2309 = vmatpush1.msra.mxu0 0.0
      %2310 = vmatprep.subr.mxu0 0.0
      %2311 = vmatpush1.msra.mxu0 0.0
      %2312 = vmatprep.subr.mxu0 0.0
      %2313 = vmatpush1.msra.mxu0 0.0
      %2314 = vmatprep.subr.mxu0 0.0
      %2315 = vmatpush1.msra.mxu0 0.0
      %2316 = vmatprep.subr.mxu0 0.0
      %2317 = vmatpush1.msra.mxu0 0.0
      %2318 = vmatprep.subr.mxu0 0.0
      %2319 = vmatpush1.msra.mxu0 0.0
      %2320 = vmatprep.subr.mxu0 0.0
      %2321 = vmatpush1.msra.mxu0 0.0
      %2322 = vmatprep.subr.mxu0 0.0
      %2323 = vmatpush1.msra.mxu0 0.0
      %2324 = vmatprep.subr.mxu0 0.0
      %2325 = vmatpush1.msra.mxu0 0.0
      %2326 = vmatprep.subr.mxu0 0.0
      %2327 = vmatpush1.msra.mxu0 0.0
      %2328 = vmatprep.subr.mxu0 0.0
      %2329 = vmatpush1.msra.mxu0 0.0
      %2330 = vmatprep.mubr.f32.mxu0 0.0
      %2331 = vmatmul.mubr.f32.gmra.mrb[0].mxu0 %v2261
      %v2332 = vpop.f32.mrb[0].mxu0
      %v2333 = vadd.f32 0.0, %v2332
      %v2334 = vpop.f32.mrb[0].mxu0
      %2335 = vmatprep.mubr.f32.mxu0 0.0
      %2336 = vmatmul.mubr.f32.gmra.mrb[0].mxu0 %v2264
      %v2337 = vpop.f32.mrb[0].mxu0
      %v2338 = vadd.f32 0.0, %v2337
      %v2339 = vpop.f32.mrb[0].mxu0
      %2340 = vdwg.mxu0
      %v2341 = vadd.f32 %v2254, %v2333
      %v2342 = vadd.f32 %v2255, %v2338
      %v2343 = vmul.f32 %v1276, %v2075
      %v2344 = vmul.f32 %v1277, %v2080
      %v2345 = vld [vmem:[%s8 + $0xb0] sm:$0xff]
      %v2346 = vld [vmem:[%s8 + $0xb8] sm:$0xff]
      %v2348 = vsel %vm74, %v2343, 0
      %v2351 = vsel %vm74, %v2344, 0
      %2353 = vmatprep.subr.mxu0 0.0
      %2354 = vmatpush1.msra.mxu0 %v2345
      %2355 = vmatprep.subr.mxu0 0.0
      %2356 = vmatpush1.msra.mxu0 %v2346
      %2357 = vmatprep.subr.mxu0 0.0
      %2358 = vmatpush1.msra.mxu0 0.0
      %2359 = vmatprep.subr.mxu0 0.0
      %2360 = vmatpush1.msra.mxu0 0.0
      %2361 = vmatprep.subr.mxu0 0.0
      %2362 = vmatpush1.msra.mxu0 0.0
      %2363 = vmatprep.subr.mxu0 0.0
      %2364 = vmatpush1.msra.mxu0 0.0
      %2365 = vmatprep.subr.mxu0 0.0
      %2366 = vmatpush1.msra.mxu0 0.0
      %2367 = vmatprep.subr.mxu0 0.0
      %2368 = vmatpush1.msra.mxu0 0.0
      %2369 = vmatprep.subr.mxu0 0.0
      %2370 = vmatpush1.msra.mxu0 0.0
      %2371 = vmatprep.subr.mxu0 0.0
      %2372 = vmatpush1.msra.mxu0 0.0
      %2373 = vmatprep.subr.mxu0 0.0
      %2374 = vmatpush1.msra.mxu0 0.0
      %2375 = vmatprep.subr.mxu0 0.0
      %2376 = vmatpush1.msra.mxu0 0.0
      %2377 = vmatprep.subr.mxu0 0.0
      %2378 = vmatpush1.msra.mxu0 0.0
      %2379 = vmatprep.subr.mxu0 0.0
      %2380 = vmatpush1.msra.mxu0 0.0
      %2381 = vmatprep.subr.mxu0 0.0
      %2382 = vmatpush1.msra.mxu0 0.0
      %2383 = vmatprep.subr.mxu0 0.0
      %2384 = vmatpush1.msra.mxu0 0.0
      %2385 = vmatprep.subr.mxu0 0.0
      %2386 = vmatpush1.msra.mxu0 0.0
      %2387 = vmatprep.subr.mxu0 0.0
      %2388 = vmatpush1.msra.mxu0 0.0
      %2389 = vmatprep.subr.mxu0 0.0
      %2390 = vmatpush1.msra.mxu0 0.0
      %2391 = vmatprep.subr.mxu0 0.0
      %2392 = vmatpush1.msra.mxu0 0.0
      %2393 = vmatprep.subr.mxu0 0.0
      %2394 = vmatpush1.msra.mxu0 0.0
      %2395 = vmatprep.subr.mxu0 0.0
      %2396 = vmatpush1.msra.mxu0 0.0
      %2397 = vmatprep.subr.mxu0 0.0
      %2398 = vmatpush1.msra.mxu0 0.0
      %2399 = vmatprep.subr.mxu0 0.0
      %2400 = vmatpush1.msra.mxu0 0.0
      %2401 = vmatprep.subr.mxu0 0.0
      %2402 = vmatpush1.msra.mxu0 0.0
      %2403 = vmatprep.subr.mxu0 0.0
      %2404 = vmatpush1.msra.mxu0 0.0
      %2405 = vmatprep.subr.mxu0 0.0
      %2406 = vmatpush1.msra.mxu0 0.0
      %2407 = vmatprep.subr.mxu0 0.0
      %2408 = vmatpush1.msra.mxu0 0.0
      %2409 = vmatprep.subr.mxu0 0.0
      %2410 = vmatpush1.msra.mxu0 0.0
      %2411 = vmatprep.subr.mxu0 0.0
      %2412 = vmatpush1.msra.mxu0 0.0
      %2413 = vmatprep.subr.mxu0 0.0
      %2414 = vmatpush1.msra.mxu0 0.0
      %2415 = vmatprep.subr.mxu0 0.0
      %2416 = vmatpush1.msra.mxu0 0.0
      %2417 = vmatprep.mubr.f32.mxu0 0.0
      %2418 = vmatmul.mubr.f32.gmra.mrb[0].mxu0 %v2348
      %v2419 = vpop.f32.mrb[0].mxu0
      %v2420 = vadd.f32 0.0, %v2419
      %v2421 = vpop.f32.mrb[0].mxu0
      %2422 = vmatprep.mubr.f32.mxu0 0.0
      %2423 = vmatmul.mubr.f32.gmra.mrb[0].mxu0 %v2351
      %v2424 = vpop.f32.mrb[0].mxu0
      %v2425 = vadd.f32 0.0, %v2424
      %v2426 = vpop.f32.mrb[0].mxu0
      %2427 = vdwg.mxu0
      %v2428 = vadd.f32 %v2341, %v2420
      %v2429 = vadd.f32 %v2342, %v2425
      %v2430 = vmul.f32 %v2428, 0.25
      %v2431 = vmul.f32 %v2429, 0.25
      %v2432 = vld [vmem:[%s10] sm:$0x1]
      %v2434 = vlaneseq
      %v2435 = vshrl.u32 %v2434, 7
      %v2436 = vsub.s32 0, %v2435
      %v2437 = vrot.slane %v2432, %v2436
      %v2439 = vmul.f32 %v2430, %v2437
      %v2440 = vmul.f32 %v2431, %v2437
      %v2441 = vld [vmem:[%s11] sm:$0x1]
      %v2443 = vlaneseq
      %v2444 = vshrl.u32 %v2443, 7
      %v2445 = vsub.s32 0, %v2444
      %v2446 = vrot.slane %v2441, %v2445
      %v2448 = vadd.f32 %v2439, %v2446
      %v2449 = vadd.f32 %v2440, %v2446
      %v2450 = vld [vmem:[%s12] sm:$0xff]
      %v2451 = vld [vmem:[%s12 + $0x8] sm:$0xff]
      %v2452 = vld [vmem:[%s12 + $0x10] sm:$0xff]
      %v2453 = vld [vmem:[%s12 + $0x18] sm:$0xff]
      %v2454 = vld [vmem:[%s12 + $0x20] sm:$0xff]
      %v2455 = vld [vmem:[%s13] sm:$0x1]
      %v2457 = vlaneseq
      %v2458 = vshrl.u32 %v2457, 7
      %v2459 = vsub.s32 0, %v2458
      %v2460 = vrot.slane %v2455, %v2459
      %vm2462 = vcmask 326656
      %v2464 = vsel %vm2462, %v2448, 0
      %v2467 = vsel %vm2462, %v2449, 0
      %2469 = vmatprep.subr.mxu0 0.0
      %2470 = vmatpush1.msra.mxu0 %v2450
      %2471 = vmatprep.subr.mxu0 0.0
      %2472 = vmatpush1.msra.mxu0 %v2451
      %2473 = vmatprep.subr.mxu0 0.0
      %2474 = vmatpush1.msra.mxu0 %v2452
      %2475 = vmatprep.subr.mxu0 0.0
      %2476 = vmatpush1.msra.mxu0 %v2453
      %2477 = vmatprep.subr.mxu0 0.0
      %2478 = vmatpush1.msra.mxu0 %v2454
      %2479 = vmatprep.subr.mxu0 0.0
      %2480 = vmatpush1.msra.mxu0 0.0
      %2481 = vmatprep.subr.mxu0 0.0
      %2482 = vmatpush1.msra.mxu0 0.0
      %2483 = vmatprep.subr.mxu0 0.0
      %2484 = vmatpush1.msra.mxu0 0.0
      %2485 = vmatprep.subr.mxu0 0.0
      %2486 = vmatpush1.msra.mxu0 0.0
      %2487 = vmatprep.subr.mxu0 0.0
      %2488 = vmatpush1.msra.mxu0 0.0
      %2489 = vmatprep.subr.mxu0 0.0
      %2490 = vmatpush1.msra.mxu0 0.0
      %2491 = vmatprep.subr.mxu0 0.0
      %2492 = vmatpush1.msra.mxu0 0.0
      %2493 = vmatprep.subr.mxu0 0.0
      %2494 = vmatpush1.msra.mxu0 0.0
      %2495 = vmatprep.subr.mxu0 0.0
      %2496 = vmatpush1.msra.mxu0 0.0
      %2497 = vmatprep.subr.mxu0 0.0
      %2498 = vmatpush1.msra.mxu0 0.0
      %2499 = vmatprep.subr.mxu0 0.0
      %2500 = vmatpush1.msra.mxu0 0.0
      %2501 = vmatprep.subr.mxu0 0.0
      %2502 = vmatpush1.msra.mxu0 0.0
      %2503 = vmatprep.subr.mxu0 0.0
      %2504 = vmatpush1.msra.mxu0 0.0
      %2505 = vmatprep.subr.mxu0 0.0
      %2506 = vmatpush1.msra.mxu0 0.0
      %2507 = vmatprep.subr.mxu0 0.0
      %2508 = vmatpush1.msra.mxu0 0.0
      %2509 = vmatprep.subr.mxu0 0.0
      %2510 = vmatpush1.msra.mxu0 0.0
      %2511 = vmatprep.subr.mxu0 0.0
      %2512 = vmatpush1.msra.mxu0 0.0
      %2513 = vmatprep.subr.mxu0 0.0
      %2514 = vmatpush1.msra.mxu0 0.0
      %2515 = vmatprep.subr.mxu0 0.0
      %2516 = vmatpush1.msra.mxu0 0.0
      %2517 = vmatprep.subr.mxu0 0.0
      %2518 = vmatpush1.msra.mxu0 0.0
      %2519 = vmatprep.subr.mxu0 0.0
      %2520 = vmatpush1.msra.mxu0 0.0
      %2521 = vmatprep.subr.mxu0 0.0
      %2522 = vmatpush1.msra.mxu0 0.0
      %2523 = vmatprep.subr.mxu0 0.0
      %2524 = vmatpush1.msra.mxu0 0.0
      %2525 = vmatprep.subr.mxu0 0.0
      %2526 = vmatpush1.msra.mxu0 0.0
      %2527 = vmatprep.subr.mxu0 0.0
      %2528 = vmatpush1.msra.mxu0 0.0
      %2529 = vmatprep.subr.mxu0 0.0
      %2530 = vmatpush1.msra.mxu0 0.0
      %2531 = vmatprep.subr.mxu0 0.0
      %2532 = vmatpush1.msra.mxu0 0.0
      %2533 = vmatprep.mubr.f32.mxu0 0.0
      %2534 = vmatmul.mubr.f32.gmra.mrb[0].mxu0 %v2464
      %v2535 = vpop.f32.mrb[0].mxu0
      %v2536 = vadd.f32 %v2460, %v2535
      %v2537 = vpop.f32.mrb[0].mxu0
      %2538 = vmatprep.mubr.f32.mxu0 0.0
      %2539 = vmatmul.mubr.f32.gmra.mrb[0].mxu0 %v2467
      %v2540 = vpop.f32.mrb[0].mxu0
      %v2541 = vadd.f32 %v2460, %v2540
      %v2542 = vpop.f32.mrb[0].mxu0
      %2543 = vdwg.mxu0
      %v2544 = vmul.f32 %v2536, 0.01
      %v2545 = vmul.f32 %v2541, 0.01
      %v2546 = vmax.f32 %v2536, %v2544
      %v2547 = vmax.f32 %v2541, %v2545
      %v2548 = vsel %vm2462, %v2546, 0.0
      %2549 = vadd.xlane.f32.xlu0 %v2548
      %v2550 = vpop.xlane.xlu0 %2549
      %v2551 = vsel %vm2462, %v2547, 0.0
      %2552 = vadd.xlane.f32.xlu0 %v2551
      %v2553 = vpop.xlane.xlu0 %2552
      %v2554 = vrcp.pop 40.0
      %v2555 = vmul.f32 %v2550, %v2554
      %v2556 = vmul.f32 %v2553, %v2554
      %v2557 = vsub.f32 %v2546, %v2555
      %v2558 = vsub.f32 %v2547, %v2556
      %v2559 = vmul.f32 %v2557, %v2557
      %v2560 = vmul.f32 %v2558, %v2558
      %v2561 = vsel %vm2462, %v2559, 0.0
      %2562 = vadd.xlane.f32.xlu0 %v2561
      %v2563 = vpop.xlane.xlu0 %2562
      %v2564 = vsel %vm2462, %v2560, 0.0
      %2565 = vadd.xlane.f32.xlu0 %v2564
      %v2566 = vpop.xlane.xlu0 %2565
      %v2567 = vmul.f32 %v2563, %v2554
      %v2568 = vmul.f32 %v2566, %v2554
      %v2569 = vadd.f32 %v2567, 1e-05
      %v2570 = vadd.f32 %v2568, 1e-05
      %v2571 = vrsqrt.pop %v2569
      %v2572 = vrsqrt.pop %v2570
      %v2573 = vmul.f32 %v2557, %v2571
      %v2574 = vmul.f32 %v2558, %v2572
      %v2575 = vld [vmem:[%s14] sm:$0x1]
      %v2577 = vlaneseq
      %v2578 = vshrl.u32 %v2577, 7
      %v2579 = vsub.s32 0, %v2578
      %v2580 = vrot.slane %v2575, %v2579
      %v2582 = vmul.f32 %v2573, %v2580
      %v2583 = vmul.f32 %v2574, %v2580
      %v2584 = vld [vmem:[%s15] sm:$0x1]
      %v2586 = vlaneseq
      %v2587 = vshrl.u32 %v2586, 7
      %v2588 = vsub.s32 0, %v2587
      %v2589 = vrot.slane %v2584, %v2588
      %v2591 = vadd.f32 %v2582, %v2589
      %v2592 = vadd.f32 %v2583, %v2589
      %2593 = vst.msk [vmem:[#allocation6] sm:$0xff] %vm2462, %v2591
      %2594 = vst.msk [vmem:[#allocation6 + $0x8] sm:$0xff] %vm2462, %v2592
    $region73: #{tpu_custom_call.1} parent=1 // pred_fallthru
      _
    // Predicated region
    $region74: #{tpu_custom_call.1} parent=1 // pred_check
      _
    $region75: #{tpu_custom_call.1} parent=1 // pred_check_branch
      %2596 = sbr.rel (0) target = $region77
    $region76: #{tpu_custom_call.1} parent=1 // pred_region
      %s2598 = ssub.s32 256, 256
      %2599 = vsyncadd [#allocation7], %s2598
      %s2600 = sshll.u32 [#allocation6], 4
      %s2601 = int_to_ptr.vmem [resolvable:$true] %s2600
      %2606 = dma.vmem_to_hbm [thread:$0]  %s2601, 256, %s16, [#allocation7], 128, 128, 8
    $region77: #{tpu_custom_call.1} parent=1 // pred_fallthru
      _
    // Predicated region
    $region78: #{tpu_custom_call.1} parent=1 // pred_check
      _
    $region79: #{tpu_custom_call.1} parent=1 // pred_check_branch
      %2608 = sbr.rel (0) target = $region81
    $region80: #{tpu_custom_call.1} parent=1 // pred_region
      %2609 = dma.done [#allocation7], 256
    $region81: #{tpu_custom_call.1} parent=1 // pred_fallthru
      _
    %2610 = vsyncpa [#allocation7], 1

</llo_original>
